<compile_context>
chip_gen: v7x
topology: tpu7x:2x2x1
jax: 0.10.0
libtpu: 0.0.40
codegen_flags: <defaults>
</compile_context>

<pallas_src>
import functools
import math

import jax
import jax.numpy as jnp
from jax.experimental import pallas as pl
from jax.experimental.pallas import tpu as pltpu


# ----------------------------- small config -----------------------------
class Cfg:
    vocab_size = 128
    hidden_size = 64
    num_hidden_layers = 2
    num_heads = 4
    q_lora_rank = 32
    kv_lora_rank = 32
    qk_nope_head_dim = 16
    qk_rope_head_dim = 8
    v_head_dim = 16
    intermediate_size = 128        # dense MLP (first_k_dense layers)
    moe_intermediate_size = 32     # per routed expert
    n_routed_experts = 4
    num_experts_per_tok = 2
    n_shared_experts = 1
    first_k_dense_replace = 1
    rms_norm_eps = 1e-6
    rope_theta = 10000.0
    routed_scaling_factor = 1.0    # DeepSeek-V2(-Lite) default
    norm_topk_prob = False         # DeepSeek-V2 default

    @property
    def qk_head_dim(self):
        return self.qk_nope_head_dim + self.qk_rope_head_dim


CFG = Cfg()
_NEG = -1e9
_VMEM_LIMIT = 48 * 1024 * 1024    # explicit scoped-VMEM budget (v5e/v6e/v7x safe)


def _tile(n, pref=512):
    """Row/col tile: full array when small, else the biggest of 512/256/128
    that divides n (per-grid-step overhead dominates with small tiles)."""
    if n <= pref:
        return n
    for t in (pref, 256, 128):
        if n % t == 0:
            return t
    return n


def _cparams(sem):
    return pltpu.CompilerParams(dimension_semantics=sem,
                                vmem_limit_bytes=_VMEM_LIMIT)


def _rms(x, w, eps):
    """f32 RMSNorm of a (T, D) tile with a (1, D) f32 weight."""
    var = jnp.mean(x * x, axis=-1, keepdims=True)
    return x * jax.lax.rsqrt(var + eps) * w.astype(jnp.float32)


# ============================ fused Pallas kernels ============================
def _mla_proj_kernel(x_ref, ln_ref, wa_ref, qln_ref, kvln_ref, wqb_ref, wkvb_ref,
                     o_ref, *, eps, q_rank, kv_rank):
    """input RMSNorm -> fused (q_a|kv_a) matmul -> q_a/kv_a RMSNorm -> q_b / kv_b
    matmuls -> ONE lane-dense output slab [q | kv | kpe]."""
    f32, bf16 = jnp.float32, jnp.bfloat16
    x = x_ref[...].astype(f32)
    xn = _rms(x, ln_ref[...], eps).astype(bf16)
    a = jnp.dot(xn, wa_ref[...], preferred_element_type=f32)
    q_a = a[:, :q_rank]
    ckv = a[:, q_rank:q_rank + kv_rank]
    kpe = a[:, q_rank + kv_rank:]
    q = jnp.dot(_rms(q_a, qln_ref[...], eps).astype(bf16), wqb_ref[...],
                preferred_element_type=f32)
    kv = jnp.dot(_rms(ckv, kvln_ref[...], eps).astype(bf16), wkvb_ref[...],
                 preferred_element_type=f32)
    o_ref[...] = jnp.concatenate([q, kv, kpe], axis=1).astype(o_ref.dtype)


def mla_proj(x2, lp, cfg):
    T, hid = x2.shape
    tm = _tile(T)
    dq = cfg.num_heads * cfg.qk_head_dim
    dkv = cfg.num_heads * (cfg.qk_nope_head_dim + cfg.v_head_dim)
    dr = cfg.qk_rope_head_dim
    da = cfg.q_lora_rank + cfg.kv_lora_rank + dr
    dout = dq + dkv + dr
    # TODO(synk): at real DSv2 dims, tile q_b/kv_b over N (head groups) with an
    #             extra "arbitrary" grid axis so the weights stream (v7x 64MiB).
    kern = functools.partial(_mla_proj_kernel, eps=cfg.rms_norm_eps,
                             q_rank=cfg.q_lora_rank, kv_rank=cfg.kv_lora_rank)
    return pl.pallas_call(
        kern,
        out_shape=jax.ShapeDtypeStruct((T, dout), x2.dtype),
        grid=(T // tm,),
        in_specs=[
            pl.BlockSpec((tm, hid), lambda i: (i, 0)),
            pl.BlockSpec((1, hid), lambda i: (0, 0)),
            pl.BlockSpec((hid, da), lambda i: (0, 0)),
            pl.BlockSpec((1, cfg.q_lora_rank), lambda i: (0, 0)),
            pl.BlockSpec((1, cfg.kv_lora_rank), lambda i: (0, 0)),
            pl.BlockSpec((cfg.q_lora_rank, dq), lambda i: (0, 0)),
            pl.BlockSpec((cfg.kv_lora_rank, dkv), lambda i: (0, 0)),
        ],
        out_specs=pl.BlockSpec((tm, dout), lambda i: (i, 0)),
        compiler_params=_cparams(("parallel",)),
    )(x2, lp["input_ln"], lp["qkv_a"], lp["q_a_ln"], lp["kv_a_ln"],
      lp["q_b"], lp["kv_b"])


def _mla_attn_kernel(res_ref, q_ref, kn_ref, v_ref, kpe_ref,
                     cosq_ref, sinq_ref, cosk_ref, sink_ref, amask_ref, wo_ref,
                     o_ref, m_sc, l_sc, acc_sc,
                     *, scale, nope, tq, tk):
    """Flash-style MLA attention tile: in-kernel RoPE, per-tile causal+pad mask,
    online softmax over the kv grid axis, fused o_proj + residual at the end."""
    f32, bf16 = jnp.float32, jnp.bfloat16
    qi = pl.program_id(1)
    ki = pl.program_id(2)
    H = q_ref.shape[1]

    @pl.when(ki == 0)
    def _():
        m_sc[...] = jnp.full(m_sc.shape, -jnp.inf, m_sc.dtype)
        l_sc[...] = jnp.zeros(l_sc.shape, l_sc.dtype)
        acc_sc[...] = jnp.zeros(acc_sc.shape, acc_sc.dtype)

    def rot_half(x):
        h = x.shape[-1] // 2
        return jnp.concatenate([-x[..., h:], x[..., :h]], axis=-1)

    cosq = cosq_ref[0].astype(f32)     # (tq, rope)
    sinq = sinq_ref[0].astype(f32)
    cosk = cosk_ref[0].astype(f32)     # (tk, rope)
    sink = sink_ref[0].astype(f32)

    q = q_ref[0].astype(f32)                                  # (H, tq, nope+rope)
    q_pe = q[..., nope:] * cosq[None] + rot_half(q[..., nope:]) * sinq[None]
    q_full = jnp.concatenate([q[..., :nope], q_pe], axis=-1).astype(bf16)

    kpe = kpe_ref[0].astype(f32)                              # (tk, rope)
    kpe = kpe * cosk + rot_half(kpe) * sink
    k_full = jnp.concatenate(
        [kn_ref[0].astype(f32),
         jnp.broadcast_to(kpe[None], (H, tk, kpe.shape[-1]))],
        axis=-1).astype(bf16)                                  # (H, tk, nope+rope)

    s = jnp.einsum('hqd,hkd->hqk', q_full, k_full,
                   preferred_element_type=f32) * scale         # (H, tq, tk)

    # causal + padding mask for this (q-tile, k-tile) (no O(S^2) HBM traffic)
    row = qi * tq + jax.lax.broadcasted_iota(jnp.int32, (tq, tk), 0)
    col = ki * tk + jax.lax.broadcasted_iota(jnp.int32, (tq, tk), 1)
    pad = (1.0 - amask_ref[0].astype(f32)) * _NEG              # (1, tk)
    mask = jnp.where(col <= row, 0.0, _NEG) + pad              # (tq, tk)
    s = s + mask[None]

    m_prev = m_sc[...]
    m_new = jnp.maximum(m_prev, jnp.max(s, axis=-1, keepdims=True))
    alpha = jnp.exp(m_prev - m_new)
    p = jnp.exp(s - m_new)
    l_sc[...] = alpha * l_sc[...] + jnp.sum(p, axis=-1, keepdims=True)
    acc_sc[...] = alpha * acc_sc[...] + jnp.einsum(
        'hqk,hkd->hqd', p.astype(bf16), v_ref[0], preferred_element_type=f32)
    m_sc[...] = m_new

    @pl.when(ki == pl.num_programs(2) - 1)
    def _():
        o = acc_sc[...] * pl.reciprocal(l_sc[...], approx=True)   # (H, tq, vdim)
        # TODO(synk): at real dims fold heads into ONE K=H*vdim o_proj matmul;
        #             here we keep a single batched dot + head-sum (no unroll).
        partial = jnp.einsum('hqd,hdo->hqo', o.astype(bf16), wo_ref[...],
                             preferred_element_type=f32)          # (H, tq, hid)
        out = jnp.sum(partial, axis=0)                            # (tq, hid)
        o_ref[0] = (res_ref[0].astype(f32) + out).astype(o_ref.dtype)


def mla_attention(res, q, k_nope, v, kpe, cos, sin, amask3, wo3, cfg):
    B, S, hid = res.shape
    H = cfg.num_heads
    nope, rope, vdim = cfg.qk_nope_head_dim, cfg.qk_rope_head_dim, cfg.v_head_dim
    qk = cfg.qk_head_dim
    tq = min(S, 128)
    tk = min(S, 128)
    scale = 1.0 / math.sqrt(qk)   # TODO(synk): no YaRN mscale correction.
    kern = functools.partial(_mla_attn_kernel, scale=scale, nope=nope, tq=tq, tk=tk)
    return pl.pallas_call(
        kern,
        out_shape=jax.ShapeDtypeStruct((B, S, hid), res.dtype),
        grid=(B, S // tq, S // tk),
        in_specs=[
            pl.BlockSpec((1, tq, hid), lambda b, i, j: (b, i, 0)),     # residual
            pl.BlockSpec((1, H, tq, qk), lambda b, i, j: (b, 0, i, 0)),  # q
            pl.BlockSpec((1, H, tk, nope), lambda b, i, j: (b, 0, j, 0)),  # k_nope
            pl.BlockSpec((1, H, tk, vdim), lambda b, i, j: (b, 0, j, 0)),  # v
            pl.BlockSpec((1, tk, rope), lambda b, i, j: (b, j, 0)),    # kpe
            pl.BlockSpec((1, tq, rope), lambda b, i, j: (b, i, 0)),    # cos (q pos)
            pl.BlockSpec((1, tq, rope), lambda b, i, j: (b, i, 0)),    # sin (q pos)
            pl.BlockSpec((1, tk, rope), lambda b, i, j: (b, j, 0)),    # cos (k pos)
            pl.BlockSpec((1, tk, rope), lambda b, i, j: (b, j, 0)),    # sin (k pos)
            pl.BlockSpec((1, 1, tk), lambda b, i, j: (b, 0, j)),       # pad mask
            pl.BlockSpec((H, vdim, hid), lambda b, i, j: (0, 0, 0)),   # o_proj
        ],
        out_specs=pl.BlockSpec((1, tq, hid), lambda b, i, j: (b, i, 0)),
        scratch_shapes=[
            pltpu.VMEM((H, tq, 1), jnp.float32),    # m
            pltpu.VMEM((H, tq, 1), jnp.float32),    # l
            pltpu.VMEM((H, tq, vdim), jnp.float32),  # acc
        ],
        compiler_params=_cparams(("parallel", "parallel", "arbitrary")),
    )(res, q, k_nope, v, kpe, cos, sin, cos, sin, amask3, wo3)


def _dense_mlp_kernel(x_ref, ln_ref, wgu_ref, wd_ref, o_ref, *, eps, inter):
    """post RMSNorm -> fused gate|up matmul -> SwiGLU -> down matmul -> +residual."""
    f32, bf16 = jnp.float32, jnp.bfloat16
    x = x_ref[...].astype(f32)
    xn = _rms(x, ln_ref[...], eps).astype(bf16)
    gu = jnp.dot(xn, wgu_ref[...], preferred_element_type=f32)
    g = gu[:, :inter]
    u = gu[:, inter:]
    mid = (g * jax.nn.sigmoid(g) * u).astype(bf16)
    out = jnp.dot(mid, wd_ref[...], preferred_element_type=f32)
    o_ref[...] = (x + out).astype(o_ref.dtype)


def dense_mlp_layer(x2, lp, cfg):
    T, hid = x2.shape
    tm = _tile(T)
    inter = cfg.intermediate_size
    m = lp["mlp"]
    return pl.pallas_call(
        functools.partial(_dense_mlp_kernel, eps=cfg.rms_norm_eps, inter=inter),
        out_shape=jax.ShapeDtypeStruct((T, hid), x2.dtype),
        grid=(T // tm,),
        in_specs=[
            pl.BlockSpec((tm, hid), lambda i: (i, 0)),
            pl.BlockSpec((1, hid), lambda i: (0, 0)),
            pl.BlockSpec((hid, 2 * inter), lambda i: (0, 0)),
            pl.BlockSpec((inter, hid), lambda i: (0, 0)),
        ],
        out_specs=pl.BlockSpec((tm, hid), lambda i: (i, 0)),
        compiler_params=_cparams(("parallel",)),
    )(x2, lp["post_ln"], m["gate_up"], m["down"])


def _moe_mlp_kernel(x_ref, ln_ref, wr_ref, sgu_ref, sd_ref, wgu_ref, wd_ref,
                    o_ref, xn_sc, gate_sc, acc_sc,
                    *, eps, n_exp, top_k, m_inter, s_inter,
                    routed_scale, norm_topk):
    """Expert-tiled MoE: step e streams one routed expert's weights; step 0 also
    computes the RMSNorm, router softmax + iterative top-k gate and the shared
    expert; the accumulator lives in VMEM and is written at the last expert."""
    f32, bf16 = jnp.float32, jnp.bfloat16
    e = pl.program_id(1)

    @pl.when(e == 0)
    def _():
        x = x_ref[...].astype(f32)
        xn = _rms(x, ln_ref[...], eps)
        xn_b = xn.astype(bf16)
        xn_sc[...] = xn_b

        logits = jnp.dot(xn_b, wr_ref[...], preferred_element_type=f32)
        scores = jax.nn.softmax(logits, axis=-1)                  # (T, E)
        # iterative top-k (k small): pick max, zero-out, repeat; ties -> lowest idx
        col = jax.lax.broadcasted_iota(jnp.int32, scores.shape, 1)
        remaining = scores
        gate = jnp.zeros_like(scores)
        for _ in range(top_k):
            mx = jnp.max(remaining, axis=-1, keepdims=True)
            is_max = remaining >= mx
            sel = jnp.min(jnp.where(is_max, col, n_exp), axis=-1, keepdims=True)
            pick = col == sel
            gate = gate + jnp.where(pick, scores, 0.0)
            remaining = jnp.where(pick, -1e30, remaining)
        if top_k > 1 and norm_topk:
            gate = gate / (jnp.sum(gate, axis=-1, keepdims=True) + 1e-20)
        else:
            gate = gate * routed_scale
        gate_sc[...] = gate

        # shared expert(s) + residual seed the accumulator
        gu = jnp.dot(xn_b, sgu_ref[...], preferred_element_type=f32)
        g = gu[:, :s_inter]
        u = gu[:, s_inter:]
        mid = (g * jax.nn.sigmoid(g) * u).astype(bf16)
        acc_sc[...] = x + jnp.dot(mid, sd_ref[...], preferred_element_type=f32)

    # routed expert e (dense over tokens; TODO(synk): block-sparse routed compute
    # with PrefetchScalarGridSpec group offsets at real model sizes).
    xn_b = xn_sc[...]
    gu = jnp.dot(xn_b, wgu_ref[0], preferred_element_type=f32)
    g = gu[:, :m_inter]
    u = gu[:, m_inter:]
    mid = (g * jax.nn.sigmoid(g) * u).astype(bf16)
    eout = jnp.dot(mid, wd_ref[0], preferred_element_type=f32)
    col = jax.lax.broadcasted_iota(jnp.int32, gate_sc.shape, 1)
    w_e = jnp.sum(jnp.where(col == e, gate_sc[...], 0.0), axis=-1, keepdims=True)
    acc_sc[...] = acc_sc[...] + w_e * eout

    @pl.when(e == n_exp - 1)
    def _():
        o_ref[...] = acc_sc[...].astype(o_ref.dtype)


def moe_layer(x2, lp, cfg):
    T, hid = x2.shape
    tm = _tile(T)
    E = cfg.n_routed_experts
    mi = cfg.moe_intermediate_size
    si = cfg.n_shared_experts * cfg.moe_intermediate_size
    m = lp["mlp"]
    kern = functools.partial(
        _moe_mlp_kernel, eps=cfg.rms_norm_eps, n_exp=E,
        top_k=cfg.num_experts_per_tok, m_inter=mi, s_inter=si,
        routed_scale=cfg.routed_scaling_factor, norm_topk=cfg.norm_topk_prob)
    return pl.pallas_call(
        kern,
        out_shape=jax.ShapeDtypeStruct((T, hid), x2.dtype),
        grid=(T // tm, E),
        in_specs=[
            pl.BlockSpec((tm, hid), lambda i, e: (i, 0)),
            pl.BlockSpec((1, hid), lambda i, e: (0, 0)),
            pl.BlockSpec((hid, E), lambda i, e: (0, 0)),
            pl.BlockSpec((hid, 2 * si), lambda i, e: (0, 0)),
            pl.BlockSpec((si, hid), lambda i, e: (0, 0)),
            pl.BlockSpec((1, hid, 2 * mi), lambda i, e: (e, 0, 0)),   # one expert/step
            pl.BlockSpec((1, mi, hid), lambda i, e: (e, 0, 0)),
        ],
        out_specs=pl.BlockSpec((tm, hid), lambda i, e: (i, 0)),
        scratch_shapes=[
            pltpu.VMEM((tm, hid), jnp.bfloat16),   # normalized input
            pltpu.VMEM((tm, E), jnp.float32),      # gate weights
            pltpu.VMEM((tm, hid), jnp.float32),    # accumulator
        ],
        compiler_params=_cparams(("parallel", "arbitrary")),
    )(x2, lp["post_ln"], m["router"], m["shared_gate_up"], m["shared_down"],
      m["experts_gate_up"], m["experts_down"])


def _rmsnorm_matmul_kernel(x_ref, ln_ref, w_ref, o_ref, *, eps):
    """final RMSNorm fused into the lm_head matmul; activation held resident
    across the vocab sweep."""
    f32, bf16 = jnp.float32, jnp.bfloat16
    xn = _rms(x_ref[...].astype(f32), ln_ref[...], eps).astype(bf16)
    o_ref[...] = jnp.dot(xn, w_ref[...],
                         preferred_element_type=f32).astype(o_ref.dtype)


def rmsnorm_matmul(x2, ln_w, w, eps):
    T, K = x2.shape
    N = w.shape[1]
    tm = _tile(T, 1024)     # keep whole activation chunk resident across N sweep
    tn = _tile(N, 512)
    return pl.pallas_call(
        functools.partial(_rmsnorm_matmul_kernel, eps=eps),
        out_shape=jax.ShapeDtypeStruct((T, N), jnp.float32),
        grid=(T // tm, N // tn),
        in_specs=[
            pl.BlockSpec((tm, K), lambda i, j: (i, 0)),
            pl.BlockSpec((1, K), lambda i, j: (0, 0)),
            pl.BlockSpec((K, tn), lambda i, j: (0, j)),
        ],
        out_specs=pl.BlockSpec((tm, tn), lambda i, j: (i, j)),
        compiler_params=_cparams(("parallel", "parallel")),
    )(x2, ln_w, w)


# ----------------------------- JAX glue -----------------------------
def rope_tables(cfg, position_ids, batch):
    """Per-batch (B, S, rope) cos/sin tables (HF de-interleave is baked into the
    weights at prepare_params time, so kernels apply plain rotate_half)."""
    dim = cfg.qk_rope_head_dim
    pos = jnp.broadcast_to(position_ids, (batch, position_ids.shape[-1]))
    inv_freq = 1.0 / (
        cfg.rope_theta ** (jnp.arange(0, dim, 2, dtype=jnp.float32) / dim))
    freqs = pos.astype(jnp.float32)[..., None] * inv_freq[None, None, :]
    emb = jnp.concatenate([freqs, freqs], axis=-1)       # (B, S, rope)
    return jnp.cos(emb), jnp.sin(emb)


def decoder_layer(h, lp, cfg, cos, sin, amask3):
    B, S, hid = h.shape
    H = cfg.num_heads
    nope, vdim, rope = cfg.qk_nope_head_dim, cfg.v_head_dim, cfg.qk_rope_head_dim
    dq = H * cfg.qk_head_dim
    dkv = H * (nope + vdim)

    x2 = h.reshape(B * S, hid)
    slab = mla_proj(x2, lp, cfg)                         # (T, dq+dkv+rope) bf16
    q = slab[:, :dq].reshape(B, S, H, cfg.qk_head_dim).transpose(0, 2, 1, 3)
    kv = slab[:, dq:dq + dkv].reshape(B, S, H, nope + vdim).transpose(0, 2, 1, 3)
    kpe = slab[:, dq + dkv:].reshape(B, S, rope)
    k_nope = kv[..., :nope]
    v = kv[..., nope:]

    h = mla_attention(h, q, k_nope, v, kpe, cos, sin, amask3, lp["o_proj"], cfg)

    x2 = h.reshape(B * S, hid)
    if "router" in lp["mlp"]:
        out = moe_layer(x2, lp, cfg)
    else:
        out = dense_mlp_layer(x2, lp, cfg)
    return out.reshape(B, S, hid)


def model_forward(params, input_ids, position_ids, attention_mask, cfg=CFG):
    B, S = input_ids.shape
    h = params["embed"][input_ids]                            # embedding gather (JAX)
    cos, sin = rope_tables(cfg, position_ids, B)              # (B, S, rope) f32
    amask3 = attention_mask.astype(jnp.float32)[:, None, :]   # (B, 1, S)

    for lp in params["layers"]:
        h = decoder_layer(h, lp, cfg, cos, sin, amask3)

    logits = rmsnorm_matmul(h.reshape(B * S, cfg.hidden_size),
                            params["final_norm"], params["lm_head"],
                            cfg.rms_norm_eps)
    return logits.reshape(B, S, cfg.vocab_size)


# ----------------------------- params -----------------------------
def init_params(key, cfg=CFG):
    """Raw (HF-layout) parameters; weights stored as (in_features, out_features)."""
    keys = iter(jax.random.split(key, 256))

    def nrm(shape, scale=0.02):
        return (scale * jax.random.normal(next(keys), shape)).astype(jnp.float32)

    def ones(shape):
        return jnp.ones(shape, jnp.float32)

    params = {
        "embed": nrm((cfg.vocab_size, cfg.hidden_size)),
        "final_norm": ones((1, cfg.hidden_size)),
        "lm_head": nrm((cfg.hidden_size, cfg.vocab_size)),
        "layers": [],
    }
    for li in range(cfg.num_hidden_layers):
        lp = {
            "input_ln": ones((1, cfg.hidden_size)),
            "q_a": nrm((cfg.hidden_size, cfg.q_lora_rank)),
            "q_a_ln": ones((1, cfg.q_lora_rank)),
            "q_b": nrm((cfg.q_lora_rank, cfg.num_heads * cfg.qk_head_dim)),
            "kv_a": nrm((cfg.hidden_size, cfg.kv_lora_rank + cfg.qk_rope_head_dim)),
            "kv_a_ln": ones((1, cfg.kv_lora_rank)),
            "kv_b": nrm((cfg.kv_lora_rank,
                         cfg.num_heads * (cfg.qk_nope_head_dim + cfg.v_head_dim))),
            "o_proj": nrm((cfg.num_heads * cfg.v_head_dim, cfg.hidden_size)),
            "post_ln": ones((1, cfg.hidden_size)),
        }
        if li < cfg.first_k_dense_replace:
            lp["mlp"] = {
                "gate": nrm((cfg.hidden_size, cfg.intermediate_size)),
                "up": nrm((cfg.hidden_size, cfg.intermediate_size)),
                "down": nrm((cfg.intermediate_size, cfg.hidden_size)),
            }
        else:
            shared_inter = cfg.n_shared_experts * cfg.moe_intermediate_size
            lp["mlp"] = {
                "router": nrm((cfg.hidden_size, cfg.n_routed_experts)),
                "experts": [
                    {"gate": nrm((cfg.hidden_size, cfg.moe_intermediate_size)),
                     "up": nrm((cfg.hidden_size, cfg.moe_intermediate_size)),
                     "down": nrm((cfg.moe_intermediate_size, cfg.hidden_size))}
                    for _ in range(cfg.n_routed_experts)
                ],
                "shared": {
                    "gate": nrm((cfg.hidden_size, shared_inter)),
                    "up": nrm((cfg.hidden_size, shared_inter)),
                    "down": nrm((shared_inter, cfg.hidden_size)),
                },
            }
        params["layers"].append(lp)
    return params


def prepare_params(raw, cfg=CFG):
    """Fuse/permute raw weights into the kernel-friendly layout:
       * matmul weights + embedding in bf16 (MXU-friendly, half HBM bytes);
         norm weights stay f32,
       * concat q_a|kv_a into one wide projection,
       * bake the HF RoPE de-interleave (view(d//2,2).transpose) into the rope
         output columns of q_b and kv_a so kernels apply plain rotate_half,
       * concat gate|up (dense, shared), stack routed-expert weights,
       * reshape o_proj to (H, vdim, hidden) for the batched head matmul."""
    bf16 = jnp.bfloat16
    dr = cfg.qk_rope_head_dim
    nope, vdim = cfg.qk_nope_head_dim, cfg.v_head_dim
    rope_perm = jnp.concatenate([jnp.arange(0, dr, 2), jnp.arange(1, dr, 2)])

    out = {"embed": raw["embed"].astype(bf16),
           "final_norm": raw["final_norm"],
           "lm_head": raw["lm_head"].astype(bf16),
           "layers": []}
    for lp in raw["layers"]:
        kv_a = lp["kv_a"]
        kv_a = jnp.concatenate(
            [kv_a[:, :cfg.kv_lora_rank],
             kv_a[:, cfg.kv_lora_rank:][:, rope_perm]], axis=1)
        qkv_a = jnp.concatenate([lp["q_a"], kv_a], axis=1)

        qb_blocks = []
        for h in range(cfg.num_heads):
            blk = lp["q_b"][:, h * cfg.qk_head_dim:(h + 1) * cfg.qk_head_dim]
            qb_blocks.append(jnp.concatenate(
                [blk[:, :nope], blk[:, nope:][:, rope_perm]], axis=1))
        q_b = jnp.concatenate(qb_blocks, axis=1)

        o_proj3 = lp["o_proj"].reshape(cfg.num_heads, vdim, cfg.hidden_size)

        nlp = {"input_ln": lp["input_ln"], "post_ln": lp["post_ln"],
               "qkv_a": qkv_a.astype(bf16),
               "q_a_ln": lp["q_a_ln"], "kv_a_ln": lp["kv_a_ln"],
               "q_b": q_b.astype(bf16), "kv_b": lp["kv_b"].astype(bf16),
               "o_proj": o_proj3.astype(bf16)}
        m = lp["mlp"]
        if "router" in m:
            nlp["mlp"] = {
                "router": m["router"].astype(bf16),
                "experts_gate_up": jnp.stack(
                    [jnp.concatenate([e["gate"], e["up"]], axis=1)
                     for e in m["experts"]], axis=0).astype(bf16),
                "experts_down": jnp.stack(
                    [e["down"] for e in m["experts"]], axis=0).astype(bf16),
                "shared_gate_up": jnp.concatenate(
                    [m["shared"]["gate"], m["shared"]["up"]], axis=1).astype(bf16),
                "shared_down": m["shared"]["down"].astype(bf16),
            }
        else:
            nlp["mlp"] = {
                "gate_up": jnp.concatenate([m["gate"], m["up"]],
                                           axis=1).astype(bf16),
                "down": m["down"].astype(bf16),
            }
        out["layers"].append(nlp)
    return out


# ----------------------------- main -----------------------------
if __name__ == "__main__":
    key = jax.random.PRNGKey(0)
    pkey, ikey = jax.random.split(key)

    params = prepare_params(init_params(pkey))

    B, S = 2, 8
    input_ids = jax.random.randint(ikey, (B, S), 0, CFG.vocab_size, dtype=jnp.int32)
    position_ids = jnp.arange(S, dtype=jnp.int32)[None, :]
    attention_mask = jnp.ones((B, S), dtype=jnp.int32)

    fwd = jax.jit(model_forward)
    logits = fwd(params, input_ids, position_ids, attention_mask)
    jax.block_until_ready(logits)

    assert logits.shape == (B, S, CFG.vocab_size)
    assert bool(jnp.all(jnp.isfinite(logits)))
    print("KERNEL_OK")
</pallas_src>

<mosaic_0001>
module attributes {stable_mosaic.version = 11 : i64} {
  func.func @_mla_proj_kernel(%arg0: i32, %arg1: memref<16x64xbf16, #tpu.memory_space<vmem>>, %arg2: memref<1x64xf32, #tpu.memory_space<vmem>>, %arg3: memref<64x72xbf16, #tpu.memory_space<vmem>>, %arg4: memref<1x32xf32, #tpu.memory_space<vmem>>, %arg5: memref<1x32xf32, #tpu.memory_space<vmem>>, %arg6: memref<32x96xbf16, #tpu.memory_space<vmem>>, %arg7: memref<32x128xbf16, #tpu.memory_space<vmem>>, %arg8: memref<16x232xbf16, #tpu.memory_space<vmem>>) attributes {dimension_semantics = [#tpu.dimension_semantics<parallel>], iteration_bounds = array<i64: 1>, scalar_prefetch = 0 : i64, scratch_operands = 0 : i64, tpu.core_type = #tpu.core_type<tc>, window_params = [{transform_indices = @transform_0, window_bounds = array<i64: 16, 64>}, {pipeline_mode = #tpu.pipeline_mode<synchronous>, transform_indices = @transform_1, window_bounds = array<i64: 1, 64>}, {pipeline_mode = #tpu.pipeline_mode<synchronous>, transform_indices = @transform_2, window_bounds = array<i64: 64, 72>}, {pipeline_mode = #tpu.pipeline_mode<synchronous>, transform_indices = @transform_3, window_bounds = array<i64: 1, 32>}, {pipeline_mode = #tpu.pipeline_mode<synchronous>, transform_indices = @transform_4, window_bounds = array<i64: 1, 32>}, {pipeline_mode = #tpu.pipeline_mode<synchronous>, transform_indices = @transform_5, window_bounds = array<i64: 32, 96>}, {pipeline_mode = #tpu.pipeline_mode<synchronous>, transform_indices = @transform_6, window_bounds = array<i64: 32, 128>}, {transform_indices = @transform_7, window_bounds = array<i64: 16, 232>}]} {
    %c0 = arith.constant 0 : index
    %c0_0 = arith.constant 0 : index
    %0 = vector.load %arg1[%c0, %c0_0] : memref<16x64xbf16, #tpu.memory_space<vmem>>, vector<16x64xbf16>
    %1 = arith.extf %0 : vector<16x64xbf16> to vector<16x64xf32>
    %c0_1 = arith.constant 0 : index
    %c0_2 = arith.constant 0 : index
    %2 = vector.load %arg2[%c0_1, %c0_2] : memref<1x64xf32, #tpu.memory_space<vmem>>, vector<1x64xf32>
    %3 = arith.mulf %1, %1 : vector<16x64xf32>
    %cst = arith.constant dense<0.000000e+00> : vector<16xf32>
    %4 = vector.multi_reduction <add>, %3, %cst [1] : vector<16x64xf32> to vector<16xf32>
    %5 = vector.shape_cast %4 : vector<16xf32> to vector<16x1xf32>
    %cst_3 = arith.constant 6.400000e+01 : f32
    %6 = vector.broadcast %cst_3 : f32 to vector<16x1xf32>
    %7 = arith.divf %5, %6 : vector<16x1xf32>
    %cst_4 = arith.constant 9.99999997E-7 : f32
    %8 = vector.broadcast %cst_4 : f32 to vector<16x1xf32>
    %9 = arith.addf %7, %8 : vector<16x1xf32>
    %10 = math.rsqrt %9 : vector<16x1xf32>
    %11 = vector.broadcast %10 : vector<16x1xf32> to vector<16x64xf32>
    %12 = arith.mulf %1, %11 : vector<16x64xf32>
    %13 = vector.broadcast %2 : vector<1x64xf32> to vector<16x64xf32>
    %14 = arith.mulf %12, %13 : vector<16x64xf32>
    %15 = arith.truncf %14 : vector<16x64xf32> to vector<16x64xbf16>
    %c0_5 = arith.constant 0 : index
    %c0_6 = arith.constant 0 : index
    %16 = vector.load %arg3[%c0_5, %c0_6] : memref<64x72xbf16, #tpu.memory_space<vmem>>, vector<64x72xbf16>
    %cst_7 = arith.constant dense<0.000000e+00> : vector<16x72xf32>
    %17 = tpu.matmul %15, %16, %cst_7 {dimension_numbers = #tpu.dot_dimension_numbers<[1], [0], [0], [1], [0, 0, 1, 1], [], []>} : vector<16x64xbf16>, vector<64x72xbf16>, vector<16x72xf32> -> vector<16x72xf32>
    %18 = vector.extract_strided_slice %17 {offsets = [0, 0], sizes = [16, 32], strides = [1, 1]} : vector<16x72xf32> to vector<16x32xf32>
    %19 = vector.extract_strided_slice %17 {offsets = [0, 32], sizes = [16, 32], strides = [1, 1]} : vector<16x72xf32> to vector<16x32xf32>
    %20 = vector.extract_strided_slice %17 {offsets = [0, 64], sizes = [16, 8], strides = [1, 1]} : vector<16x72xf32> to vector<16x8xf32>
    %c0_8 = arith.constant 0 : index
    %c0_9 = arith.constant 0 : index
    %21 = vector.load %arg4[%c0_8, %c0_9] : memref<1x32xf32, #tpu.memory_space<vmem>>, vector<1x32xf32>
    %22 = arith.mulf %18, %18 : vector<16x32xf32>
    %cst_10 = arith.constant dense<0.000000e+00> : vector<16xf32>
    %23 = vector.multi_reduction <add>, %22, %cst_10 [1] : vector<16x32xf32> to vector<16xf32>
    %24 = vector.shape_cast %23 : vector<16xf32> to vector<16x1xf32>
    %cst_11 = arith.constant 3.200000e+01 : f32
    %25 = vector.broadcast %cst_11 : f32 to vector<16x1xf32>
    %26 = arith.divf %24, %25 : vector<16x1xf32>
    %cst_12 = arith.constant 9.99999997E-7 : f32
    %27 = vector.broadcast %cst_12 : f32 to vector<16x1xf32>
    %28 = arith.addf %26, %27 : vector<16x1xf32>
    %29 = math.rsqrt %28 : vector<16x1xf32>
    %30 = vector.broadcast %29 : vector<16x1xf32> to vector<16x32xf32>
    %31 = arith.mulf %18, %30 : vector<16x32xf32>
    %32 = vector.broadcast %21 : vector<1x32xf32> to vector<16x32xf32>
    %33 = arith.mulf %31, %32 : vector<16x32xf32>
    %34 = arith.truncf %33 : vector<16x32xf32> to vector<16x32xbf16>
    %c0_13 = arith.constant 0 : index
    %c0_14 = arith.constant 0 : index
    %35 = vector.load %arg6[%c0_13, %c0_14] : memref<32x96xbf16, #tpu.memory_space<vmem>>, vector<32x96xbf16>
    %cst_15 = arith.constant dense<0.000000e+00> : vector<16x96xf32>
    %36 = tpu.matmul %34, %35, %cst_15 {dimension_numbers = #tpu.dot_dimension_numbers<[1], [0], [0], [1], [0, 0, 1, 1], [], []>} : vector<16x32xbf16>, vector<32x96xbf16>, vector<16x96xf32> -> vector<16x96xf32>
    %c0_16 = arith.constant 0 : index
    %c0_17 = arith.constant 0 : index
    %37 = vector.load %arg5[%c0_16, %c0_17] : memref<1x32xf32, #tpu.memory_space<vmem>>, vector<1x32xf32>
    %38 = arith.mulf %19, %19 : vector<16x32xf32>
    %cst_18 = arith.constant dense<0.000000e+00> : vector<16xf32>
    %39 = vector.multi_reduction <add>, %38, %cst_18 [1] : vector<16x32xf32> to vector<16xf32>
    %40 = vector.shape_cast %39 : vector<16xf32> to vector<16x1xf32>
    %cst_19 = arith.constant 3.200000e+01 : f32
    %41 = vector.broadcast %cst_19 : f32 to vector<16x1xf32>
    %42 = arith.divf %40, %41 : vector<16x1xf32>
    %cst_20 = arith.constant 9.99999997E-7 : f32
    %43 = vector.broadcast %cst_20 : f32 to vector<16x1xf32>
    %44 = arith.addf %42, %43 : vector<16x1xf32>
    %45 = math.rsqrt %44 : vector<16x1xf32>
    %46 = vector.broadcast %45 : vector<16x1xf32> to vector<16x32xf32>
    %47 = arith.mulf %19, %46 : vector<16x32xf32>
    %48 = vector.broadcast %37 : vector<1x32xf32> to vector<16x32xf32>
    %49 = arith.mulf %47, %48 : vector<16x32xf32>
    %50 = arith.truncf %49 : vector<16x32xf32> to vector<16x32xbf16>
    %c0_21 = arith.constant 0 : index
    %c0_22 = arith.constant 0 : index
    %51 = vector.load %arg7[%c0_21, %c0_22] : memref<32x128xbf16, #tpu.memory_space<vmem>>, vector<32x128xbf16>
    %cst_23 = arith.constant dense<0.000000e+00> : vector<16x128xf32>
    %52 = tpu.matmul %50, %51, %cst_23 {dimension_numbers = #tpu.dot_dimension_numbers<[1], [0], [0], [1], [0, 0, 1, 1], [], []>} : vector<16x32xbf16>, vector<32x128xbf16>, vector<16x128xf32> -> vector<16x128xf32>
    %53 = tpu.concatenate %36, %52, %20 in 1 : vector<16x96xf32>, vector<16x128xf32>, vector<16x8xf32> -> vector<16x232xf32>
    %54 = arith.truncf %53 : vector<16x232xf32> to vector<16x232xbf16>
    %c0_24 = arith.constant 0 : index
    %c0_25 = arith.constant 0 : index
    %55 = vector.load %arg8[%c0_24, %c0_25] : memref<16x232xbf16, #tpu.memory_space<vmem>>, vector<16x232xbf16>
    tpu.vector_store %arg8[%c0_24, %c0_25], %54 {strides = array<i32>} : memref<16x232xbf16, #tpu.memory_space<vmem>>, vector<16x232xbf16>,
    return
  }
  func.func @transform_0(%arg0: i32) -> (i32, i32) {
    %c0_i32 = arith.constant 0 : i32
    %c0_i32_0 = arith.constant 0 : i32
    return %arg0, %c0_i32 : i32, i32
  }
  func.func @transform_1(%arg0: i32) -> (i32, i32) {
    %c0_i32 = arith.constant 0 : i32
    %c0_i32_0 = arith.constant 0 : i32
    %c0_i32_1 = arith.constant 0 : i32
    return %c0_i32, %c0_i32_0 : i32, i32
  }
  func.func @transform_2(%arg0: i32) -> (i32, i32) {
    %c0_i32 = arith.constant 0 : i32
    %c0_i32_0 = arith.constant 0 : i32
    %c0_i32_1 = arith.constant 0 : i32
    return %c0_i32, %c0_i32_0 : i32, i32
  }
  func.func @transform_3(%arg0: i32) -> (i32, i32) {
    %c0_i32 = arith.constant 0 : i32
    %c0_i32_0 = arith.constant 0 : i32
    %c0_i32_1 = arith.constant 0 : i32
    return %c0_i32, %c0_i32_0 : i32, i32
  }
  func.func @transform_4(%arg0: i32) -> (i32, i32) {
    %c0_i32 = arith.constant 0 : i32
    %c0_i32_0 = arith.constant 0 : i32
    %c0_i32_1 = arith.constant 0 : i32
    return %c0_i32, %c0_i32_0 : i32, i32
  }
  func.func @transform_5(%arg0: i32) -> (i32, i32) {
    %c0_i32 = arith.constant 0 : i32
    %c0_i32_0 = arith.constant 0 : i32
    %c0_i32_1 = arith.constant 0 : i32
    return %c0_i32, %c0_i32_0 : i32, i32
  }
  func.func @transform_6(%arg0: i32) -> (i32, i32) {
    %c0_i32 = arith.constant 0 : i32
    %c0_i32_0 = arith.constant 0 : i32
    %c0_i32_1 = arith.constant 0 : i32
    return %c0_i32, %c0_i32_0 : i32, i32
  }
  func.func @transform_7(%arg0: i32) -> (i32, i32) {
    %c0_i32 = arith.constant 0 : i32
    %c0_i32_0 = arith.constant 0 : i32
    return %arg0, %c0_i32 : i32, i32
  }
}

module attributes {stable_mosaic.version = 11 : i64} {
  func.func @_dense_mlp_kernel(%arg0: i32, %arg1: memref<16x64xbf16, #tpu.memory_space<vmem>>, %arg2: memref<1x64xf32, #tpu.memory_space<vmem>>, %arg3: memref<64x256xbf16, #tpu.memory_space<vmem>>, %arg4: memref<128x64xbf16, #tpu.memory_space<vmem>>, %arg5: memref<16x64xbf16, #tpu.memory_space<vmem>>) attributes {dimension_semantics = [#tpu.dimension_semantics<parallel>], iteration_bounds = array<i64: 1>, scalar_prefetch = 0 : i64, scratch_operands = 0 : i64, tpu.core_type = #tpu.core_type<tc>, window_params = [{transform_indices = @transform_0, window_bounds = array<i64: 16, 64>}, {pipeline_mode = #tpu.pipeline_mode<synchronous>, transform_indices = @transform_1, window_bounds = array<i64: 1, 64>}, {pipeline_mode = #tpu.pipeline_mode<synchronous>, transform_indices = @transform_2, window_bounds = array<i64: 64, 256>}, {pipeline_mode = #tpu.pipeline_mode<synchronous>, transform_indices = @transform_3, window_bounds = array<i64: 128, 64>}, {transform_indices = @transform_4, window_bounds = array<i64: 16, 64>}]} {
    %c0 = arith.constant 0 : index
    %c0_0 = arith.constant 0 : index
    %0 = vector.load %arg1[%c0, %c0_0] : memref<16x64xbf16, #tpu.memory_space<vmem>>, vector<16x64xbf16>
    %1 = arith.extf %0 : vector<16x64xbf16> to vector<16x64xf32>
    %c0_1 = arith.constant 0 : index
    %c0_2 = arith.constant 0 : index
    %2 = vector.load %arg2[%c0_1, %c0_2] : memref<1x64xf32, #tpu.memory_space<vmem>>, vector<1x64xf32>
    %3 = arith.mulf %1, %1 : vector<16x64xf32>
    %cst = arith.constant dense<0.000000e+00> : vector<16xf32>
    %4 = vector.multi_reduction <add>, %3, %cst [1] : vector<16x64xf32> to vector<16xf32>
    %5 = vector.shape_cast %4 : vector<16xf32> to vector<16x1xf32>
    %cst_3 = arith.constant 6.400000e+01 : f32
    %6 = vector.broadcast %cst_3 : f32 to vector<16x1xf32>
    %7 = arith.divf %5, %6 : vector<16x1xf32>
    %cst_4 = arith.constant 9.99999997E-7 : f32
    %8 = vector.broadcast %cst_4 : f32 to vector<16x1xf32>
    %9 = arith.addf %7, %8 : vector<16x1xf32>
    %10 = math.rsqrt %9 : vector<16x1xf32>
    %11 = vector.broadcast %10 : vector<16x1xf32> to vector<16x64xf32>
    %12 = arith.mulf %1, %11 : vector<16x64xf32>
    %13 = vector.broadcast %2 : vector<1x64xf32> to vector<16x64xf32>
    %14 = arith.mulf %12, %13 : vector<16x64xf32>
    %15 = arith.truncf %14 : vector<16x64xf32> to vector<16x64xbf16>
    %c0_5 = arith.constant 0 : index
    %c0_6 = arith.constant 0 : index
    %16 = vector.load %arg3[%c0_5, %c0_6] : memref<64x256xbf16, #tpu.memory_space<vmem>>, vector<64x256xbf16>
    %cst_7 = arith.constant dense<0.000000e+00> : vector<16x256xf32>
    %17 = tpu.matmul %15, %16, %cst_7 {dimension_numbers = #tpu.dot_dimension_numbers<[1], [0], [0], [1], [0, 0, 1, 1], [], []>} : vector<16x64xbf16>, vector<64x256xbf16>, vector<16x256xf32> -> vector<16x256xf32>
    %18 = vector.extract_strided_slice %17 {offsets = [0, 0], sizes = [16, 128], strides = [1, 1]} : vector<16x256xf32> to vector<16x128xf32>
    %19 = vector.extract_strided_slice %17 {offsets = [0, 128], sizes = [16, 128], strides = [1, 1]} : vector<16x256xf32> to vector<16x128xf32>
    %20 = arith.negf %18 : vector<16x128xf32>
    %21 = math.exp %20 : vector<16x128xf32>
    %cst_8 = arith.constant 1.000000e+00 : f32
    %22 = vector.broadcast %cst_8 : f32 to vector<16x128xf32>
    %23 = arith.addf %22, %21 : vector<16x128xf32>
    %24 = arith.divf %22, %23 : vector<16x128xf32>
    %25 = arith.mulf %18, %24 : vector<16x128xf32>
    %26 = arith.mulf %25, %19 : vector<16x128xf32>
    %27 = arith.truncf %26 : vector<16x128xf32> to vector<16x128xbf16>
    %c0_9 = arith.constant 0 : index
    %c0_10 = arith.constant 0 : index
    %28 = vector.load %arg4[%c0_9, %c0_10] : memref<128x64xbf16, #tpu.memory_space<vmem>>, vector<128x64xbf16>
    %cst_11 = arith.constant dense<0.000000e+00> : vector<16x64xf32>
    %29 = tpu.matmul %27, %28, %cst_11 {dimension_numbers = #tpu.dot_dimension_numbers<[1], [0], [0], [1], [0, 0, 1, 1], [], []>} : vector<16x128xbf16>, vector<128x64xbf16>, vector<16x64xf32> -> vector<16x64xf32>
    %30 = arith.addf %1, %29 : vector<16x64xf32>
    %31 = arith.truncf %30 : vector<16x64xf32> to vector<16x64xbf16>
    %c0_12 = arith.constant 0 : index
    %c0_13 = arith.constant 0 : index
    %32 = vector.load %arg5[%c0_12, %c0_13] : memref<16x64xbf16, #tpu.memory_space<vmem>>, vector<16x64xbf16>
    tpu.vector_store %arg5[%c0_12, %c0_13], %31 {strides = array<i32>} : memref<16x64xbf16, #tpu.memory_space<vmem>>, vector<16x64xbf16>,
    return
  }
  func.func @transform_0(%arg0: i32) -> (i32, i32) {
    %c0_i32 = arith.constant 0 : i32
    %c0_i32_0 = arith.constant 0 : i32
    return %arg0, %c0_i32 : i32, i32
  }
  func.func @transform_1(%arg0: i32) -> (i32, i32) {
    %c0_i32 = arith.constant 0 : i32
    %c0_i32_0 = arith.constant 0 : i32
    %c0_i32_1 = arith.constant 0 : i32
    return %c0_i32, %c0_i32_0 : i32, i32
  }
  func.func @transform_2(%arg0: i32) -> (i32, i32) {
    %c0_i32 = arith.constant 0 : i32
    %c0_i32_0 = arith.constant 0 : i32
    %c0_i32_1 = arith.constant 0 : i32
    return %c0_i32, %c0_i32_0 : i32, i32
  }
  func.func @transform_3(%arg0: i32) -> (i32, i32) {
    %c0_i32 = arith.constant 0 : i32
    %c0_i32_0 = arith.constant 0 : i32
    %c0_i32_1 = arith.constant 0 : i32
    return %c0_i32, %c0_i32_0 : i32, i32
  }
  func.func @transform_4(%arg0: i32) -> (i32, i32) {
    %c0_i32 = arith.constant 0 : i32
    %c0_i32_0 = arith.constant 0 : i32
    return %arg0, %c0_i32 : i32, i32
  }
}

module attributes {stable_mosaic.version = 11 : i64} {
  func.func @_mla_attn_kernel(%arg0: i32, %arg1: i32, %arg2: i32, %arg3: memref<1x8x64xbf16, #tpu.memory_space<vmem>>, %arg4: memref<1x4x8x24xbf16, #tpu.memory_space<vmem>>, %arg5: memref<1x4x8x16xbf16, #tpu.memory_space<vmem>>, %arg6: memref<1x4x8x16xbf16, #tpu.memory_space<vmem>>, %arg7: memref<1x8x8xbf16, #tpu.memory_space<vmem>>, %arg8: memref<1x8x8xf32, #tpu.memory_space<vmem>>, %arg9: memref<1x8x8xf32, #tpu.memory_space<vmem>>, %arg10: memref<1x8x8xf32, #tpu.memory_space<vmem>>, %arg11: memref<1x8x8xf32, #tpu.memory_space<vmem>>, %arg12: memref<1x1x8xf32, #tpu.memory_space<vmem>>, %arg13: memref<4x16x64xbf16, #tpu.memory_space<vmem>>, %arg14: memref<1x8x64xbf16, #tpu.memory_space<vmem>>, %arg15: memref<4x8x1xf32, #tpu.memory_space<vmem>>, %arg16: memref<4x8x1xf32, #tpu.memory_space<vmem>>, %arg17: memref<4x8x16xf32, #tpu.memory_space<vmem>>) attributes {dimension_semantics = [#tpu.dimension_semantics<parallel>, #tpu.dimension_semantics<parallel>, #tpu.dimension_semantics<arbitrary>], iteration_bounds = array<i64: 2, 1, 1>, scalar_prefetch = 0 : i64, scratch_operands = 3 : i64, tpu.core_type = #tpu.core_type<tc>, window_params = [{transform_indices = @transform_0, window_bounds = array<i64: 1, 8, 64>}, {transform_indices = @transform_1, window_bounds = array<i64: 1, 4, 8, 24>}, {transform_indices = @transform_2, window_bounds = array<i64: 1, 4, 8, 16>}, {transform_indices = @transform_3, window_bounds = array<i64: 1, 4, 8, 16>}, {transform_indices = @transform_4, window_bounds = array<i64: 1, 8, 8>}, {transform_indices = @transform_5, window_bounds = array<i64: 1, 8, 8>}, {transform_indices = @transform_6, window_bounds = array<i64: 1, 8, 8>}, {transform_indices = @transform_7, window_bounds = array<i64: 1, 8, 8>}, {transform_indices = @transform_8, window_bounds = array<i64: 1, 8, 8>}, {transform_indices = @transform_9, window_bounds = array<i64: 1, 1, 8>}, {pipeline_mode = #tpu.pipeline_mode<synchronous>, transform_indices = @transform_10, window_bounds = array<i64: 4, 16, 64>}, {transform_indices = @transform_11, window_bounds = array<i64: 1, 8, 64>}]} {
    %c0_i32 = arith.constant 0 : i32
    %0 = arith.cmpi eq, %arg2, %c0_i32 : i32
    %1 = arith.extui %0 : i1 to i32
    %c0_i32_0 = arith.constant 0 : i32
    %2 = arith.cmpi ne, %1, %c0_i32_0 : i32
    scf.if %2 {
      %cst_61 = arith.constant 0xFF800000 : f32
      %104 = vector.broadcast %cst_61 : f32 to vector<4x8x1xf32>
      %c0_62 = arith.constant 0 : index
      %c0_63 = arith.constant 0 : index
      %c0_64 = arith.constant 0 : index
      %105 = vector.load %arg15[%c0_62, %c0_63, %c0_64] : memref<4x8x1xf32, #tpu.memory_space<vmem>>, vector<4x8x1xf32>
      tpu.vector_store %arg15[%c0_62, %c0_63, %c0_64], %104 {strides = array<i32>} : memref<4x8x1xf32, #tpu.memory_space<vmem>>, vector<4x8x1xf32>,
      %cst_65 = arith.constant 0.000000e+00 : f32
      %106 = vector.broadcast %cst_65 : f32 to vector<4x8x1xf32>
      %c0_66 = arith.constant 0 : index
      %c0_67 = arith.constant 0 : index
      %c0_68 = arith.constant 0 : index
      %107 = vector.load %arg16[%c0_66, %c0_67, %c0_68] : memref<4x8x1xf32, #tpu.memory_space<vmem>>, vector<4x8x1xf32>
      tpu.vector_store %arg16[%c0_66, %c0_67, %c0_68], %106 {strides = array<i32>} : memref<4x8x1xf32, #tpu.memory_space<vmem>>, vector<4x8x1xf32>,
      %cst_69 = arith.constant 0.000000e+00 : f32
      %108 = vector.broadcast %cst_69 : f32 to vector<4x8x16xf32>
      %c0_70 = arith.constant 0 : index
      %c0_71 = arith.constant 0 : index
      %c0_72 = arith.constant 0 : index
      %109 = vector.load %arg17[%c0_70, %c0_71, %c0_72] : memref<4x8x16xf32, #tpu.memory_space<vmem>>, vector<4x8x16xf32>
      tpu.vector_store %arg17[%c0_70, %c0_71, %c0_72], %108 {strides = array<i32>} : memref<4x8x16xf32, #tpu.memory_space<vmem>>, vector<4x8x16xf32>,
    } else {
    }
    %c0 = arith.constant 0 : index
    %c0_1 = arith.constant 0 : index
    %c0_2 = arith.constant 0 : index
    %3 = vector.load %arg8[%c0, %c0_1, %c0_2] : memref<1x8x8xf32, #tpu.memory_space<vmem>>, vector<1x8x8xf32>
    %4 = vector.shape_cast %3 : vector<1x8x8xf32> to vector<8x8xf32>
    %c0_3 = arith.constant 0 : index
    %c0_4 = arith.constant 0 : index
    %c0_5 = arith.constant 0 : index
    %5 = vector.load %arg9[%c0_3, %c0_4, %c0_5] : memref<1x8x8xf32, #tpu.memory_space<vmem>>, vector<1x8x8xf32>
    %6 = vector.shape_cast %5 : vector<1x8x8xf32> to vector<8x8xf32>
    %c0_6 = arith.constant 0 : index
    %c0_7 = arith.constant 0 : index
    %c0_8 = arith.constant 0 : index
    %7 = vector.load %arg10[%c0_6, %c0_7, %c0_8] : memref<1x8x8xf32, #tpu.memory_space<vmem>>, vector<1x8x8xf32>
    %8 = vector.shape_cast %7 : vector<1x8x8xf32> to vector<8x8xf32>
    %c0_9 = arith.constant 0 : index
    %c0_10 = arith.constant 0 : index
    %c0_11 = arith.constant 0 : index
    %9 = vector.load %arg11[%c0_9, %c0_10, %c0_11] : memref<1x8x8xf32, #tpu.memory_space<vmem>>, vector<1x8x8xf32>
    %10 = vector.shape_cast %9 : vector<1x8x8xf32> to vector<8x8xf32>
    %c0_12 = arith.constant 0 : index
    %c0_13 = arith.constant 0 : index
    %c0_14 = arith.constant 0 : index
    %c0_15 = arith.constant 0 : index
    %11 = vector.load %arg4[%c0_12, %c0_13, %c0_14, %c0_15] : memref<1x4x8x24xbf16, #tpu.memory_space<vmem>>, vector<1x4x8x24xbf16>
    %12 = vector.shape_cast %11 : vector<1x4x8x24xbf16> to vector<4x8x24xbf16>
    %13 = arith.extf %12 : vector<4x8x24xbf16> to vector<4x8x24xf32>
    %14 = vector.extract_strided_slice %13 {offsets = [0, 0, 16], sizes = [4, 8, 8], strides = [1, 1, 1]} : vector<4x8x24xf32> to vector<4x8x8xf32>
    %15 = vector.shape_cast %4 : vector<8x8xf32> to vector<1x8x8xf32>
    %16 = vector.broadcast %15 : vector<1x8x8xf32> to vector<4x8x8xf32>
    %17 = arith.mulf %14, %16 : vector<4x8x8xf32>
    %18 = vector.extract_strided_slice %13 {offsets = [0, 0, 16], sizes = [4, 8, 8], strides = [1, 1, 1]} : vector<4x8x24xf32> to vector<4x8x8xf32>
    %19 = vector.extract_strided_slice %18 {offsets = [0, 0, 4], sizes = [4, 8, 4], strides = [1, 1, 1]} : vector<4x8x8xf32> to vector<4x8x4xf32>
    %cst = arith.constant 0.000000e+00 : f32
    %20 = vector.broadcast %cst : f32 to vector<4x8x4xf32>
    %21 = arith.subf %20, %19 : vector<4x8x4xf32>
    %22 = vector.extract_strided_slice %18 {offsets = [0, 0, 0], sizes = [4, 8, 4], strides = [1, 1, 1]} : vector<4x8x8xf32> to vector<4x8x4xf32>
    %23 = tpu.concatenate %21, %22 in 2 : vector<4x8x4xf32>, vector<4x8x4xf32> -> vector<4x8x8xf32>
    %24 = vector.shape_cast %6 : vector<8x8xf32> to vector<1x8x8xf32>
    %25 = vector.broadcast %24 : vector<1x8x8xf32> to vector<4x8x8xf32>
    %26 = arith.mulf %23, %25 : vector<4x8x8xf32>
    %27 = arith.addf %17, %26 : vector<4x8x8xf32>
    %28 = vector.extract_strided_slice %13 {offsets = [0, 0, 0], sizes = [4, 8, 16], strides = [1, 1, 1]} : vector<4x8x24xf32> to vector<4x8x16xf32>
    %29 = tpu.concatenate %28, %27 in 2 : vector<4x8x16xf32>, vector<4x8x8xf32> -> vector<4x8x24xf32>
    %30 = arith.truncf %29 : vector<4x8x24xf32> to vector<4x8x24xbf16>
    %c0_16 = arith.constant 0 : index
    %c0_17 = arith.constant 0 : index
    %c0_18 = arith.constant 0 : index
    %31 = vector.load %arg7[%c0_16, %c0_17, %c0_18] : memref<1x8x8xbf16, #tpu.memory_space<vmem>>, vector<1x8x8xbf16>
    %32 = vector.shape_cast %31 : vector<1x8x8xbf16> to vector<8x8xbf16>
    %33 = arith.extf %32 : vector<8x8xbf16> to vector<8x8xf32>
    %34 = arith.mulf %33, %8 : vector<8x8xf32>
    %35 = vector.extract_strided_slice %33 {offsets = [0, 4], sizes = [8, 4], strides = [1, 1]} : vector<8x8xf32> to vector<8x4xf32>
    %cst_19 = arith.constant 0.000000e+00 : f32
    %36 = vector.broadcast %cst_19 : f32 to vector<8x4xf32>
    %37 = arith.subf %36, %35 : vector<8x4xf32>
    %38 = vector.extract_strided_slice %33 {offsets = [0, 0], sizes = [8, 4], strides = [1, 1]} : vector<8x8xf32> to vector<8x4xf32>
    %39 = tpu.concatenate %37, %38 in 1 : vector<8x4xf32>, vector<8x4xf32> -> vector<8x8xf32>
    %40 = arith.mulf %39, %10 : vector<8x8xf32>
    %41 = arith.addf %34, %40 : vector<8x8xf32>
    %c0_20 = arith.constant 0 : index
    %c0_21 = arith.constant 0 : index
    %c0_22 = arith.constant 0 : index
    %c0_23 = arith.constant 0 : index
    %42 = vector.load %arg5[%c0_20, %c0_21, %c0_22, %c0_23] : memref<1x4x8x16xbf16, #tpu.memory_space<vmem>>, vector<1x4x8x16xbf16>
    %43 = vector.shape_cast %42 : vector<1x4x8x16xbf16> to vector<4x8x16xbf16>
    %44 = arith.extf %43 : vector<4x8x16xbf16> to vector<4x8x16xf32>
    %45 = vector.shape_cast %41 : vector<8x8xf32> to vector<1x8x8xf32>
    %46 = vector.shape_cast %45 : vector<1x8x8xf32> to vector<1x8x8xf32>
    %47 = vector.broadcast %46 : vector<1x8x8xf32> to vector<4x8x8xf32>
    %48 = tpu.concatenate %44, %47 in 2 : vector<4x8x16xf32>, vector<4x8x8xf32> -> vector<4x8x24xf32>
    %49 = arith.truncf %48 : vector<4x8x24xf32> to vector<4x8x24xbf16>
    "tpu.trace_start"() <{level = 10 : i32, message = "hqd,hkd->hqk"}> : () -> ()
    %cst_24 = arith.constant dense<0.000000e+00> : vector<4x8x8xf32>
    %50 = tpu.matmul %30, %49, %cst_24 {dimension_numbers = #tpu.dot_dimension_numbers<[2], [2], [1], [1], [0, 0, 0, 1, 1, 1], [0], [0]>} : vector<4x8x24xbf16>, vector<4x8x24xbf16>, vector<4x8x8xf32> -> vector<4x8x8xf32>
    "tpu.trace_stop"() : () -> ()
    %cst_25 = arith.constant 0.204124153 : f32
    %51 = vector.broadcast %cst_25 : f32 to vector<4x8x8xf32>
    %52 = arith.mulf %50, %51 : vector<4x8x8xf32>
    %c8_i32 = arith.constant 8 : i32
    %53 = arith.muli %arg1, %c8_i32 : i32
    %54 = tpu.iota {dimensions = array<i32: 0>} : vector<8x8xi32>
    %55 = vector.broadcast %53 : i32 to vector<8x8xi32>
    %56 = arith.addi %55, %54 : vector<8x8xi32>
    %c8_i32_26 = arith.constant 8 : i32
    %57 = arith.muli %arg2, %c8_i32_26 : i32
    %58 = tpu.iota {dimensions = array<i32: 1>} : vector<8x8xi32>
    %59 = vector.broadcast %57 : i32 to vector<8x8xi32>
    %60 = arith.addi %59, %58 : vector<8x8xi32>
    %c0_27 = arith.constant 0 : index
    %c0_28 = arith.constant 0 : index
    %c0_29 = arith.constant 0 : index
    %61 = vector.load %arg12[%c0_27, %c0_28, %c0_29] : memref<1x1x8xf32, #tpu.memory_space<vmem>>, vector<1x1x8xf32>
    %62 = vector.shape_cast %61 : vector<1x1x8xf32> to vector<1x8xf32>
    %cst_30 = arith.constant 1.000000e+00 : f32
    %63 = vector.broadcast %cst_30 : f32 to vector<1x8xf32>
    %64 = arith.subf %63, %62 : vector<1x8xf32>
    %cst_31 = arith.constant -1.000000e+09 : f32
    %65 = vector.broadcast %cst_31 : f32 to vector<1x8xf32>
    %66 = arith.mulf %64, %65 : vector<1x8xf32>
    %67 = arith.cmpi sle, %60, %56 : vector<8x8xi32>
    %cst_32 = arith.constant 0.000000e+00 : f32
    %cst_33 = arith.constant -1.000000e+09 : f32
    %68 = vector.broadcast %cst_32 : f32 to vector<8x8xf32>
    %69 = vector.broadcast %cst_33 : f32 to vector<8x8xf32>
    %70 = arith.select %67, %68, %69 : vector<8x8xi1>, vector<8x8xf32>
    %71 = vector.broadcast %66 : vector<1x8xf32> to vector<8x8xf32>
    %72 = arith.addf %70, %71 : vector<8x8xf32>
    %73 = vector.shape_cast %72 : vector<8x8xf32> to vector<1x8x8xf32>
    %74 = vector.broadcast %73 : vector<1x8x8xf32> to vector<4x8x8xf32>
    %75 = arith.addf %52, %74 : vector<4x8x8xf32>
    %c0_34 = arith.constant 0 : index
    %c0_35 = arith.constant 0 : index
    %c0_36 = arith.constant 0 : index
    %76 = vector.load %arg15[%c0_34, %c0_35, %c0_36] : memref<4x8x1xf32, #tpu.memory_space<vmem>>, vector<4x8x1xf32>
    %cst_37 = arith.constant dense<0xFF800000> : vector<4x8xf32>
    %77 = vector.multi_reduction <maximumf>, %75, %cst_37 [2] : vector<4x8x8xf32> to vector<4x8xf32>
    %78 = vector.shape_cast %77 : vector<4x8xf32> to vector<4x8x1xf32>
    %79 = arith.maximumf %76, %78 : vector<4x8x1xf32>
    %80 = arith.subf %76, %79 : vector<4x8x1xf32>
    %81 = math.exp %80 : vector<4x8x1xf32>
    %82 = vector.broadcast %79 : vector<4x8x1xf32> to vector<4x8x8xf32>
    %83 = arith.subf %75, %82 : vector<4x8x8xf32>
    %84 = math.exp %83 : vector<4x8x8xf32>
    %c0_38 = arith.constant 0 : index
    %c0_39 = arith.constant 0 : index
    %c0_40 = arith.constant 0 : index
    %85 = vector.load %arg16[%c0_38, %c0_39, %c0_40] : memref<4x8x1xf32, #tpu.memory_space<vmem>>, vector<4x8x1xf32>
    %86 = arith.mulf %81, %85 : vector<4x8x1xf32>
    %cst_41 = arith.constant dense<0.000000e+00> : vector<4x8xf32>
    %87 = vector.multi_reduction <add>, %84, %cst_41 [2] : vector<4x8x8xf32> to vector<4x8xf32>
    %88 = vector.shape_cast %87 : vector<4x8xf32> to vector<4x8x1xf32>
    %89 = arith.addf %86, %88 : vector<4x8x1xf32>
    %c0_42 = arith.constant 0 : index
    %c0_43 = arith.constant 0 : index
    %c0_44 = arith.constant 0 : index
    %90 = vector.load %arg16[%c0_42, %c0_43, %c0_44] : memref<4x8x1xf32, #tpu.memory_space<vmem>>, vector<4x8x1xf32>
    tpu.vector_store %arg16[%c0_42, %c0_43, %c0_44], %89 {strides = array<i32>} : memref<4x8x1xf32, #tpu.memory_space<vmem>>, vector<4x8x1xf32>,
    %c0_45 = arith.constant 0 : index
    %c0_46 = arith.constant 0 : index
    %c0_47 = arith.constant 0 : index
    %91 = vector.load %arg17[%c0_45, %c0_46, %c0_47] : memref<4x8x16xf32, #tpu.memory_space<vmem>>, vector<4x8x16xf32>
    %92 = vector.broadcast %81 : vector<4x8x1xf32> to vector<4x8x16xf32>
    %93 = arith.mulf %92, %91 : vector<4x8x16xf32>
    %94 = arith.truncf %84 : vector<4x8x8xf32> to vector<4x8x8xbf16>
    %c0_48 = arith.constant 0 : index
    %c0_49 = arith.constant 0 : index
    %c0_50 = arith.constant 0 : index
    %c0_51 = arith.constant 0 : index
    %95 = vector.load %arg6[%c0_48, %c0_49, %c0_50, %c0_51] : memref<1x4x8x16xbf16, #tpu.memory_space<vmem>>, vector<1x4x8x16xbf16>
    %96 = vector.shape_cast %95 : vector<1x4x8x16xbf16> to vector<4x8x16xbf16>
    "tpu.trace_start"() <{level = 10 : i32, message = "hqk,hkd->hqd"}> : () -> ()
    %cst_52 = arith.constant dense<0.000000e+00> : vector<4x8x16xf32>
    %97 = tpu.matmul %94, %96, %cst_52 {dimension_numbers = #tpu.dot_dimension_numbers<[2], [1], [1], [2], [0, 0, 0, 1, 1, 2], [0], [0]>} : vector<4x8x8xbf16>, vector<4x8x16xbf16>, vector<4x8x16xf32> -> vector<4x8x16xf32>
    "tpu.trace_stop"() : () -> ()
    %98 = arith.addf %93, %97 : vector<4x8x16xf32>
    %c0_53 = arith.constant 0 : index
    %c0_54 = arith.constant 0 : index
    %c0_55 = arith.constant 0 : index
    %99 = vector.load %arg17[%c0_53, %c0_54, %c0_55] : memref<4x8x16xf32, #tpu.memory_space<vmem>>, vector<4x8x16xf32>
    tpu.vector_store %arg17[%c0_53, %c0_54, %c0_55], %98 {strides = array<i32>} : memref<4x8x16xf32, #tpu.memory_space<vmem>>, vector<4x8x16xf32>,
    %c0_56 = arith.constant 0 : index
    %c0_57 = arith.constant 0 : index
    %c0_58 = arith.constant 0 : index
    %100 = vector.load %arg15[%c0_56, %c0_57, %c0_58] : memref<4x8x1xf32, #tpu.memory_space<vmem>>, vector<4x8x1xf32>
    tpu.vector_store %arg15[%c0_56, %c0_57, %c0_58], %79 {strides = array<i32>} : memref<4x8x1xf32, #tpu.memory_space<vmem>>, vector<4x8x1xf32>,
    %c0_i32_59 = arith.constant 0 : i32
    %101 = arith.cmpi eq, %arg2, %c0_i32_59 : i32
    %102 = arith.extui %101 : i1 to i32
    %c0_i32_60 = arith.constant 0 : i32
    %103 = arith.cmpi ne, %102, %c0_i32_60 : i32
    scf.if %103 {
      %c0_61 = arith.constant 0 : index
      %c0_62 = arith.constant 0 : index
      %c0_63 = arith.constant 0 : index
      %104 = vector.load %arg17[%c0_61, %c0_62, %c0_63] : memref<4x8x16xf32, #tpu.memory_space<vmem>>, vector<4x8x16xf32>
      %c0_64 = arith.constant 0 : index
      %c0_65 = arith.constant 0 : index
      %c0_66 = arith.constant 0 : index
      %105 = vector.load %arg16[%c0_64, %c0_65, %c0_66] : memref<4x8x1xf32, #tpu.memory_space<vmem>>, vector<4x8x1xf32>
      %106 = tpu.reciprocal %105 {approx = true} : vector<4x8x1xf32> -> vector<4x8x1xf32>
      %107 = vector.broadcast %106 : vector<4x8x1xf32> to vector<4x8x16xf32>
      %108 = arith.mulf %104, %107 : vector<4x8x16xf32>
      %109 = arith.truncf %108 : vector<4x8x16xf32> to vector<4x8x16xbf16>
      %c0_67 = arith.constant 0 : index
      %c0_68 = arith.constant 0 : index
      %c0_69 = arith.constant 0 : index
      %110 = vector.load %arg13[%c0_67, %c0_68, %c0_69] : memref<4x16x64xbf16, #tpu.memory_space<vmem>>, vector<4x16x64xbf16>
      "tpu.trace_start"() <{level = 10 : i32, message = "hqd,hdo->hqo"}> : () -> ()
      %cst_70 = arith.constant dense<0.000000e+00> : vector<4x8x64xf32>
      %111 = tpu.matmul %109, %110, %cst_70 {dimension_numbers = #tpu.dot_dimension_numbers<[2], [1], [1], [2], [0, 0, 0, 1, 1, 2], [0], [0]>} : vector<4x8x16xbf16>, vector<4x16x64xbf16>, vector<4x8x64xf32> -> vector<4x8x64xf32>
      "tpu.trace_stop"() : () -> ()
      %cst_71 = arith.constant dense<0.000000e+00> : vector<8x64xf32>
      %112 = vector.multi_reduction <add>, %111, %cst_71 [0] : vector<4x8x64xf32> to vector<8x64xf32>
      %c0_72 = arith.constant 0 : index
      %c0_73 = arith.constant 0 : index
      %c0_74 = arith.constant 0 : index
      %113 = vector.load %arg3[%c0_72, %c0_73, %c0_74] : memref<1x8x64xbf16, #tpu.memory_space<vmem>>, vector<1x8x64xbf16>
      %114 = vector.shape_cast %113 : vector<1x8x64xbf16> to vector<8x64xbf16>
      %115 = arith.extf %114 : vector<8x64xbf16> to vector<8x64xf32>
      %116 = arith.addf %115, %112 : vector<8x64xf32>
      %117 = arith.truncf %116 : vector<8x64xf32> to vector<8x64xbf16>
      %c0_75 = arith.constant 0 : index
      %c0_76 = arith.constant 0 : index
      %c0_77 = arith.constant 0 : index
      %118 = vector.load %arg14[%c0_75, %c0_76, %c0_77] : memref<1x8x64xbf16, #tpu.memory_space<vmem>>, vector<1x8x64xbf16>
      %119 = vector.shape_cast %118 : vector<1x8x64xbf16> to vector<8x64xbf16>
      %120 = vector.shape_cast %117 : vector<8x64xbf16> to vector<1x8x64xbf16>
      tpu.vector_store %arg14[%c0_75, %c0_76, %c0_77], %120 {strides = array<i32>} : memref<1x8x64xbf16, #tpu.memory_space<vmem>>, vector<1x8x64xbf16>,
    } else {
    }
    return
  }
  func.func @transform_0(%arg0: i32, %arg1: i32, %arg2: i32) -> (i32, i32, i32) {
    %c0_i32 = arith.constant 0 : i32
    %c0_i32_0 = arith.constant 0 : i32
    return %arg0, %arg1, %c0_i32 : i32, i32, i32
  }
  func.func @transform_1(%arg0: i32, %arg1: i32, %arg2: i32) -> (i32, i32, i32, i32) {
    %c0_i32 = arith.constant 0 : i32
    %c0_i32_0 = arith.constant 0 : i32
    %c0_i32_1 = arith.constant 0 : i32
    return %arg0, %c0_i32, %arg1, %c0_i32_0 : i32, i32, i32, i32
  }
  func.func @transform_2(%arg0: i32, %arg1: i32, %arg2: i32) -> (i32, i32, i32, i32) {
    %c0_i32 = arith.constant 0 : i32
    %c0_i32_0 = arith.constant 0 : i32
    %c0_i32_1 = arith.constant 0 : i32
    return %arg0, %c0_i32, %arg2, %c0_i32_0 : i32, i32, i32, i32
  }
  func.func @transform_3(%arg0: i32, %arg1: i32, %arg2: i32) -> (i32, i32, i32, i32) {
    %c0_i32 = arith.constant 0 : i32
    %c0_i32_0 = arith.constant 0 : i32
    %c0_i32_1 = arith.constant 0 : i32
    return %arg0, %c0_i32, %arg2, %c0_i32_0 : i32, i32, i32, i32
  }
  func.func @transform_4(%arg0: i32, %arg1: i32, %arg2: i32) -> (i32, i32, i32) {
    %c0_i32 = arith.constant 0 : i32
    %c0_i32_0 = arith.constant 0 : i32
    return %arg0, %arg2, %c0_i32 : i32, i32, i32
  }
  func.func @transform_5(%arg0: i32, %arg1: i32, %arg2: i32) -> (i32, i32, i32) {
    %c0_i32 = arith.constant 0 : i32
    %c0_i32_0 = arith.constant 0 : i32
    return %arg0, %arg1, %c0_i32 : i32, i32, i32
  }
  func.func @transform_6(%arg0: i32, %arg1: i32, %arg2: i32) -> (i32, i32, i32) {
    %c0_i32 = arith.constant 0 : i32
    %c0_i32_0 = arith.constant 0 : i32
    return %arg0, %arg1, %c0_i32 : i32, i32, i32
  }
  func.func @transform_7(%arg0: i32, %arg1: i32, %arg2: i32) -> (i32, i32, i32) {
    %c0_i32 = arith.constant 0 : i32
    %c0_i32_0 = arith.constant 0 : i32
    return %arg0, %arg2, %c0_i32 : i32, i32, i32
  }
  func.func @transform_8(%arg0: i32, %arg1: i32, %arg2: i32) -> (i32, i32, i32) {
    %c0_i32 = arith.constant 0 : i32
    %c0_i32_0 = arith.constant 0 : i32
    return %arg0, %arg2, %c0_i32 : i32, i32, i32
  }
  func.func @transform_9(%arg0: i32, %arg1: i32, %arg2: i32) -> (i32, i32, i32) {
    %c0_i32 = arith.constant 0 : i32
    %c0_i32_0 = arith.constant 0 : i32
    return %arg0, %c0_i32, %arg2 : i32, i32, i32
  }
  func.func @transform_10(%arg0: i32, %arg1: i32, %arg2: i32) -> (i32, i32, i32) {
    %c0_i32 = arith.constant 0 : i32
    %c0_i32_0 = arith.constant 0 : i32
    %c0_i32_1 = arith.constant 0 : i32
    %c0_i32_2 = arith.constant 0 : i32
    return %c0_i32, %c0_i32_0, %c0_i32_1 : i32, i32, i32
  }
  func.func @transform_11(%arg0: i32, %arg1: i32, %arg2: i32) -> (i32, i32, i32) {
    %c0_i32 = arith.constant 0 : i32
    %c0_i32_0 = arith.constant 0 : i32
    return %arg0, %arg1, %c0_i32 : i32, i32, i32
  }
}

module attributes {stable_mosaic.version = 11 : i64} {
  func.func @_moe_mlp_kernel(%arg0: i32, %arg1: i32, %arg2: memref<16x64xbf16, #tpu.memory_space<vmem>>, %arg3: memref<1x64xf32, #tpu.memory_space<vmem>>, %arg4: memref<64x4xbf16, #tpu.memory_space<vmem>>, %arg5: memref<64x64xbf16, #tpu.memory_space<vmem>>, %arg6: memref<32x64xbf16, #tpu.memory_space<vmem>>, %arg7: memref<1x64x64xbf16, #tpu.memory_space<vmem>>, %arg8: memref<1x32x64xbf16, #tpu.memory_space<vmem>>, %arg9: memref<16x64xbf16, #tpu.memory_space<vmem>>, %arg10: memref<16x64xbf16, #tpu.memory_space<vmem>>, %arg11: memref<16x4xf32, #tpu.memory_space<vmem>>, %arg12: memref<16x64xf32, #tpu.memory_space<vmem>>) attributes {dimension_semantics = [#tpu.dimension_semantics<parallel>, #tpu.dimension_semantics<arbitrary>], iteration_bounds = array<i64: 1, 4>, scalar_prefetch = 0 : i64, scratch_operands = 3 : i64, tpu.core_type = #tpu.core_type<tc>, window_params = [{transform_indices = @transform_0, window_bounds = array<i64: 16, 64>}, {pipeline_mode = #tpu.pipeline_mode<synchronous>, transform_indices = @transform_1, window_bounds = array<i64: 1, 64>}, {pipeline_mode = #tpu.pipeline_mode<synchronous>, transform_indices = @transform_2, window_bounds = array<i64: 64, 4>}, {pipeline_mode = #tpu.pipeline_mode<synchronous>, transform_indices = @transform_3, window_bounds = array<i64: 64, 64>}, {pipeline_mode = #tpu.pipeline_mode<synchronous>, transform_indices = @transform_4, window_bounds = array<i64: 32, 64>}, {transform_indices = @transform_5, window_bounds = array<i64: 1, 64, 64>}, {transform_indices = @transform_6, window_bounds = array<i64: 1, 32, 64>}, {transform_indices = @transform_7, window_bounds = array<i64: 16, 64>}]} {
    %c0_i32 = arith.constant 0 : i32
    %0 = arith.cmpi eq, %arg1, %c0_i32 : i32
    %1 = arith.extui %0 : i1 to i32
    %c0_i32_0 = arith.constant 0 : i32
    %2 = arith.cmpi ne, %1, %c0_i32_0 : i32
    scf.if %2 {
      %c0_19 = arith.constant 0 : index
      %c0_20 = arith.constant 0 : index
      %36 = vector.load %arg2[%c0_19, %c0_20] : memref<16x64xbf16, #tpu.memory_space<vmem>>, vector<16x64xbf16>
      %37 = arith.extf %36 : vector<16x64xbf16> to vector<16x64xf32>
      %c0_21 = arith.constant 0 : index
      %c0_22 = arith.constant 0 : index
      %38 = vector.load %arg3[%c0_21, %c0_22] : memref<1x64xf32, #tpu.memory_space<vmem>>, vector<1x64xf32>
      %39 = arith.mulf %37, %37 : vector<16x64xf32>
      %cst_23 = arith.constant dense<0.000000e+00> : vector<16xf32>
      %40 = vector.multi_reduction <add>, %39, %cst_23 [1] : vector<16x64xf32> to vector<16xf32>
      %41 = vector.shape_cast %40 : vector<16xf32> to vector<16x1xf32>
      %cst_24 = arith.constant 6.400000e+01 : f32
      %42 = vector.broadcast %cst_24 : f32 to vector<16x1xf32>
      %43 = arith.divf %41, %42 : vector<16x1xf32>
      %cst_25 = arith.constant 9.99999997E-7 : f32
      %44 = vector.broadcast %cst_25 : f32 to vector<16x1xf32>
      %45 = arith.addf %43, %44 : vector<16x1xf32>
      %46 = math.rsqrt %45 : vector<16x1xf32>
      %47 = vector.broadcast %46 : vector<16x1xf32> to vector<16x64xf32>
      %48 = arith.mulf %37, %47 : vector<16x64xf32>
      %49 = vector.broadcast %38 : vector<1x64xf32> to vector<16x64xf32>
      %50 = arith.mulf %48, %49 : vector<16x64xf32>
      %51 = arith.truncf %50 : vector<16x64xf32> to vector<16x64xbf16>
      %c0_26 = arith.constant 0 : index
      %c0_27 = arith.constant 0 : index
      %52 = vector.load %arg10[%c0_26, %c0_27] : memref<16x64xbf16, #tpu.memory_space<vmem>>, vector<16x64xbf16>
      tpu.vector_store %arg10[%c0_26, %c0_27], %51 {strides = array<i32>} : memref<16x64xbf16, #tpu.memory_space<vmem>>, vector<16x64xbf16>,
      %c0_28 = arith.constant 0 : index
      %c0_29 = arith.constant 0 : index
      %53 = vector.load %arg4[%c0_28, %c0_29] : memref<64x4xbf16, #tpu.memory_space<vmem>>, vector<64x4xbf16>
      %cst_30 = arith.constant dense<0.000000e+00> : vector<16x4xf32>
      %54 = tpu.matmul %51, %53, %cst_30 {dimension_numbers = #tpu.dot_dimension_numbers<[1], [0], [0], [1], [0, 0, 1, 1], [], []>} : vector<16x64xbf16>, vector<64x4xbf16>, vector<16x4xf32> -> vector<16x4xf32>
      %cst_31 = arith.constant dense<0xFF800000> : vector<16xf32>
      %55 = vector.multi_reduction <maximumf>, %54, %cst_31 [1] : vector<16x4xf32> to vector<16xf32>
      %cst_32 = arith.constant 0xFF800000 : f32
      %56 = vector.broadcast %cst_32 : f32 to vector<16xf32>
      %57 = arith.maximumf %56, %55 : vector<16xf32>
      %58 = vector.shape_cast %57 : vector<16xf32> to vector<16x1xf32>
      %59 = vector.broadcast %58 : vector<16x1xf32> to vector<16x4xf32>
      %60 = arith.subf %54, %59 : vector<16x4xf32>
      %61 = math.exp %60 : vector<16x4xf32>
      %cst_33 = arith.constant dense<0.000000e+00> : vector<16xf32>
      %62 = vector.multi_reduction <add>, %61, %cst_33 [1] : vector<16x4xf32> to vector<16xf32>
      %63 = vector.shape_cast %62 : vector<16xf32> to vector<16x1xf32>
      %64 = vector.broadcast %63 : vector<16x1xf32> to vector<16x4xf32>
      %65 = arith.divf %61, %64 : vector<16x4xf32>
      %66 = tpu.iota {dimensions = array<i32: 1>} : vector<16x4xi32>
      %cst_34 = arith.constant 0.000000e+00 : f32
      %67 = vector.broadcast %cst_34 : f32 to vector<16x4xf32>
      %cst_35 = arith.constant dense<0xFF800000> : vector<16xf32>
      %68 = vector.multi_reduction <maximumf>, %65, %cst_35 [1] : vector<16x4xf32> to vector<16xf32>
      %69 = vector.shape_cast %68 : vector<16xf32> to vector<16x1xf32>
      %70 = vector.broadcast %69 : vector<16x1xf32> to vector<16x4xf32>
      %71 = arith.cmpf oge, %65, %70 : vector<16x4xf32>
      %c4_i32 = arith.constant 4 : i32
      %72 = vector.broadcast %c4_i32 : i32 to vector<16x4xi32>
      %73 = arith.select %71, %66, %72 : vector<16x4xi1>, vector<16x4xi32>
      %cst_36 = arith.constant dense<2147483647> : vector<16xi32>
      %74 = vector.multi_reduction <minsi>, %73, %cst_36 [1] : vector<16x4xi32> to vector<16xi32>
      %75 = vector.shape_cast %74 : vector<16xi32> to vector<16x1xi32>
      %76 = vector.broadcast %75 : vector<16x1xi32> to vector<16x4xi32>
      %77 = arith.cmpi eq, %66, %76 : vector<16x4xi32>
      %cst_37 = arith.constant 0.000000e+00 : f32
      %78 = vector.broadcast %cst_37 : f32 to vector<16x4xf32>
      %79 = arith.select %77, %65, %78 : vector<16x4xi1>, vector<16x4xf32>
      %80 = arith.addf %67, %79 : vector<16x4xf32>
      %cst_38 = arith.constant -1.000000e+30 : f32
      %81 = vector.broadcast %cst_38 : f32 to vector<16x4xf32>
      %82 = arith.select %77, %81, %65 : vector<16x4xi1>, vector<16x4xf32>
      %cst_39 = arith.constant dense<0xFF800000> : vector<16xf32>
      %83 = vector.multi_reduction <maximumf>, %82, %cst_39 [1] : vector<16x4xf32> to vector<16xf32>
      %84 = vector.shape_cast %83 : vector<16xf32> to vector<16x1xf32>
      %85 = vector.broadcast %84 : vector<16x1xf32> to vector<16x4xf32>
      %86 = arith.cmpf oge, %82, %85 : vector<16x4xf32>
      %c4_i32_40 = arith.constant 4 : i32
      %87 = vector.broadcast %c4_i32_40 : i32 to vector<16x4xi32>
      %88 = arith.select %86, %66, %87 : vector<16x4xi1>, vector<16x4xi32>
      %cst_41 = arith.constant dense<2147483647> : vector<16xi32>
      %89 = vector.multi_reduction <minsi>, %88, %cst_41 [1] : vector<16x4xi32> to vector<16xi32>
      %90 = vector.shape_cast %89 : vector<16xi32> to vector<16x1xi32>
      %91 = vector.broadcast %90 : vector<16x1xi32> to vector<16x4xi32>
      %92 = arith.cmpi eq, %66, %91 : vector<16x4xi32>
      %cst_42 = arith.constant 0.000000e+00 : f32
      %93 = vector.broadcast %cst_42 : f32 to vector<16x4xf32>
      %94 = arith.select %92, %65, %93 : vector<16x4xi1>, vector<16x4xf32>
      %95 = arith.addf %80, %94 : vector<16x4xf32>
      %cst_43 = arith.constant 1.000000e+00 : f32
      %96 = vector.broadcast %cst_43 : f32 to vector<16x4xf32>
      %97 = arith.mulf %95, %96 : vector<16x4xf32>
      %c0_44 = arith.constant 0 : index
      %c0_45 = arith.constant 0 : index
      %98 = vector.load %arg11[%c0_44, %c0_45] : memref<16x4xf32, #tpu.memory_space<vmem>>, vector<16x4xf32>
      tpu.vector_store %arg11[%c0_44, %c0_45], %97 {strides = array<i32>} : memref<16x4xf32, #tpu.memory_space<vmem>>, vector<16x4xf32>,
      %c0_46 = arith.constant 0 : index
      %c0_47 = arith.constant 0 : index
      %99 = vector.load %arg5[%c0_46, %c0_47] : memref<64x64xbf16, #tpu.memory_space<vmem>>, vector<64x64xbf16>
      %cst_48 = arith.constant dense<0.000000e+00> : vector<16x64xf32>
      %100 = tpu.matmul %51, %99, %cst_48 {dimension_numbers = #tpu.dot_dimension_numbers<[1], [0], [0], [1], [0, 0, 1, 1], [], []>} : vector<16x64xbf16>, vector<64x64xbf16>, vector<16x64xf32> -> vector<16x64xf32>
      %101 = vector.extract_strided_slice %100 {offsets = [0, 0], sizes = [16, 32], strides = [1, 1]} : vector<16x64xf32> to vector<16x32xf32>
      %102 = vector.extract_strided_slice %100 {offsets = [0, 32], sizes = [16, 32], strides = [1, 1]} : vector<16x64xf32> to vector<16x32xf32>
      %103 = arith.negf %101 : vector<16x32xf32>
      %104 = math.exp %103 : vector<16x32xf32>
      %cst_49 = arith.constant 1.000000e+00 : f32
      %105 = vector.broadcast %cst_49 : f32 to vector<16x32xf32>
      %106 = arith.addf %105, %104 : vector<16x32xf32>
      %107 = arith.divf %105, %106 : vector<16x32xf32>
      %108 = arith.mulf %101, %107 : vector<16x32xf32>
      %109 = arith.mulf %108, %102 : vector<16x32xf32>
      %110 = arith.truncf %109 : vector<16x32xf32> to vector<16x32xbf16>
      %c0_50 = arith.constant 0 : index
      %c0_51 = arith.constant 0 : index
      %111 = vector.load %arg6[%c0_50, %c0_51] : memref<32x64xbf16, #tpu.memory_space<vmem>>, vector<32x64xbf16>
      %cst_52 = arith.constant dense<0.000000e+00> : vector<16x64xf32>
      %112 = tpu.matmul %110, %111, %cst_52 {dimension_numbers = #tpu.dot_dimension_numbers<[1], [0], [0], [1], [0, 0, 1, 1], [], []>} : vector<16x32xbf16>, vector<32x64xbf16>, vector<16x64xf32> -> vector<16x64xf32>
      %113 = arith.addf %37, %112 : vector<16x64xf32>
      %c0_53 = arith.constant 0 : index
      %c0_54 = arith.constant 0 : index
      %114 = vector.load %arg12[%c0_53, %c0_54] : memref<16x64xf32, #tpu.memory_space<vmem>>, vector<16x64xf32>
      tpu.vector_store %arg12[%c0_53, %c0_54], %113 {strides = array<i32>} : memref<16x64xf32, #tpu.memory_space<vmem>>, vector<16x64xf32>,
    } else {
    }
    %c0 = arith.constant 0 : index
    %c0_1 = arith.constant 0 : index
    %3 = vector.load %arg10[%c0, %c0_1] : memref<16x64xbf16, #tpu.memory_space<vmem>>, vector<16x64xbf16>
    %c0_2 = arith.constant 0 : index
    %c0_3 = arith.constant 0 : index
    %c0_4 = arith.constant 0 : index
    %4 = vector.load %arg7[%c0_2, %c0_3, %c0_4] : memref<1x64x64xbf16, #tpu.memory_space<vmem>>, vector<1x64x64xbf16>
    %5 = vector.shape_cast %4 : vector<1x64x64xbf16> to vector<64x64xbf16>
    %cst = arith.constant dense<0.000000e+00> : vector<16x64xf32>
    %6 = tpu.matmul %3, %5, %cst {dimension_numbers = #tpu.dot_dimension_numbers<[1], [0], [0], [1], [0, 0, 1, 1], [], []>} : vector<16x64xbf16>, vector<64x64xbf16>, vector<16x64xf32> -> vector<16x64xf32>
    %7 = vector.extract_strided_slice %6 {offsets = [0, 0], sizes = [16, 32], strides = [1, 1]} : vector<16x64xf32> to vector<16x32xf32>
    %8 = vector.extract_strided_slice %6 {offsets = [0, 32], sizes = [16, 32], strides = [1, 1]} : vector<16x64xf32> to vector<16x32xf32>
    %9 = arith.negf %7 : vector<16x32xf32>
    %10 = math.exp %9 : vector<16x32xf32>
    %cst_5 = arith.constant 1.000000e+00 : f32
    %11 = vector.broadcast %cst_5 : f32 to vector<16x32xf32>
    %12 = arith.addf %11, %10 : vector<16x32xf32>
    %13 = arith.divf %11, %12 : vector<16x32xf32>
    %14 = arith.mulf %7, %13 : vector<16x32xf32>
    %15 = arith.mulf %14, %8 : vector<16x32xf32>
    %16 = arith.truncf %15 : vector<16x32xf32> to vector<16x32xbf16>
    %c0_6 = arith.constant 0 : index
    %c0_7 = arith.constant 0 : index
    %c0_8 = arith.constant 0 : index
    %17 = vector.load %arg8[%c0_6, %c0_7, %c0_8] : memref<1x32x64xbf16, #tpu.memory_space<vmem>>, vector<1x32x64xbf16>
    %18 = vector.shape_cast %17 : vector<1x32x64xbf16> to vector<32x64xbf16>
    %cst_9 = arith.constant dense<0.000000e+00> : vector<16x64xf32>
    %19 = tpu.matmul %16, %18, %cst_9 {dimension_numbers = #tpu.dot_dimension_numbers<[1], [0], [0], [1], [0, 0, 1, 1], [], []>} : vector<16x32xbf16>, vector<32x64xbf16>, vector<16x64xf32> -> vector<16x64xf32>
    %20 = tpu.iota {dimensions = array<i32: 1>} : vector<16x4xi32>
    %21 = vector.broadcast %arg1 : i32 to vector<16x4xi32>
    %22 = arith.cmpi eq, %20, %21 : vector<16x4xi32>
    %c0_10 = arith.constant 0 : index
    %c0_11 = arith.constant 0 : index
    %23 = vector.load %arg11[%c0_10, %c0_11] : memref<16x4xf32, #tpu.memory_space<vmem>>, vector<16x4xf32>
    %cst_12 = arith.constant 0.000000e+00 : f32
    %24 = vector.broadcast %cst_12 : f32 to vector<16x4xf32>
    %25 = arith.select %22, %23, %24 : vector<16x4xi1>, vector<16x4xf32>
    %cst_13 = arith.constant dense<0.000000e+00> : vector<16xf32>
    %26 = vector.multi_reduction <add>, %25, %cst_13 [1] : vector<16x4xf32> to vector<16xf32>
    %27 = vector.shape_cast %26 : vector<16xf32> to vector<16x1xf32>
    %c0_14 = arith.constant 0 : index
    %c0_15 = arith.constant 0 : index
    %28 = vector.load %arg12[%c0_14, %c0_15] : memref<16x64xf32, #tpu.memory_space<vmem>>, vector<16x64xf32>
    %29 = vector.broadcast %27 : vector<16x1xf32> to vector<16x64xf32>
    %30 = arith.mulf %29, %19 : vector<16x64xf32>
    %31 = arith.addf %28, %30 : vector<16x64xf32>
    %c0_16 = arith.constant 0 : index
    %c0_17 = arith.constant 0 : index
    %32 = vector.load %arg12[%c0_16, %c0_17] : memref<16x64xf32, #tpu.memory_space<vmem>>, vector<16x64xf32>
    tpu.vector_store %arg12[%c0_16, %c0_17], %31 {strides = array<i32>} : memref<16x64xf32, #tpu.memory_space<vmem>>, vector<16x64xf32>,
    %c3_i32 = arith.constant 3 : i32
    %33 = arith.cmpi eq, %arg1, %c3_i32 : i32
    %34 = arith.extui %33 : i1 to i32
    %c0_i32_18 = arith.constant 0 : i32
    %35 = arith.cmpi ne, %34, %c0_i32_18 : i32
    scf.if %35 {
      %c0_19 = arith.constant 0 : index
      %c0_20 = arith.constant 0 : index
      %36 = vector.load %arg12[%c0_19, %c0_20] : memref<16x64xf32, #tpu.memory_space<vmem>>, vector<16x64xf32>
      %37 = arith.truncf %36 : vector<16x64xf32> to vector<16x64xbf16>
      %c0_21 = arith.constant 0 : index
      %c0_22 = arith.constant 0 : index
      %38 = vector.load %arg9[%c0_21, %c0_22] : memref<16x64xbf16, #tpu.memory_space<vmem>>, vector<16x64xbf16>
      tpu.vector_store %arg9[%c0_21, %c0_22], %37 {strides = array<i32>} : memref<16x64xbf16, #tpu.memory_space<vmem>>, vector<16x64xbf16>,
    } else {
    }
    return
  }
  func.func @transform_0(%arg0: i32, %arg1: i32) -> (i32, i32) {
    %c0_i32 = arith.constant 0 : i32
    %c0_i32_0 = arith.constant 0 : i32
    return %arg0, %c0_i32 : i32, i32
  }
  func.func @transform_1(%arg0: i32, %arg1: i32) -> (i32, i32) {
    %c0_i32 = arith.constant 0 : i32
    %c0_i32_0 = arith.constant 0 : i32
    %c0_i32_1 = arith.constant 0 : i32
    return %c0_i32, %c0_i32_0 : i32, i32
  }
  func.func @transform_2(%arg0: i32, %arg1: i32) -> (i32, i32) {
    %c0_i32 = arith.constant 0 : i32
    %c0_i32_0 = arith.constant 0 : i32
    %c0_i32_1 = arith.constant 0 : i32
    return %c0_i32, %c0_i32_0 : i32, i32
  }
  func.func @transform_3(%arg0: i32, %arg1: i32) -> (i32, i32) {
    %c0_i32 = arith.constant 0 : i32
    %c0_i32_0 = arith.constant 0 : i32
    %c0_i32_1 = arith.constant 0 : i32
    return %c0_i32, %c0_i32_0 : i32, i32
  }
  func.func @transform_4(%arg0: i32, %arg1: i32) -> (i32, i32) {
    %c0_i32 = arith.constant 0 : i32
    %c0_i32_0 = arith.constant 0 : i32
    %c0_i32_1 = arith.constant 0 : i32
    return %c0_i32, %c0_i32_0 : i32, i32
  }
  func.func @transform_5(%arg0: i32, %arg1: i32) -> (i32, i32, i32) {
    %c0_i32 = arith.constant 0 : i32
    %c0_i32_0 = arith.constant 0 : i32
    %c0_i32_1 = arith.constant 0 : i32
    return %arg1, %c0_i32, %c0_i32_0 : i32, i32, i32
  }
  func.func @transform_6(%arg0: i32, %arg1: i32) -> (i32, i32, i32) {
    %c0_i32 = arith.constant 0 : i32
    %c0_i32_0 = arith.constant 0 : i32
    %c0_i32_1 = arith.constant 0 : i32
    return %arg1, %c0_i32, %c0_i32_0 : i32, i32, i32
  }
  func.func @transform_7(%arg0: i32, %arg1: i32) -> (i32, i32) {
    %c0_i32 = arith.constant 0 : i32
    %c0_i32_0 = arith.constant 0 : i32
    return %arg0, %c0_i32 : i32, i32
  }
}

module attributes {stable_mosaic.version = 11 : i64} {
  func.func @_rmsnorm_matmul_kernel(%arg0: i32, %arg1: i32, %arg2: memref<16x64xbf16, #tpu.memory_space<vmem>>, %arg3: memref<1x64xf32, #tpu.memory_space<vmem>>, %arg4: memref<64x128xbf16, #tpu.memory_space<vmem>>, %arg5: memref<16x128xf32, #tpu.memory_space<vmem>>) attributes {dimension_semantics = [#tpu.dimension_semantics<parallel>, #tpu.dimension_semantics<parallel>], iteration_bounds = array<i64: 1, 1>, scalar_prefetch = 0 : i64, scratch_operands = 0 : i64, tpu.core_type = #tpu.core_type<tc>, window_params = [{transform_indices = @transform_0, window_bounds = array<i64: 16, 64>}, {pipeline_mode = #tpu.pipeline_mode<synchronous>, transform_indices = @transform_1, window_bounds = array<i64: 1, 64>}, {transform_indices = @transform_2, window_bounds = array<i64: 64, 128>}, {transform_indices = @transform_3, window_bounds = array<i64: 16, 128>}]} {
    %c0 = arith.constant 0 : index
    %c0_0 = arith.constant 0 : index
    %0 = vector.load %arg2[%c0, %c0_0] : memref<16x64xbf16, #tpu.memory_space<vmem>>, vector<16x64xbf16>
    %1 = arith.extf %0 : vector<16x64xbf16> to vector<16x64xf32>
    %c0_1 = arith.constant 0 : index
    %c0_2 = arith.constant 0 : index
    %2 = vector.load %arg3[%c0_1, %c0_2] : memref<1x64xf32, #tpu.memory_space<vmem>>, vector<1x64xf32>
    %3 = arith.mulf %1, %1 : vector<16x64xf32>
    %cst = arith.constant dense<0.000000e+00> : vector<16xf32>
    %4 = vector.multi_reduction <add>, %3, %cst [1] : vector<16x64xf32> to vector<16xf32>
    %5 = vector.shape_cast %4 : vector<16xf32> to vector<16x1xf32>
    %cst_3 = arith.constant 6.400000e+01 : f32
    %6 = vector.broadcast %cst_3 : f32 to vector<16x1xf32>
    %7 = arith.divf %5, %6 : vector<16x1xf32>
    %cst_4 = arith.constant 9.99999997E-7 : f32
    %8 = vector.broadcast %cst_4 : f32 to vector<16x1xf32>
    %9 = arith.addf %7, %8 : vector<16x1xf32>
    %10 = math.rsqrt %9 : vector<16x1xf32>
    %11 = vector.broadcast %10 : vector<16x1xf32> to vector<16x64xf32>
    %12 = arith.mulf %1, %11 : vector<16x64xf32>
    %13 = vector.broadcast %2 : vector<1x64xf32> to vector<16x64xf32>
    %14 = arith.mulf %12, %13 : vector<16x64xf32>
    %15 = arith.truncf %14 : vector<16x64xf32> to vector<16x64xbf16>
    %c0_5 = arith.constant 0 : index
    %c0_6 = arith.constant 0 : index
    %16 = vector.load %arg4[%c0_5, %c0_6] : memref<64x128xbf16, #tpu.memory_space<vmem>>, vector<64x128xbf16>
    %cst_7 = arith.constant dense<0.000000e+00> : vector<16x128xf32>
    %17 = tpu.matmul %15, %16, %cst_7 {dimension_numbers = #tpu.dot_dimension_numbers<[1], [0], [0], [1], [0, 0, 1, 1], [], []>} : vector<16x64xbf16>, vector<64x128xbf16>, vector<16x128xf32> -> vector<16x128xf32>
    %c0_8 = arith.constant 0 : index
    %c0_9 = arith.constant 0 : index
    %18 = vector.load %arg5[%c0_8, %c0_9] : memref<16x128xf32, #tpu.memory_space<vmem>>, vector<16x128xf32>
    tpu.vector_store %arg5[%c0_8, %c0_9], %17 {strides = array<i32>} : memref<16x128xf32, #tpu.memory_space<vmem>>, vector<16x128xf32>,
    return
  }
  func.func @transform_0(%arg0: i32, %arg1: i32) -> (i32, i32) {
    %c0_i32 = arith.constant 0 : i32
    %c0_i32_0 = arith.constant 0 : i32
    return %arg0, %c0_i32 : i32, i32
  }
  func.func @transform_1(%arg0: i32, %arg1: i32) -> (i32, i32) {
    %c0_i32 = arith.constant 0 : i32
    %c0_i32_0 = arith.constant 0 : i32
    %c0_i32_1 = arith.constant 0 : i32
    return %c0_i32, %c0_i32_0 : i32, i32
  }
  func.func @transform_2(%arg0: i32, %arg1: i32) -> (i32, i32) {
    %c0_i32 = arith.constant 0 : i32
    %c0_i32_0 = arith.constant 0 : i32
    return %c0_i32, %arg1 : i32, i32
  }
  func.func @transform_3(%arg0: i32, %arg1: i32) -> (i32, i32) {
    %c0_i32 = arith.constant 0 : i32
    return %arg0, %arg1 : i32, i32
  }
}

</mosaic_0001>

<llo_original>
// kernel: model_forward.7
$region0: #{model_forward.7}
  #allocation0 [shape = 'u32[]', space=smem, size = 0x4, offset = 0x4, fixed_abs, tag = 'smem constant byte address 0x4 - core index']
  #allocation1 [shape = 'u32[144,128]{1,0:T(1,128)}', space=vmem, size = 0x12000, scoped, tag = 'internal scratch']
  %s0 = inlined_call_operand.vmem [shape: bf16[16,64], index: 0, kind: input, shape index: {}]
  %s1 = inlined_call_operand.vmem [shape: f32[1,64], index: 1, kind: input, shape index: {}]
  %s2 = inlined_call_operand.vmem [shape: bf16[64,72], index: 2, kind: input, shape index: {}]
  %s3 = inlined_call_operand.vmem [shape: f32[1,32], index: 3, kind: input, shape index: {}]
  %s4 = inlined_call_operand.vmem [shape: f32[1,32], index: 4, kind: input, shape index: {}]
  %s5 = inlined_call_operand.vmem [shape: bf16[32,96], index: 5, kind: input, shape index: {}]
  %s6 = inlined_call_operand.vmem [shape: bf16[32,128], index: 6, kind: input, shape index: {}]
  %s7 = inlined_call_operand.vmem [shape: bf16[16,232], index: 7, kind: output, shape index: {}]
  %s8 = sld [smem:[#allocation0]]
  $region38: #{model_forward.7} parent=0
    _
  %s10 = ssub.s32 1, %s8
  %s11 = scalar_select 0, %s10, %s8
  // Predicated region
  $region2: #{model_forward.7} parent=0 // pred_check
    _
  $region3: #{model_forward.7} parent=0 // pred_check_branch
    %13 = sbr.rel (0) target = $region5
  $region4: #{model_forward.7} parent=0 // pred_region
    _
  $region5: #{model_forward.7} parent=0 // pred_fallthru
    _
  // Predicated region
  $region6: #{model_forward.7} parent=0 // pred_check
    _
  $region7: #{model_forward.7} parent=0 // pred_check_branch
    %15 = sbr.rel (0) target = $region9
  $region8: #{model_forward.7} parent=0 // pred_region
    _
  $region9: #{model_forward.7} parent=0 // pred_fallthru
    _
  // Predicated region
  $region10: #{model_forward.7} parent=0 // pred_check
    _
  $region11: #{model_forward.7} parent=0 // pred_check_branch
    %17 = sbr.rel (0) target = $region13
  $region12: #{model_forward.7} parent=0 // pred_region
    _
  $region13: #{model_forward.7} parent=0 // pred_fallthru
    _
  // Predicated region
  $region14: #{model_forward.7} parent=0 // pred_check
    _
  $region15: #{model_forward.7} parent=0 // pred_check_branch
    %19 = sbr.rel (0) target = $region17
  $region16: #{model_forward.7} parent=0 // pred_region
    _
  $region17: #{model_forward.7} parent=0 // pred_fallthru
    _
  // Predicated region
  $region18: #{model_forward.7} parent=0 // pred_check
    _
  $region19: #{model_forward.7} parent=0 // pred_check_branch
    %21 = sbr.rel (0) target = $region21
  $region20: #{model_forward.7} parent=0 // pred_region
    _
  $region21: #{model_forward.7} parent=0 // pred_fallthru
    _
  // Predicated region
  $region22: #{model_forward.7} parent=0 // pred_check
    _
  $region23: #{model_forward.7} parent=0 // pred_check_branch
    %23 = sbr.rel (0) target = $region25
  $region24: #{model_forward.7} parent=0 // pred_region
    _
  $region25: #{model_forward.7} parent=0 // pred_fallthru
    _
  // Predicated region
  $region26: #{model_forward.7} parent=0 // pred_check
    _
  $region27: #{model_forward.7} parent=0 // pred_check_branch
    %25 = sbr.rel (0) target = $region29
  $region28: #{model_forward.7} parent=0 // pred_region
    _
  $region29: #{model_forward.7} parent=0 // pred_fallthru
    _
  %v27 = vld [vmem:[%s0] sm:$0xf]
  %v28 = vld [vmem:[%s0 + $0x4] sm:$0xf]
  %v29 = vunpack.c.l.bf16 %v27
  %v30 = vunpack.c.l.bf16 %v28
  %v31 = vld [vmem:[%s1] sm:$0x1]
  %v32 = vmul.f32 %v29, %v29
  %v33 = vmul.f32 %v30, %v30
  %vm34 = vcmask 523264
  %v35 = vsel %vm34, %v32, 0.0
  %36 = vadd.xlane.f32.xlu0 %v35
  %v37 = vpop.xlane.xlu0 %36
  %v38 = vsel %vm34, %v33, 0.0
  %39 = vadd.xlane.f32.xlu0 %v38
  %v40 = vpop.xlane.xlu0 %39
  %v41 = vrcp.pop 64.0
  %v42 = vmul.f32 %v37, %v41
  %v43 = vmul.f32 %v40, %v41
  %v44 = vadd.f32 %v42, 1e-06
  %v45 = vadd.f32 %v43, 1e-06
  %v46 = vrsqrt.pop %v44
  %v47 = vrsqrt.pop %v45
  %v48 = vmul.f32 %v29, %v46
  %v49 = vmul.f32 %v30, %v47
  %v51 = vlaneseq
  %v52 = vshrl.u32 %v51, 7
  %v53 = vsub.s32 0, %v52
  %v54 = vrot.slane %v31, %v53
  %v56 = vmul.f32 %v48, %v54
  %v57 = vmul.f32 %v49, %v54
  %v58 = vpack.c.bf16 %v57, %v56
  %v59 = vld [vmem:[%s2] sm:$0xf]
  %v60 = vld [vmem:[%s2 + $0x4] sm:$0xf]
  %v61 = vld [vmem:[%s2 + $0x8] sm:$0xf]
  %v62 = vld [vmem:[%s2 + $0xc] sm:$0xf]
  %v63 = vld [vmem:[%s2 + $0x10] sm:$0xf]
  %v64 = vld [vmem:[%s2 + $0x14] sm:$0xf]
  %v65 = vld [vmem:[%s2 + $0x18] sm:$0xf]
  %v66 = vld [vmem:[%s2 + $0x1c] sm:$0xf]
  %v75 = vunpack.c.l.b16 %v59
  %v76 = vunpack.c.l.b16 %v60
  %v77 = vunpack.c.l.b16 %v61
  %v78 = vunpack.c.l.b16 %v62
  %v79 = vunpack.c.l.b16 %v63
  %v80 = vunpack.c.l.b16 %v64
  %v81 = vunpack.c.l.b16 %v65
  %v82 = vunpack.c.l.b16 %v66
  %v83 = vpack.c.b16 %v76, %v75
  %v84 = vpack.c.b16 %v78, %v77
  %v85 = vpack.c.b16 %v80, %v79
  %v86 = vpack.c.b16 %v82, %v81
  %v92 = vsel %vm34, %v58, 0
  %94 = vmatprep.subr.bf16.mxu0 0
  %95 = vmatpush1.bf16.msra.mxu0 %v83
  %96 = vmatprep.subr.bf16.mxu0 0
  %97 = vmatpush1.bf16.msra.mxu0 %v84
  %98 = vmatprep.subr.bf16.mxu0 0
  %99 = vmatpush1.bf16.msra.mxu0 %v85
  %100 = vmatprep.subr.bf16.mxu0 0
  %101 = vmatpush1.bf16.msra.mxu0 %v86
  %102 = vmatprep.subr.bf16.mxu0 0
  %103 = vmatpush1.bf16.msra.mxu0 0
  %104 = vmatprep.subr.bf16.mxu0 0
  %105 = vmatpush1.bf16.msra.mxu0 0
  %106 = vmatprep.subr.bf16.mxu0 0
  %107 = vmatpush1.bf16.msra.mxu0 0
  %108 = vmatprep.subr.bf16.mxu0 0
  %109 = vmatpush1.bf16.msra.mxu0 0
  %110 = vmatprep.subr.bf16.mxu0 0
  %111 = vmatpush1.bf16.msra.mxu0 0
  %112 = vmatprep.subr.bf16.mxu0 0
  %113 = vmatpush1.bf16.msra.mxu0 0
  %114 = vmatprep.subr.bf16.mxu0 0
  %115 = vmatpush1.bf16.msra.mxu0 0
  %116 = vmatprep.subr.bf16.mxu0 0
  %117 = vmatpush1.bf16.msra.mxu0 0
  %118 = vmatprep.subr.bf16.mxu0 0
  %119 = vmatpush1.bf16.msra.mxu0 0
  %120 = vmatprep.subr.bf16.mxu0 0
  %121 = vmatpush1.bf16.msra.mxu0 0
  %122 = vmatprep.subr.bf16.mxu0 0
  %123 = vmatpush1.bf16.msra.mxu0 0
  %124 = vmatprep.subr.bf16.mxu0 0
  %125 = vmatpush1.bf16.msra.mxu0 0
  %126 = vmatprep.mubr.bf16.mxu0 0
  %127 = vmatmul.mubr.bf16.gmra.mrb[0].mxu0 %v92
  %v128 = vpop.f32.mrb[0].mxu0
  %v129 = vadd.f32 0.0, %v128
  %v130 = vpop.f32.mrb[0].mxu0
  %v131 = vpop.f32.mrb[0].mxu0
  %v132 = vadd.f32 0.0, %v131
  %v133 = vpop.f32.mrb[0].mxu0
  %134 = vdwg.mxu0
  %v135 = vld [vmem:[%s3] sm:$0x1]
  %v136 = vmul.f32 %v129, %v129
  %v137 = vmul.f32 %v132, %v132
  %vm138 = vcmask 261120
  %v139 = vsel %vm138, %v136, 0.0
  %140 = vadd.xlane.f32.xlu0 %v139
  %v141 = vpop.xlane.xlu0 %140
  %v142 = vsel %vm138, %v137, 0.0
  %143 = vadd.xlane.f32.xlu0 %v142
  %v144 = vpop.xlane.xlu0 %143
  %v145 = vrcp.pop 32.0
  %v146 = vmul.f32 %v141, %v145
  %v147 = vmul.f32 %v144, %v145
  %v148 = vadd.f32 %v146, 1e-06
  %v149 = vadd.f32 %v147, 1e-06
  %v150 = vrsqrt.pop %v148
  %v151 = vrsqrt.pop %v149
  %v152 = vmul.f32 %v129, %v150
  %v153 = vmul.f32 %v132, %v151
  %v155 = vlaneseq
  %v156 = vshrl.u32 %v155, 7
  %v157 = vsub.s32 0, %v156
  %v158 = vrot.slane %v135, %v157
  %v160 = vmul.f32 %v152, %v158
  %v161 = vmul.f32 %v153, %v158
  %v162 = vpack.c.bf16 %v161, %v160
  %v163 = vld [vmem:[%s5] sm:$0xf]
  %v164 = vld [vmem:[%s5 + $0x4] sm:$0xf]
  %v165 = vld [vmem:[%s5 + $0x8] sm:$0xf]
  %v166 = vld [vmem:[%s5 + $0xc] sm:$0xf]
  %v171 = vunpack.c.l.b16 %v163
  %v172 = vunpack.c.l.b16 %v164
  %v173 = vunpack.c.l.b16 %v165
  %v174 = vunpack.c.l.b16 %v166
  %v175 = vpack.c.b16 %v172, %v171
  %v176 = vpack.c.b16 %v174, %v173
  %v180 = vsel %vm138, %v162, 0
  %182 = vmatprep.subr.bf16.mxu0 0
  %183 = vmatpush1.bf16.msra.mxu0 %v175
  %184 = vmatprep.subr.bf16.mxu0 0
  %185 = vmatpush1.bf16.msra.mxu0 %v176
  %186 = vmatprep.subr.bf16.mxu0 0
  %187 = vmatpush1.bf16.msra.mxu0 0
  %188 = vmatprep.subr.bf16.mxu0 0
  %189 = vmatpush1.bf16.msra.mxu0 0
  %190 = vmatprep.subr.bf16.mxu0 0
  %191 = vmatpush1.bf16.msra.mxu0 0
  %192 = vmatprep.subr.bf16.mxu0 0
  %193 = vmatpush1.bf16.msra.mxu0 0
  %194 = vmatprep.subr.bf16.mxu0 0
  %195 = vmatpush1.bf16.msra.mxu0 0
  %196 = vmatprep.subr.bf16.mxu0 0
  %197 = vmatpush1.bf16.msra.mxu0 0
  %198 = vmatprep.subr.bf16.mxu0 0
  %199 = vmatpush1.bf16.msra.mxu0 0
  %200 = vmatprep.subr.bf16.mxu0 0
  %201 = vmatpush1.bf16.msra.mxu0 0
  %202 = vmatprep.subr.bf16.mxu0 0
  %203 = vmatpush1.bf16.msra.mxu0 0
  %204 = vmatprep.subr.bf16.mxu0 0
  %205 = vmatpush1.bf16.msra.mxu0 0
  %206 = vmatprep.subr.bf16.mxu0 0
  %207 = vmatpush1.bf16.msra.mxu0 0
  %208 = vmatprep.subr.bf16.mxu0 0
  %209 = vmatpush1.bf16.msra.mxu0 0
  %210 = vmatprep.subr.bf16.mxu0 0
  %211 = vmatpush1.bf16.msra.mxu0 0
  %212 = vmatprep.subr.bf16.mxu0 0
  %213 = vmatpush1.bf16.msra.mxu0 0
  %214 = vmatprep.mubr.bf16.mxu0 0
  %215 = vmatmul.mubr.bf16.gmra.mrb[0].mxu0 %v180
  %v216 = vpop.f32.mrb[0].mxu0
  %v217 = vadd.f32 0.0, %v216
  %v218 = vpop.f32.mrb[0].mxu0
  %v219 = vpop.f32.mrb[0].mxu0
  %v220 = vadd.f32 0.0, %v219
  %v221 = vpop.f32.mrb[0].mxu0
  %222 = vdwg.mxu0
  %v223 = vld [vmem:[%s4] sm:$0x1]
  %226 = vrot.lane.b32.xlu0 %v136, 96
  %v227 = vpop.permute.xlu0 %226
  %228 = vrot.lane.b32.xlu0 %v137, 96
  %v229 = vpop.permute.xlu0 %228
  %v232 = vsel %vm138, %v227, 0.0
  %233 = vadd.xlane.f32.xlu0 %v232
  %v234 = vpop.xlane.xlu0 %233
  %v235 = vsel %vm138, %v229, 0.0
  %236 = vadd.xlane.f32.xlu0 %v235
  %v237 = vpop.xlane.xlu0 %236
  %v238 = vmul.f32 %v234, %v145
  %v239 = vmul.f32 %v237, %v145
  %v240 = vadd.f32 %v238, 1e-06
  %v241 = vadd.f32 %v239, 1e-06
  %v242 = vrsqrt.pop %v240
  %v243 = vrsqrt.pop %v241
  %v244 = vmul.f32 %v129, %v242
  %v245 = vmul.f32 %v132, %v243
  %v247 = vlaneseq
  %v248 = vshrl.u32 %v247, 7
  %v249 = vsub.s32 0, %v248
  %v250 = vrot.slane %v223, %v249
  %251 = vrot.lane.b32.xlu0 %v250, 32
  %v252 = vpop.permute.xlu0 %251
  %v254 = vmul.f32 %v244, %v252
  %v255 = vmul.f32 %v245, %v252
  %v256 = vpack.c.bf16 %v255, %v254
  %v257 = vld [vmem:[%s6] sm:$0xf]
  %v258 = vld [vmem:[%s6 + $0x4] sm:$0xf]
  %v259 = vld [vmem:[%s6 + $0x8] sm:$0xf]
  %v260 = vld [vmem:[%s6 + $0xc] sm:$0xf]
  %262 = vrot.lane.b32.xlu0 %v256, 96
  %v263 = vpop.permute.xlu0 %262
  %v268 = vunpack.c.l.b16 %v257
  %v269 = vunpack.c.l.b16 %v258
  %v270 = vunpack.c.l.b16 %v259
  %v271 = vunpack.c.l.b16 %v260
  %v272 = vpack.c.b16 %v269, %v268
  %v273 = vpack.c.b16 %v271, %v270
  %v277 = vsel %vm138, %v263, 0
  %279 = vmatprep.subr.bf16.mxu0 0
  %280 = vmatpush1.bf16.msra.mxu0 %v272
  %281 = vmatprep.subr.bf16.mxu0 0
  %282 = vmatpush1.bf16.msra.mxu0 %v273
  %283 = vmatprep.subr.bf16.mxu0 0
  %284 = vmatpush1.bf16.msra.mxu0 0
  %285 = vmatprep.subr.bf16.mxu0 0
  %286 = vmatpush1.bf16.msra.mxu0 0
  %287 = vmatprep.subr.bf16.mxu0 0
  %288 = vmatpush1.bf16.msra.mxu0 0
  %289 = vmatprep.subr.bf16.mxu0 0
  %290 = vmatpush1.bf16.msra.mxu0 0
  %291 = vmatprep.subr.bf16.mxu0 0
  %292 = vmatpush1.bf16.msra.mxu0 0
  %293 = vmatprep.subr.bf16.mxu0 0
  %294 = vmatpush1.bf16.msra.mxu0 0
  %295 = vmatprep.subr.bf16.mxu0 0
  %296 = vmatpush1.bf16.msra.mxu0 0
  %297 = vmatprep.subr.bf16.mxu0 0
  %298 = vmatpush1.bf16.msra.mxu0 0
  %299 = vmatprep.subr.bf16.mxu0 0
  %300 = vmatpush1.bf16.msra.mxu0 0
  %301 = vmatprep.subr.bf16.mxu0 0
  %302 = vmatpush1.bf16.msra.mxu0 0
  %303 = vmatprep.subr.bf16.mxu0 0
  %304 = vmatpush1.bf16.msra.mxu0 0
  %305 = vmatprep.subr.bf16.mxu0 0
  %306 = vmatpush1.bf16.msra.mxu0 0
  %307 = vmatprep.subr.bf16.mxu0 0
  %308 = vmatpush1.bf16.msra.mxu0 0
  %309 = vmatprep.subr.bf16.mxu0 0
  %310 = vmatpush1.bf16.msra.mxu0 0
  %311 = vmatprep.mubr.bf16.mxu0 0
  %312 = vmatmul.mubr.bf16.gmra.mrb[0].mxu0 %v277
  %v313 = vpop.f32.mrb[0].mxu0
  %v314 = vadd.f32 0.0, %v313
  %v315 = vpop.f32.mrb[0].mxu0
  %v316 = vpop.f32.mrb[0].mxu0
  %v317 = vadd.f32 0.0, %v316
  %v318 = vpop.f32.mrb[0].mxu0
  %319 = vdwg.mxu0
  %322 = vrot.lane.b32.xlu0 %v314, 96
  %v323 = vpop.permute.xlu0 %322
  %324 = vrot.lane.b32.xlu0 %v317, 96
  %v325 = vpop.permute.xlu0 %324
  %330 = vrot.lane.b32.xlu0 %v129, 32
  %v331 = vpop.permute.xlu0 %330
  %332 = vrot.lane.b32.xlu0 %v132, 32
  %v333 = vpop.permute.xlu0 %332
  %vm336 = vcmask 785408
  %v337 = vsel %vm336, %v217, %v323
  %v338 = vsel %vm336, %v220, %v325
  %v339 = vsel %vm336, %v323, %v331
  %v340 = vsel %vm336, %v325, %v333
  %v341 = vpack.c.bf16 %v338, %v337
  %v342 = vpack.c.bf16 %v340, %v339
  %v345 = vunpack.c.l.b16 %v341
  %v346 = vunpack.c.l.b16 %v342
  %v347 = vunpack.c.h.b16 %v341
  %v348 = vunpack.c.h.b16 %v342
  %v349 = vpack.c.b16 %v346, %v345
  %v350 = vpack.c.b16 %v348, %v347
  %vm353 = vcmask 1043456
  %vm354 = vcmask 850948
  %vm355 = vmor %vm354, %vm353
  %356 = vst.msk [vmem:[%s7] sm:$0xff] %vm355, %v349
  %357 = vst.msk [vmem:[%s7 + $0x8] sm:$0xff] %vm355, %v350
  // Predicated region
  $region30: #{model_forward.7} parent=0 // pred_check
    _
  $region31: #{model_forward.7} parent=0 // pred_check_branch
    %359 = sbr.rel (0) target = $region33
  $region32: #{model_forward.7} parent=0 // pred_region
    _
  $region33: #{model_forward.7} parent=0 // pred_fallthru
    _
  // Predicated region
  $region34: #{model_forward.7} parent=0 // pred_check
    _
  $region35: #{model_forward.7} parent=0 // pred_check_branch
    %361 = sbr.rel (0) target = $region37
  $region36: #{model_forward.7} parent=0 // pred_region
    _
  $region37: #{model_forward.7} parent=0 // pred_fallthru
    _

// kernel: model_forward.9
$region0: #{model_forward.9}
  #allocation0 [shape = 'u32[]', space=smem, size = 0x4, offset = 0x4, fixed_abs, tag = 'smem constant byte address 0x4 - core index']
  #allocation1 [shape = 'u32[144,128]{1,0:T(1,128)}', space=vmem, size = 0x12000, scoped, tag = 'internal scratch']
  %s0 = inlined_call_operand.vmem [shape: bf16[16,64], index: 0, kind: input, shape index: {}]
  %s1 = inlined_call_operand.vmem [shape: f32[1,64], index: 1, kind: input, shape index: {}]
  %s2 = inlined_call_operand.vmem [shape: bf16[64,256], index: 2, kind: input, shape index: {}]
  %s3 = inlined_call_operand.vmem [shape: bf16[128,64], index: 3, kind: input, shape index: {}]
  %s4 = inlined_call_operand.vmem [shape: bf16[16,64], index: 4, kind: output, shape index: {}]
  %s5 = sld [smem:[#allocation0]]
  $region26: #{model_forward.9} parent=0
    _
  %s7 = ssub.s32 1, %s5
  %s8 = scalar_select 0, %s7, %s5
  // Predicated region
  $region2: #{model_forward.9} parent=0 // pred_check
    _
  $region3: #{model_forward.9} parent=0 // pred_check_branch
    %10 = sbr.rel (0) target = $region5
  $region4: #{model_forward.9} parent=0 // pred_region
    _
  $region5: #{model_forward.9} parent=0 // pred_fallthru
    _
  // Predicated region
  $region6: #{model_forward.9} parent=0 // pred_check
    _
  $region7: #{model_forward.9} parent=0 // pred_check_branch
    %12 = sbr.rel (0) target = $region9
  $region8: #{model_forward.9} parent=0 // pred_region
    _
  $region9: #{model_forward.9} parent=0 // pred_fallthru
    _
  // Predicated region
  $region10: #{model_forward.9} parent=0 // pred_check
    _
  $region11: #{model_forward.9} parent=0 // pred_check_branch
    %14 = sbr.rel (0) target = $region13
  $region12: #{model_forward.9} parent=0 // pred_region
    _
  $region13: #{model_forward.9} parent=0 // pred_fallthru
    _
  // Predicated region
  $region14: #{model_forward.9} parent=0 // pred_check
    _
  $region15: #{model_forward.9} parent=0 // pred_check_branch
    %16 = sbr.rel (0) target = $region17
  $region16: #{model_forward.9} parent=0 // pred_region
    _
  $region17: #{model_forward.9} parent=0 // pred_fallthru
    _
  %v18 = vld [vmem:[%s0] sm:$0xf]
  %v19 = vld [vmem:[%s0 + $0x4] sm:$0xf]
  %v20 = vunpack.c.l.bf16 %v18
  %v21 = vunpack.c.l.bf16 %v19
  %v22 = vld [vmem:[%s1] sm:$0x1]
  %v23 = vmul.f32 %v20, %v20
  %v24 = vmul.f32 %v21, %v21
  %vm25 = vcmask 523264
  %v26 = vsel %vm25, %v23, 0.0
  %27 = vadd.xlane.f32.xlu0 %v26
  %v28 = vpop.xlane.xlu0 %27
  %v29 = vsel %vm25, %v24, 0.0
  %30 = vadd.xlane.f32.xlu0 %v29
  %v31 = vpop.xlane.xlu0 %30
  %v32 = vrcp.pop 64.0
  %v33 = vmul.f32 %v28, %v32
  %v34 = vmul.f32 %v31, %v32
  %v35 = vadd.f32 %v33, 1e-06
  %v36 = vadd.f32 %v34, 1e-06
  %v37 = vrsqrt.pop %v35
  %v38 = vrsqrt.pop %v36
  %v39 = vmul.f32 %v20, %v37
  %v40 = vmul.f32 %v21, %v38
  %v42 = vlaneseq
  %v43 = vshrl.u32 %v42, 7
  %v44 = vsub.s32 0, %v43
  %v45 = vrot.slane %v22, %v44
  %v47 = vmul.f32 %v39, %v45
  %v48 = vmul.f32 %v40, %v45
  %v49 = vpack.c.bf16 %v48, %v47
  %v50 = vld [vmem:[%s2] sm:$0xff]
  %v51 = vld [vmem:[%s2 + $0x8] sm:$0xff]
  %v52 = vld [vmem:[%s2 + $0x10] sm:$0xff]
  %v53 = vld [vmem:[%s2 + $0x18] sm:$0xff]
  %v54 = vld [vmem:[%s2 + $0x20] sm:$0xff]
  %v55 = vld [vmem:[%s2 + $0x28] sm:$0xff]
  %v56 = vld [vmem:[%s2 + $0x30] sm:$0xff]
  %v57 = vld [vmem:[%s2 + $0x38] sm:$0xff]
  %v66 = vunpack.c.l.b16 %v50
  %v67 = vunpack.c.h.b16 %v50
  %v68 = vunpack.c.l.b16 %v51
  %v69 = vunpack.c.h.b16 %v51
  %v70 = vunpack.c.l.b16 %v52
  %v71 = vunpack.c.h.b16 %v52
  %v72 = vunpack.c.l.b16 %v53
  %v73 = vunpack.c.h.b16 %v53
  %v74 = vunpack.c.l.b16 %v54
  %v75 = vunpack.c.h.b16 %v54
  %v76 = vunpack.c.l.b16 %v55
  %v77 = vunpack.c.h.b16 %v55
  %v78 = vunpack.c.l.b16 %v56
  %v79 = vunpack.c.h.b16 %v56
  %v80 = vunpack.c.l.b16 %v57
  %v81 = vunpack.c.h.b16 %v57
  %v82 = vpack.c.b16 %v68, %v66
  %v83 = vpack.c.b16 %v69, %v67
  %v84 = vpack.c.b16 %v72, %v70
  %v85 = vpack.c.b16 %v73, %v71
  %v86 = vpack.c.b16 %v76, %v74
  %v87 = vpack.c.b16 %v77, %v75
  %v88 = vpack.c.b16 %v80, %v78
  %v89 = vpack.c.b16 %v81, %v79
  %v99 = vsel %vm25, %v49, 0
  %101 = vmatprep.subr.bf16.mxu0 %v83
  %102 = vmatpush1.bf16.msra.mxu0 %v82
  %103 = vmatprep.subr.bf16.mxu0 %v85
  %104 = vmatpush1.bf16.msra.mxu0 %v84
  %105 = vmatprep.subr.bf16.mxu0 %v87
  %106 = vmatpush1.bf16.msra.mxu0 %v86
  %107 = vmatprep.subr.bf16.mxu0 %v89
  %108 = vmatpush1.bf16.msra.mxu0 %v88
  %109 = vmatprep.subr.bf16.mxu0 0
  %110 = vmatpush1.bf16.msra.mxu0 0
  %111 = vmatprep.subr.bf16.mxu0 0
  %112 = vmatpush1.bf16.msra.mxu0 0
  %113 = vmatprep.subr.bf16.mxu0 0
  %114 = vmatpush1.bf16.msra.mxu0 0
  %115 = vmatprep.subr.bf16.mxu0 0
  %116 = vmatpush1.bf16.msra.mxu0 0
  %117 = vmatprep.subr.bf16.mxu0 0
  %118 = vmatpush1.bf16.msra.mxu0 0
  %119 = vmatprep.subr.bf16.mxu0 0
  %120 = vmatpush1.bf16.msra.mxu0 0
  %121 = vmatprep.subr.bf16.mxu0 0
  %122 = vmatpush1.bf16.msra.mxu0 0
  %123 = vmatprep.subr.bf16.mxu0 0
  %124 = vmatpush1.bf16.msra.mxu0 0
  %125 = vmatprep.subr.bf16.mxu0 0
  %126 = vmatpush1.bf16.msra.mxu0 0
  %127 = vmatprep.subr.bf16.mxu0 0
  %128 = vmatpush1.bf16.msra.mxu0 0
  %129 = vmatprep.subr.bf16.mxu0 0
  %130 = vmatpush1.bf16.msra.mxu0 0
  %131 = vmatprep.subr.bf16.mxu0 0
  %132 = vmatpush1.bf16.msra.mxu0 0
  %133 = vmatprep.mubr.bf16.mxu0 0
  %134 = vmatmul.mubr.bf16.gmra.mrb[0].mxu0 %v99
  %v135 = vpop.f32.mrb[0].mxu0
  %v136 = vadd.f32 0.0, %v135
  %v137 = vpop.f32.mrb[0].mxu0
  %v138 = vadd.f32 0.0, %v137
  %v139 = vpop.f32.mrb[0].mxu0
  %v140 = vadd.f32 0.0, %v139
  %v141 = vpop.f32.mrb[0].mxu0
  %v142 = vadd.f32 0.0, %v141
  %143 = vdwg.mxu0
  %v144 = vxor.u32 %v136, 2147483648
  %v145 = vxor.u32 %v140, 2147483648
  %v146 = vmul.f32 %v144, 1.442695
  %v147 = vpow.pop %v146
  %v148 = vmul.f32 %v145, 1.442695
  %v149 = vpow.pop %v148
  %v150 = vadd.f32 %v147, 1.0
  %v151 = vadd.f32 %v149, 1.0
  %v152 = vrcp.pop %v150
  %v153 = vmul.f32 1.0, %v152
  %v154 = vrcp.pop %v151
  %v155 = vmul.f32 1.0, %v154
  %v156 = vmul.f32 %v136, %v153
  %v157 = vmul.f32 %v140, %v155
  %v158 = vmul.f32 %v156, %v138
  %v159 = vmul.f32 %v157, %v142
  %v160 = vpack.c.bf16 %v159, %v158
  %v161 = vld [vmem:[%s3] sm:$0xf]
  %v162 = vld [vmem:[%s3 + $0x4] sm:$0xf]
  %v163 = vld [vmem:[%s3 + $0x8] sm:$0xf]
  %v164 = vld [vmem:[%s3 + $0xc] sm:$0xf]
  %v165 = vld [vmem:[%s3 + $0x10] sm:$0xf]
  %v166 = vld [vmem:[%s3 + $0x14] sm:$0xf]
  %v167 = vld [vmem:[%s3 + $0x18] sm:$0xf]
  %v168 = vld [vmem:[%s3 + $0x1c] sm:$0xf]
  %v169 = vld [vmem:[%s3 + $0x20] sm:$0xf]
  %v170 = vld [vmem:[%s3 + $0x24] sm:$0xf]
  %v171 = vld [vmem:[%s3 + $0x28] sm:$0xf]
  %v172 = vld [vmem:[%s3 + $0x2c] sm:$0xf]
  %v173 = vld [vmem:[%s3 + $0x30] sm:$0xf]
  %v174 = vld [vmem:[%s3 + $0x34] sm:$0xf]
  %v175 = vld [vmem:[%s3 + $0x38] sm:$0xf]
  %v176 = vld [vmem:[%s3 + $0x3c] sm:$0xf]
  %v193 = vunpack.c.l.b16 %v161
  %v194 = vunpack.c.l.b16 %v162
  %v195 = vunpack.c.l.b16 %v163
  %v196 = vunpack.c.l.b16 %v164
  %v197 = vunpack.c.l.b16 %v165
  %v198 = vunpack.c.l.b16 %v166
  %v199 = vunpack.c.l.b16 %v167
  %v200 = vunpack.c.l.b16 %v168
  %v201 = vunpack.c.l.b16 %v169
  %v202 = vunpack.c.l.b16 %v170
  %v203 = vunpack.c.l.b16 %v171
  %v204 = vunpack.c.l.b16 %v172
  %v205 = vunpack.c.l.b16 %v173
  %v206 = vunpack.c.l.b16 %v174
  %v207 = vunpack.c.l.b16 %v175
  %v208 = vunpack.c.l.b16 %v176
  %v209 = vpack.c.b16 %v194, %v193
  %v210 = vpack.c.b16 %v196, %v195
  %v211 = vpack.c.b16 %v198, %v197
  %v212 = vpack.c.b16 %v200, %v199
  %v213 = vpack.c.b16 %v202, %v201
  %v214 = vpack.c.b16 %v204, %v203
  %v215 = vpack.c.b16 %v206, %v205
  %v216 = vpack.c.b16 %v208, %v207
  %225 = vmatprep.subr.bf16.mxu0 0
  %226 = vmatpush1.bf16.msra.mxu0 %v209
  %227 = vmatprep.subr.bf16.mxu0 0
  %228 = vmatpush1.bf16.msra.mxu0 %v210
  %229 = vmatprep.subr.bf16.mxu0 0
  %230 = vmatpush1.bf16.msra.mxu0 %v211
  %231 = vmatprep.subr.bf16.mxu0 0
  %232 = vmatpush1.bf16.msra.mxu0 %v212
  %233 = vmatprep.subr.bf16.mxu0 0
  %234 = vmatpush1.bf16.msra.mxu0 %v213
  %235 = vmatprep.subr.bf16.mxu0 0
  %236 = vmatpush1.bf16.msra.mxu0 %v214
  %237 = vmatprep.subr.bf16.mxu0 0
  %238 = vmatpush1.bf16.msra.mxu0 %v215
  %239 = vmatprep.subr.bf16.mxu0 0
  %240 = vmatpush1.bf16.msra.mxu0 %v216
  %241 = vmatprep.subr.bf16.mxu0 0
  %242 = vmatpush1.bf16.msra.mxu0 0
  %243 = vmatprep.subr.bf16.mxu0 0
  %244 = vmatpush1.bf16.msra.mxu0 0
  %245 = vmatprep.subr.bf16.mxu0 0
  %246 = vmatpush1.bf16.msra.mxu0 0
  %247 = vmatprep.subr.bf16.mxu0 0
  %248 = vmatpush1.bf16.msra.mxu0 0
  %249 = vmatprep.subr.bf16.mxu0 0
  %250 = vmatpush1.bf16.msra.mxu0 0
  %251 = vmatprep.subr.bf16.mxu0 0
  %252 = vmatpush1.bf16.msra.mxu0 0
  %253 = vmatprep.subr.bf16.mxu0 0
  %254 = vmatpush1.bf16.msra.mxu0 0
  %255 = vmatprep.subr.bf16.mxu0 0
  %256 = vmatpush1.bf16.msra.mxu0 0
  %257 = vmatprep.mubr.bf16.mxu0 0
  %258 = vmatmul.mubr.bf16.gmra.mrb[0].mxu0 %v160
  %v259 = vpop.f32.mrb[0].mxu0
  %v260 = vadd.f32 0.0, %v259
  %v261 = vpop.f32.mrb[0].mxu0
  %v262 = vpop.f32.mrb[0].mxu0
  %v263 = vadd.f32 0.0, %v262
  %v264 = vpop.f32.mrb[0].mxu0
  %265 = vdwg.mxu0
  %v266 = vadd.f32 %v20, %v260
  %v267 = vadd.f32 %v21, %v263
  %v268 = vpack.c.bf16 %v267, %v266
  %v270 = vunpack.c.l.b16 %v268
  %v271 = vunpack.c.h.b16 %v268
  %v272 = vpack.c.b16 %v270, %v270
  %v273 = vpack.c.b16 %v271, %v271
  %vm276 = vcmask 519168
  %277 = vst.msk [vmem:[%s4] sm:$0xf] %vm276, %v272
  %278 = vst.msk [vmem:[%s4 + $0x4] sm:$0xf] %vm276, %v273
  // Predicated region
  $region18: #{model_forward.9} parent=0 // pred_check
    _
  $region19: #{model_forward.9} parent=0 // pred_check_branch
    %280 = sbr.rel (0) target = $region21
  $region20: #{model_forward.9} parent=0 // pred_region
    _
  $region21: #{model_forward.9} parent=0 // pred_fallthru
    _
  // Predicated region
  $region22: #{model_forward.9} parent=0 // pred_check
    _
  $region23: #{model_forward.9} parent=0 // pred_check_branch
    %282 = sbr.rel (0) target = $region25
  $region24: #{model_forward.9} parent=0 // pred_region
    _
  $region25: #{model_forward.9} parent=0 // pred_fallthru
    _

// kernel: model_forward.12
$region0: #{model_forward.12}
  #allocation0 [shape = 'u32[]', space=smem, size = 0x4, offset = 0x4, fixed_abs, tag = 'smem constant byte address 0x4 - core index']
  #allocation1 [shape = 'u32[144,128]{1,0:T(1,128)}', space=vmem, size = 0x12000, scoped, tag = 'internal scratch']
  #allocation2 [shape = 'bf16[16,64]{1,0:T(16,128)(2,1)}', space=vmem, size = 0x1000, scoped, tag = 'scratch operand']
  #allocation3 [shape = 'f32[16,4]{1,0:T(8,128)}', space=vmem, size = 0x2000, scoped, tag = 'scratch operand']
  #allocation4 [shape = 'f32[16,64]{1,0:T(8,128)}', space=vmem, size = 0x2000, scoped, tag = 'scratch operand']
  %s0 = inlined_call_operand.vmem [shape: bf16[16,64], index: 0, kind: input, shape index: {}]
  %s1 = inlined_call_operand.vmem [shape: f32[1,64], index: 1, kind: input, shape index: {}]
  %s2 = inlined_call_operand.vmem [shape: bf16[64,4], index: 2, kind: input, shape index: {}]
  %s3 = inlined_call_operand.vmem [shape: bf16[64,64], index: 3, kind: input, shape index: {}]
  %s4 = inlined_call_operand.vmem [shape: bf16[32,64], index: 4, kind: input, shape index: {}]
  %s5 = inlined_call_operand.vmem [shape: bf16[4,64,64], index: 5, kind: input, shape index: {}]
  %s6 = inlined_call_operand.vmem [shape: bf16[4,32,64], index: 6, kind: input, shape index: {}]
  %s7 = inlined_call_operand.vmem [shape: bf16[16,64], index: 7, kind: output, shape index: {}]
  %s8 = sld [smem:[#allocation0]]
  $region69: #{model_forward.12} parent=0
    _
  %s10 = ssub.s32 1, %s8
  %s11 = scalar_select 0, %s10, %s8
  loop: start=0, step=1, limit=6
  $region2: #{model_forward.12} parent=0 // loop_pre_header
    _
  $region3: #{model_forward.12} parent=0 // loop_header
    %s13 = sphi 0, %s17
    %p14 = scmp.ge.s32.totalorder %s13, 6
    %s20 = sphi 0, %s32
    %s21 = sphi 0, %s28
    %s22 = sphi 0, %s20
    %s23 = sphi 0, %s21
    %s24 = sphi 0, %s22
    %s25 = sphi 0, %s23
    %s35 = sphi 0, %s37
    %s38 = sphi 0, %s35
    %s39 = sphi 0, %s38
    %s55 = sphi 0, %s39
    %s59 = sphi 0, %s59
    %s61 = sphi 0, %s59
    %s62 = sphi 0, %s61
    %s76 = sphi 0, %s62
    %s80 = sphi 0, %s80
    %s82 = sphi 0, %s80
    %s83 = sphi 0, %s82
    %s97 = sphi 0, %s83
    %s101 = sphi 0, %s101
    %s103 = sphi 0, %s101
    %s104 = sphi 0, %s103
    %s118 = sphi 0, %s104
    %s122 = sphi 0, %s122
    %s124 = sphi 0, %s122
    %s125 = sphi 0, %s124
    %s139 = sphi 0, %s125
    %s145 = sphi 0, %s147
    %s148 = sphi 0, %s145
    %s149 = sphi 0, %s148
    %s165 = sphi 0, %s149
    %s171 = sphi 0, %s173
    %s174 = sphi 0, %s171
    %s175 = sphi 0, %s174
    %s191 = sphi 0, %s175
    %s197 = sphi 0, %s199
    %s200 = sphi 0, %s197
    %s201 = sphi 0, %s200
    %s217 = sphi 0, %s201
  $region4: #{model_forward.12} parent=0 // loop_header_branch
    %16 = sbr.rel (%p14) target = $region8
  $region5: #{model_forward.12} parent=0 // loop_body
    %s18 = ssub.s32 %s13, 1
    %s19 = ssub.s32 %s13, 2
    %s26 = sadd.s32 1, %s21
    %p27 = scmp.ge.s32.totalorder %s26, 4
    %s28 = scalar_select %p27, 0, %s26
    %s29 = sadd.s32 1, %s20
    %s30 = scalar_select %p27, %s29, %s20
    %p31 = scmp.ge.s32.totalorder %s30, 1
    %s32 = scalar_select %p31, 0, %s30
    %s33 = ssub.s32 %s20, %s32
    %p34 = scmp.eq.s32.totalorder %s33, 0
    %s36 = sadd.s32 %s35, 1
    %s37 = scalar_select %p34, %s35, %s36
    %p40 = pneg %p34
    %p41 = scmp.eq.s32.totalorder %s13, 3
    %p42 = por %p40, %p41
    %p43 = scmp.ne.s32.totalorder %s35, %s38
    %p44 = scmp.eq.s32.totalorder %s13, 0
    %p45 = por %p43, %p44
    %p46 = scmp.ne.s32.totalorder %s35, %s38
    %p47 = scmp.eq.s32.totalorder %s18, 3
    %p48 = por %p46, %p47
    %p49 = scmp.ne.s32.totalorder %s38, %s39
    %p50 = scmp.eq.s32.totalorder %s18, 0
    %p51 = por %p49, %p50
    %p52 = scmp.ne.s32.totalorder %s38, %s39
    %p53 = scmp.eq.s32.totalorder %s19, 3
    %p54 = por %p52, %p53
    %p56 = scmp.ne.s32.totalorder %s39, %s55
    %p57 = scmp.eq.s32.totalorder %s19, 0
    %p58 = por %p56, %p57
    %s60 = sadd.s32 %s59, 1
    %p63 = scmp.eq.s32.totalorder %s13, 3
    %p64 = scmp.ne.s32.totalorder %s59, %s61
    %p65 = scmp.eq.s32.totalorder %s13, 0
    %p66 = por %p64, %p65
    %p67 = scmp.ne.s32.totalorder %s59, %s61
    %p68 = scmp.eq.s32.totalorder %s18, 3
    %p69 = por %p67, %p68
    %p70 = scmp.ne.s32.totalorder %s61, %s62
    %p71 = scmp.eq.s32.totalorder %s18, 0
    %p72 = por %p70, %p71
    %p73 = scmp.ne.s32.totalorder %s61, %s62
    %p74 = scmp.eq.s32.totalorder %s19, 3
    %p75 = por %p73, %p74
    %p77 = scmp.ne.s32.totalorder %s62, %s76
    %p78 = scmp.eq.s32.totalorder %s19, 0
    %p79 = por %p77, %p78
    %s81 = sadd.s32 %s80, 1
    %p84 = scmp.eq.s32.totalorder %s13, 3
    %p85 = scmp.ne.s32.totalorder %s80, %s82
    %p86 = scmp.eq.s32.totalorder %s13, 0
    %p87 = por %p85, %p86
    %p88 = scmp.ne.s32.totalorder %s80, %s82
    %p89 = scmp.eq.s32.totalorder %s18, 3
    %p90 = por %p88, %p89
    %p91 = scmp.ne.s32.totalorder %s82, %s83
    %p92 = scmp.eq.s32.totalorder %s18, 0
    %p93 = por %p91, %p92
    %p94 = scmp.ne.s32.totalorder %s82, %s83
    %p95 = scmp.eq.s32.totalorder %s19, 3
    %p96 = por %p94, %p95
    %p98 = scmp.ne.s32.totalorder %s83, %s97
    %p99 = scmp.eq.s32.totalorder %s19, 0
    %p100 = por %p98, %p99
    %s102 = sadd.s32 %s101, 1
    %p105 = scmp.eq.s32.totalorder %s13, 3
    %p106 = scmp.ne.s32.totalorder %s101, %s103
    %p107 = scmp.eq.s32.totalorder %s13, 0
    %p108 = por %p106, %p107
    %p109 = scmp.ne.s32.totalorder %s101, %s103
    %p110 = scmp.eq.s32.totalorder %s18, 3
    %p111 = por %p109, %p110
    %p112 = scmp.ne.s32.totalorder %s103, %s104
    %p113 = scmp.eq.s32.totalorder %s18, 0
    %p114 = por %p112, %p113
    %p115 = scmp.ne.s32.totalorder %s103, %s104
    %p116 = scmp.eq.s32.totalorder %s19, 3
    %p117 = por %p115, %p116
    %p119 = scmp.ne.s32.totalorder %s104, %s118
    %p120 = scmp.eq.s32.totalorder %s19, 0
    %p121 = por %p119, %p120
    %s123 = sadd.s32 %s122, 1
    %p126 = scmp.eq.s32.totalorder %s13, 3
    %p127 = scmp.ne.s32.totalorder %s122, %s124
    %p128 = scmp.eq.s32.totalorder %s13, 0
    %p129 = por %p127, %p128
    %p130 = scmp.ne.s32.totalorder %s122, %s124
    %p131 = scmp.eq.s32.totalorder %s18, 3
    %p132 = por %p130, %p131
    %p133 = scmp.ne.s32.totalorder %s124, %s125
    %p134 = scmp.eq.s32.totalorder %s18, 0
    %p135 = por %p133, %p134
    %p136 = scmp.ne.s32.totalorder %s124, %s125
    %p137 = scmp.eq.s32.totalorder %s19, 3
    %p138 = por %p136, %p137
    %p140 = scmp.ne.s32.totalorder %s125, %s139
    %p141 = scmp.eq.s32.totalorder %s19, 0
    %p142 = por %p140, %p141
    %s143 = ssub.s32 %s21, %s28
    %p144 = scmp.eq.s32.totalorder %s143, 0
    %s146 = sadd.s32 %s145, 1
    %s147 = scalar_select %p144, %s145, %s146
    %p150 = pneg %p144
    %p151 = scmp.eq.s32.totalorder %s13, 3
    %p152 = por %p150, %p151
    %p153 = scmp.ne.s32.totalorder %s145, %s148
    %p154 = scmp.eq.s32.totalorder %s13, 0
    %p155 = por %p153, %p154
    %p156 = scmp.ne.s32.totalorder %s145, %s148
    %p157 = scmp.eq.s32.totalorder %s18, 3
    %p158 = por %p156, %p157
    %p159 = scmp.ne.s32.totalorder %s148, %s149
    %p160 = scmp.eq.s32.totalorder %s18, 0
    %p161 = por %p159, %p160
    %p162 = scmp.ne.s32.totalorder %s148, %s149
    %p163 = scmp.eq.s32.totalorder %s19, 3
    %p164 = por %p162, %p163
    %p166 = scmp.ne.s32.totalorder %s149, %s165
    %p167 = scmp.eq.s32.totalorder %s19, 0
    %p168 = por %p166, %p167
    %s169 = ssub.s32 %s21, %s28
    %p170 = scmp.eq.s32.totalorder %s169, 0
    %s172 = sadd.s32 %s171, 1
    %s173 = scalar_select %p170, %s171, %s172
    %p176 = pneg %p170
    %p177 = scmp.eq.s32.totalorder %s13, 3
    %p178 = por %p176, %p177
    %p179 = scmp.ne.s32.totalorder %s171, %s174
    %p180 = scmp.eq.s32.totalorder %s13, 0
    %p181 = por %p179, %p180
    %p182 = scmp.ne.s32.totalorder %s171, %s174
    %p183 = scmp.eq.s32.totalorder %s18, 3
    %p184 = por %p182, %p183
    %p185 = scmp.ne.s32.totalorder %s174, %s175
    %p186 = scmp.eq.s32.totalorder %s18, 0
    %p187 = por %p185, %p186
    %p188 = scmp.ne.s32.totalorder %s174, %s175
    %p189 = scmp.eq.s32.totalorder %s19, 3
    %p190 = por %p188, %p189
    %p192 = scmp.ne.s32.totalorder %s175, %s191
    %p193 = scmp.eq.s32.totalorder %s19, 0
    %p194 = por %p192, %p193
    %s195 = ssub.s32 %s20, %s32
    %p196 = scmp.eq.s32.totalorder %s195, 0
    %s198 = sadd.s32 %s197, 1
    %s199 = scalar_select %p196, %s197, %s198
    %p202 = pneg %p196
    %p203 = scmp.eq.s32.totalorder %s13, 3
    %p204 = por %p202, %p203
    %p205 = scmp.ne.s32.totalorder %s197, %s200
    %p206 = scmp.eq.s32.totalorder %s13, 0
    %p207 = por %p205, %p206
    %p208 = scmp.ne.s32.totalorder %s197, %s200
    %p209 = scmp.eq.s32.totalorder %s18, 3
    %p210 = por %p208, %p209
    %p211 = scmp.ne.s32.totalorder %s200, %s201
    %p212 = scmp.eq.s32.totalorder %s18, 0
    %p213 = por %p211, %p212
    %p214 = scmp.ne.s32.totalorder %s200, %s201
    %p215 = scmp.eq.s32.totalorder %s19, 3
    %p216 = por %p214, %p215
    %p218 = scmp.ne.s32.totalorder %s201, %s217
    %p219 = scmp.eq.s32.totalorder %s19, 0
    %p220 = por %p218, %p219
    %p221 = scmp.le.s32.totalorder 1, %s13
    %p222 = scmp.lt.s32.totalorder %s13, 5
    %p223 = pnand %p221, %p222
    %p224 = pneg %p223
    // Predicated region
    $region9: #{model_forward.12} parent=5 // pred_check
      _
    $region10: #{model_forward.12} parent=5 // pred_check_branch
      %226 = sbr.rel (%p223) target = $region12
    $region11: #{model_forward.12} parent=5 // pred_region
      %s227 = ssub.s32 %s13, 1
      // Predicated region
      $region13: #{model_forward.12} parent=11 // pred_check
        %p228 = pneg %p51
      $region14: #{model_forward.12} parent=11 // pred_check_branch
        %230 = sbr.rel (%p228) target = $region16
      $region15: #{model_forward.12} parent=11 // pred_region
        %s231 = smul.u32 2, %s22
        %p232 = scmp.lt.s32.totalorder %s231, 1
        %s233 = scalar_select %p232, %s231, 1
        %s234 = smul.addr %s233, 4
        %s235 = scalar_lea.vmem %s0, %s234
        %s236 = smul.u32 2, %s22
      $region16: #{model_forward.12} parent=11 // pred_fallthru
        _
      // Predicated region
      $region17: #{model_forward.12} parent=11 // pred_check
        %p237 = pneg %p72
      $region18: #{model_forward.12} parent=11 // pred_check_branch
        %239 = sbr.rel (%p237) target = $region20
      $region19: #{model_forward.12} parent=11 // pred_region
        _
      $region20: #{model_forward.12} parent=11 // pred_fallthru
        _
      // Predicated region
      $region21: #{model_forward.12} parent=11 // pred_check
        %p240 = pneg %p93
      $region22: #{model_forward.12} parent=11 // pred_check_branch
        %242 = sbr.rel (%p240) target = $region24
      $region23: #{model_forward.12} parent=11 // pred_region
        _
      $region24: #{model_forward.12} parent=11 // pred_fallthru
        _
      // Predicated region
      $region25: #{model_forward.12} parent=11 // pred_check
        %p243 = pneg %p114
      $region26: #{model_forward.12} parent=11 // pred_check_branch
        %245 = sbr.rel (%p243) target = $region28
      $region27: #{model_forward.12} parent=11 // pred_region
        _
      $region28: #{model_forward.12} parent=11 // pred_fallthru
        _
      // Predicated region
      $region29: #{model_forward.12} parent=11 // pred_check
        %p246 = pneg %p135
      $region30: #{model_forward.12} parent=11 // pred_check_branch
        %248 = sbr.rel (%p246) target = $region32
      $region31: #{model_forward.12} parent=11 // pred_region
        _
      $region32: #{model_forward.12} parent=11 // pred_fallthru
        _
    $region12: #{model_forward.12} parent=5 // pred_fallthru
      _
    %p249 = scmp.lt.s32.totalorder %s13, 4
    // Predicated region
    $region33: #{model_forward.12} parent=5 // pred_check
      %p250 = pneg %p249
    $region34: #{model_forward.12} parent=5 // pred_check_branch
      %252 = sbr.rel (%p250) target = $region36
    $region35: #{model_forward.12} parent=5 // pred_region
      // Predicated region
      $region37: #{model_forward.12} parent=35 // pred_check
        %p253 = pneg %p155
      $region38: #{model_forward.12} parent=35 // pred_check_branch
        %255 = sbr.rel (%p253) target = $region40
      $region39: #{model_forward.12} parent=35 // pred_region
        %p256 = scmp.lt.s32.totalorder %s21, 3
        %s257 = scalar_select %p256, %s21, 3
        %s258 = smul.addr %s257, 8
        %s259 = smul.addr %s258, 4
        %s260 = scalar_lea.vmem %s5, %s259
      $region40: #{model_forward.12} parent=35 // pred_fallthru
        _
      // Predicated region
      $region41: #{model_forward.12} parent=35 // pred_check
        %p261 = pneg %p181
      $region42: #{model_forward.12} parent=35 // pred_check_branch
        %263 = sbr.rel (%p261) target = $region44
      $region43: #{model_forward.12} parent=35 // pred_region
        %p264 = scmp.lt.s32.totalorder %s21, 3
        %s265 = scalar_select %p264, %s21, 3
        %s266 = smul.addr %s265, 4
        %s267 = smul.addr %s266, 4
        %s268 = scalar_lea.vmem %s6, %s267
      $region44: #{model_forward.12} parent=35 // pred_fallthru
        _
    $region36: #{model_forward.12} parent=5 // pred_fallthru
      _
    %p269 = scmp.le.s32.totalorder 1, %s13
    %p270 = scmp.lt.s32.totalorder %s13, 5
    %p271 = pnand %p269, %p270
    %p272 = pneg %p271
    // Predicated region
    $region45: #{model_forward.12} parent=5 // pred_check
      _
    $region46: #{model_forward.12} parent=5 // pred_check_branch
      %274 = sbr.rel (%p271) target = $region48
    $region47: #{model_forward.12} parent=5 // pred_region
      %s275 = ssub.s32 %s13, 1
      %s276 = smul.u32 2, %s22
      %p277 = scmp.lt.s32.totalorder %s276, 1
      %s278 = scalar_select %p277, %s276, 1
      %s279 = smul.addr %s278, 4
      %s280 = scalar_lea.vmem %s0, %s279
      %p281 = pneg %p51
      %p282 = pneg %p48
      %p283 = pneg %p72
      %p284 = pneg %p69
      %p285 = pneg %p93
      %p286 = pneg %p90
      %p287 = pneg %p114
      %p288 = pneg %p111
      %p289 = pneg %p135
      %p290 = pneg %p132
      %p291 = scmp.lt.s32.totalorder %s23, 3
      %s292 = scalar_select %p291, %s23, 3
      %s293 = smul.addr %s292, 8
      %s294 = smul.addr %s293, 4
      %s295 = scalar_lea.vmem %s5, %s294
      %p296 = pneg %p161
      %p297 = pneg %p158
      %p298 = scmp.lt.s32.totalorder %s23, 3
      %s299 = scalar_select %p298, %s23, 3
      %s300 = smul.addr %s299, 4
      %s301 = smul.addr %s300, 4
      %s302 = scalar_lea.vmem %s6, %s301
      %p303 = pneg %p187
      %p304 = pneg %p184
      %p305 = pneg %p213
      %p306 = pneg %p210
      %s307 = smul.u32 2, %s22
      %p308 = scmp.lt.s32.totalorder %s307, 1
      %s309 = scalar_select %p308, %s307, 1
      %s310 = smul.addr %s309, 4
      %s311 = scalar_lea.vmem %s7, %s310
      %s312 = smul.u32 2, %s22
      %p313 = scmp.lt.s32.totalorder %s312, 1
      %s314 = scalar_select %p313, %s312, 1
      %s315 = smul.addr %s314, 4
      %s316 = scalar_lea.vmem %s0, %s315
      %s317 = smul.u32 2, %s22
      %p318 = scmp.lt.s32.totalorder %s23, 3
      %s319 = scalar_select %p318, %s23, 3
      %s320 = smul.addr %s319, 8
      %s321 = smul.addr %s320, 4
      %s322 = scalar_lea.vmem %s5, %s321
      %p323 = scmp.lt.s32.totalorder %s23, 3
      %s324 = scalar_select %p323, %s23, 3
      %s325 = smul.addr %s324, 4
      %s326 = smul.addr %s325, 4
      %s327 = scalar_lea.vmem %s6, %s326
      %s328 = smul.u32 2, %s22
      %p329 = scmp.lt.s32.totalorder %s328, 1
      %s330 = scalar_select %p329, %s328, 1
      %s331 = smul.addr %s330, 4
      %s332 = scalar_lea.vmem %s7, %s331
      %s333 = smul.u32 2, %s22
      %p335 = scmp.eq.s32.totalorder %s23, 0
      // Predicated region
      $region49: #{model_forward.12} parent=47 // pred_check
        %p336 = pneg %p335
      $region50: #{model_forward.12} parent=47 // pred_check_branch
        %338 = sbr.rel (%p336) target = $region52
      $region51: #{model_forward.12} parent=47 // pred_region
        %v339 = vld [vmem:[%s316] sm:$0xf]
        %v340 = vld [vmem:[%s316 + $0x4] sm:$0xf]
        %v341 = vunpack.c.l.bf16 %v339
        %v342 = vunpack.c.l.bf16 %v340
        %v343 = vld [vmem:[%s1] sm:$0x1]
        %v344 = vmul.f32 %v341, %v341
        %v345 = vmul.f32 %v342, %v342
        %vm346 = vcmask 523264
        %v347 = vsel %vm346, %v344, 0.0
        %348 = vadd.xlane.f32.xlu0 %v347
        %v349 = vpop.xlane.xlu0 %348
        %v350 = vsel %vm346, %v345, 0.0
        %351 = vadd.xlane.f32.xlu0 %v350
        %v352 = vpop.xlane.xlu0 %351
        %v353 = vrcp.pop 64.0
        %v354 = vmul.f32 %v349, %v353
        %v355 = vmul.f32 %v352, %v353
        %v356 = vadd.f32 %v354, 1e-06
        %v357 = vadd.f32 %v355, 1e-06
        %v358 = vrsqrt.pop %v356
        %v359 = vrsqrt.pop %v357
        %v360 = vmul.f32 %v341, %v358
        %v361 = vmul.f32 %v342, %v359
        %v363 = vlaneseq
        %v364 = vshrl.u32 %v363, 7
        %v365 = vsub.s32 0, %v364
        %v366 = vrot.slane %v343, %v365
        %v368 = vmul.f32 %v360, %v366
        %v369 = vmul.f32 %v361, %v366
        %v370 = vpack.c.bf16 %v369, %v368
        %371 = vst.msk [vmem:[#allocation2] sm:$0xff] %vm346, %v370
        %v372 = vld [vmem:[%s2] sm:$0xf]
        %v373 = vld [vmem:[%s2 + $0x4] sm:$0xf]
        %v374 = vld [vmem:[%s2 + $0x8] sm:$0xf]
        %v375 = vld [vmem:[%s2 + $0xc] sm:$0xf]
        %v376 = vld [vmem:[%s2 + $0x10] sm:$0xf]
        %v377 = vld [vmem:[%s2 + $0x14] sm:$0xf]
        %v378 = vld [vmem:[%s2 + $0x18] sm:$0xf]
        %v379 = vld [vmem:[%s2 + $0x1c] sm:$0xf]
        %v388 = vunpack.c.l.b16 %v372
        %v389 = vunpack.c.l.b16 %v373
        %v390 = vunpack.c.l.b16 %v374
        %v391 = vunpack.c.l.b16 %v375
        %v392 = vunpack.c.l.b16 %v376
        %v393 = vunpack.c.l.b16 %v377
        %v394 = vunpack.c.l.b16 %v378
        %v395 = vunpack.c.l.b16 %v379
        %v396 = vpack.c.b16 %v389, %v388
        %v397 = vpack.c.b16 %v391, %v390
        %v398 = vpack.c.b16 %v393, %v392
        %v399 = vpack.c.b16 %v395, %v394
        %v405 = vsel %vm346, %v370, 0
        %407 = vmatprep.subr.bf16.mxu0 0
        %408 = vmatpush1.bf16.msra.mxu0 %v396
        %409 = vmatprep.subr.bf16.mxu0 0
        %410 = vmatpush1.bf16.msra.mxu0 %v397
        %411 = vmatprep.subr.bf16.mxu0 0
        %412 = vmatpush1.bf16.msra.mxu0 %v398
        %413 = vmatprep.subr.bf16.mxu0 0
        %414 = vmatpush1.bf16.msra.mxu0 %v399
        %415 = vmatprep.subr.bf16.mxu0 0
        %416 = vmatpush1.bf16.msra.mxu0 0
        %417 = vmatprep.subr.bf16.mxu0 0
        %418 = vmatpush1.bf16.msra.mxu0 0
        %419 = vmatprep.subr.bf16.mxu0 0
        %420 = vmatpush1.bf16.msra.mxu0 0
        %421 = vmatprep.subr.bf16.mxu0 0
        %422 = vmatpush1.bf16.msra.mxu0 0
        %423 = vmatprep.subr.bf16.mxu0 0
        %424 = vmatpush1.bf16.msra.mxu0 0
        %425 = vmatprep.subr.bf16.mxu0 0
        %426 = vmatpush1.bf16.msra.mxu0 0
        %427 = vmatprep.subr.bf16.mxu0 0
        %428 = vmatpush1.bf16.msra.mxu0 0
        %429 = vmatprep.subr.bf16.mxu0 0
        %430 = vmatpush1.bf16.msra.mxu0 0
        %431 = vmatprep.subr.bf16.mxu0 0
        %432 = vmatpush1.bf16.msra.mxu0 0
        %433 = vmatprep.subr.bf16.mxu0 0
        %434 = vmatpush1.bf16.msra.mxu0 0
        %435 = vmatprep.subr.bf16.mxu0 0
        %436 = vmatpush1.bf16.msra.mxu0 0
        %437 = vmatprep.subr.bf16.mxu0 0
        %438 = vmatpush1.bf16.msra.mxu0 0
        %439 = vmatprep.mubr.bf16.mxu0 0
        %440 = vmatmul.mubr.bf16.gmra.mrb[0].mxu0 %v405
        %v441 = vpop.f32.mrb[0].mxu0
        %v442 = vadd.f32 0.0, %v441
        %v443 = vpop.f32.mrb[0].mxu0
        %v444 = vpop.f32.mrb[0].mxu0
        %v445 = vadd.f32 0.0, %v444
        %v446 = vpop.f32.mrb[0].mxu0
        %447 = vdwg.mxu0
        %vm448 = vcmask 31744
        %v449 = vsel %vm448, %v442, -inf
        %450 = vmax.xlane.f32.xlu0 %v449
        %v451 = vpop.xlane.xlu0 %450
        %v452 = vsel %vm448, %v445, -inf
        %453 = vmax.xlane.f32.xlu0 %v452
        %v454 = vpop.xlane.xlu0 %453
        %v455 = vsub.f32 %v442, %v451
        %v456 = vsub.f32 %v445, %v454
        %v457 = vmul.f32 %v455, 1.442695
        %v458 = vpow.pop %v457
        %v459 = vmul.f32 %v456, 1.442695
        %v460 = vpow.pop %v459
        %v461 = vsel %vm448, %v458, 0.0
        %462 = vadd.xlane.f32.xlu0 %v461
        %v463 = vpop.xlane.xlu0 %462
        %v464 = vsel %vm448, %v460, 0.0
        %465 = vadd.xlane.f32.xlu0 %v464
        %v466 = vpop.xlane.xlu0 %465
        %v467 = vrcp.pop %v463
        %v468 = vmul.f32 %v458, %v467
        %v469 = vrcp.pop %v466
        %v470 = vmul.f32 %v460, %v469
        %v471 = vlaneseq
        %v472 = vand.u32 %v471, 127
        %v473 = vsel %vm448, %v468, -inf
        %474 = vmax.xlane.f32.xlu0 %v473
        %v475 = vpop.xlane.xlu0 %474
        %v476 = vsel %vm448, %v470, -inf
        %477 = vmax.xlane.f32.xlu0 %v476
        %v478 = vpop.xlane.xlu0 %477
        %vm479 = vcmp.ge.f32.partialorder %v468, %v475
        %vm480 = vcmp.ge.f32.partialorder %v470, %v478
        %v481 = vsel %vm479, %v472, 4
        %v482 = vsel %vm480, %v472, 4
        %v483 = vsel %vm448, %v481, 2147483647
        %v484 = vand.u32 %v483, 65535
        %v485 = vshra.s32 %v483, 16
        %v486 = vcvt.s32.f32 %v484
        %v487 = vcvt.s32.f32 %v485
        %488 = vmin.xlane.f32.xlu0 %v487
        %v489 = vpop.xlane.xlu0 %488
        %vm490 = vcmp.eq.f32.partialorder %v487, %v489
        %v491 = vsel %vm490, %v486, inf
        %492 = vmin.xlane.f32.xlu0 %v491
        %v493 = vpop.xlane.xlu0 %492
        %v494 = vcvt.f32.s32 %v493
        %v495 = vcvt.f32.s32 %v489
        %v496 = vshll.u32 %v495, 16
        %v497 = vadd.s32 %v496, %v494
        %v498 = vsel %vm448, %v482, 2147483647
        %v499 = vand.u32 %v498, 65535
        %v500 = vshra.s32 %v498, 16
        %v501 = vcvt.s32.f32 %v499
        %v502 = vcvt.s32.f32 %v500
        %503 = vmin.xlane.f32.xlu0 %v502
        %v504 = vpop.xlane.xlu0 %503
        %vm505 = vcmp.eq.f32.partialorder %v502, %v504
        %v506 = vsel %vm505, %v501, inf
        %507 = vmin.xlane.f32.xlu0 %v506
        %v508 = vpop.xlane.xlu0 %507
        %v509 = vcvt.f32.s32 %v508
        %v510 = vcvt.f32.s32 %v504
        %v511 = vshll.u32 %v510, 16
        %v512 = vadd.s32 %v511, %v509
        %vm513 = vcmp.eq.s32.totalorder %v472, %v497
        %vm514 = vcmp.eq.s32.totalorder %v472, %v512
        %v515 = vsel %vm513, %v468, 0.0
        %v516 = vsel %vm514, %v470, 0.0
        %v517 = vadd.f32 %v515, 0.0
        %v518 = vadd.f32 %v516, 0.0
        %v519 = vsel %vm513, -1e+30, %v468
        %v520 = vsel %vm514, -1e+30, %v470
        %v521 = vsel %vm448, %v519, -inf
        %522 = vmax.xlane.f32.xlu0 %v521
        %v523 = vpop.xlane.xlu0 %522
        %v524 = vsel %vm448, %v520, -inf
        %525 = vmax.xlane.f32.xlu0 %v524
        %v526 = vpop.xlane.xlu0 %525
        %vm527 = vcmp.ge.f32.partialorder %v519, %v523
        %vm528 = vcmp.ge.f32.partialorder %v520, %v526
        %v529 = vsel %vm527, %v472, 4
        %v530 = vsel %vm528, %v472, 4
        %v531 = vsel %vm448, %v529, 2147483647
        %v532 = vand.u32 %v531, 65535
        %v533 = vshra.s32 %v531, 16
        %v534 = vcvt.s32.f32 %v532
        %v535 = vcvt.s32.f32 %v533
        %536 = vmin.xlane.f32.xlu0 %v535
        %v537 = vpop.xlane.xlu0 %536
        %vm538 = vcmp.eq.f32.partialorder %v535, %v537
        %v539 = vsel %vm538, %v534, inf
        %540 = vmin.xlane.f32.xlu0 %v539
        %v541 = vpop.xlane.xlu0 %540
        %v542 = vcvt.f32.s32 %v541
        %v543 = vcvt.f32.s32 %v537
        %v544 = vshll.u32 %v543, 16
        %v545 = vadd.s32 %v544, %v542
        %v546 = vsel %vm448, %v530, 2147483647
        %v547 = vand.u32 %v546, 65535
        %v548 = vshra.s32 %v546, 16
        %v549 = vcvt.s32.f32 %v547
        %v550 = vcvt.s32.f32 %v548
        %551 = vmin.xlane.f32.xlu0 %v550
        %v552 = vpop.xlane.xlu0 %551
        %vm553 = vcmp.eq.f32.partialorder %v550, %v552
        %v554 = vsel %vm553, %v549, inf
        %555 = vmin.xlane.f32.xlu0 %v554
        %v556 = vpop.xlane.xlu0 %555
        %v557 = vcvt.f32.s32 %v556
        %v558 = vcvt.f32.s32 %v552
        %v559 = vshll.u32 %v558, 16
        %v560 = vadd.s32 %v559, %v557
        %vm561 = vcmp.eq.s32.totalorder %v472, %v545
        %vm562 = vcmp.eq.s32.totalorder %v472, %v560
        %v563 = vsel %vm561, %v468, 0.0
        %v564 = vsel %vm562, %v470, 0.0
        %v565 = vadd.f32 %v517, %v563
        %v566 = vadd.f32 %v518, %v564
        %567 = vst.msk [vmem:[#allocation3] sm:$0xff] %vm448, %v565
        %568 = vst.msk [vmem:[#allocation3 + $0x8] sm:$0xff] %vm448, %v566
        %v569 = vld [vmem:[%s3] sm:$0xf]
        %v570 = vld [vmem:[%s3 + $0x4] sm:$0xf]
        %v571 = vld [vmem:[%s3 + $0x8] sm:$0xf]
        %v572 = vld [vmem:[%s3 + $0xc] sm:$0xf]
        %v573 = vld [vmem:[%s3 + $0x10] sm:$0xf]
        %v574 = vld [vmem:[%s3 + $0x14] sm:$0xf]
        %v575 = vld [vmem:[%s3 + $0x18] sm:$0xf]
        %v576 = vld [vmem:[%s3 + $0x1c] sm:$0xf]
        %v585 = vunpack.c.l.b16 %v569
        %v586 = vunpack.c.l.b16 %v570
        %v587 = vunpack.c.l.b16 %v571
        %v588 = vunpack.c.l.b16 %v572
        %v589 = vunpack.c.l.b16 %v573
        %v590 = vunpack.c.l.b16 %v574
        %v591 = vunpack.c.l.b16 %v575
        %v592 = vunpack.c.l.b16 %v576
        %v593 = vpack.c.b16 %v586, %v585
        %v594 = vpack.c.b16 %v588, %v587
        %v595 = vpack.c.b16 %v590, %v589
        %v596 = vpack.c.b16 %v592, %v591
        %601 = vmatprep.subr.bf16.mxu0 0
        %602 = vmatpush1.bf16.msra.mxu0 %v593
        %603 = vmatprep.subr.bf16.mxu0 0
        %604 = vmatpush1.bf16.msra.mxu0 %v594
        %605 = vmatprep.subr.bf16.mxu0 0
        %606 = vmatpush1.bf16.msra.mxu0 %v595
        %607 = vmatprep.subr.bf16.mxu0 0
        %608 = vmatpush1.bf16.msra.mxu0 %v596
        %609 = vmatprep.subr.bf16.mxu0 0
        %610 = vmatpush1.bf16.msra.mxu0 0
        %611 = vmatprep.subr.bf16.mxu0 0
        %612 = vmatpush1.bf16.msra.mxu0 0
        %613 = vmatprep.subr.bf16.mxu0 0
        %614 = vmatpush1.bf16.msra.mxu0 0
        %615 = vmatprep.subr.bf16.mxu0 0
        %616 = vmatpush1.bf16.msra.mxu0 0
        %617 = vmatprep.subr.bf16.mxu0 0
        %618 = vmatpush1.bf16.msra.mxu0 0
        %619 = vmatprep.subr.bf16.mxu0 0
        %620 = vmatpush1.bf16.msra.mxu0 0
        %621 = vmatprep.subr.bf16.mxu0 0
        %622 = vmatpush1.bf16.msra.mxu0 0
        %623 = vmatprep.subr.bf16.mxu0 0
        %624 = vmatpush1.bf16.msra.mxu0 0
        %625 = vmatprep.subr.bf16.mxu0 0
        %626 = vmatpush1.bf16.msra.mxu0 0
        %627 = vmatprep.subr.bf16.mxu0 0
        %628 = vmatpush1.bf16.msra.mxu0 0
        %629 = vmatprep.subr.bf16.mxu0 0
        %630 = vmatpush1.bf16.msra.mxu0 0
        %631 = vmatprep.subr.bf16.mxu0 0
        %632 = vmatpush1.bf16.msra.mxu0 0
        %633 = vmatprep.mubr.bf16.mxu0 0
        %634 = vmatmul.mubr.bf16.gmra.mrb[0].mxu0 %v405
        %v635 = vpop.f32.mrb[0].mxu0
        %v636 = vadd.f32 0.0, %v635
        %v637 = vpop.f32.mrb[0].mxu0
        %v638 = vpop.f32.mrb[0].mxu0
        %v639 = vadd.f32 0.0, %v638
        %v640 = vpop.f32.mrb[0].mxu0
        %641 = vdwg.mxu0
        %v642 = vxor.u32 %v636, 2147483648
        %v643 = vxor.u32 %v639, 2147483648
        %v644 = vmul.f32 %v642, 1.442695
        %v645 = vpow.pop %v644
        %v646 = vmul.f32 %v643, 1.442695
        %v647 = vpow.pop %v646
        %v648 = vadd.f32 %v645, 1.0
        %v649 = vadd.f32 %v647, 1.0
        %v650 = vrcp.pop %v648
        %v651 = vmul.f32 1.0, %v650
        %v652 = vrcp.pop %v649
        %v653 = vmul.f32 1.0, %v652
        %v654 = vmul.f32 %v636, %v651
        %v655 = vmul.f32 %v639, %v653
        %658 = vrot.lane.b32.xlu0 %v636, 96
        %v659 = vpop.permute.xlu0 %658
        %660 = vrot.lane.b32.xlu0 %v639, 96
        %v661 = vpop.permute.xlu0 %660
        %v664 = vmul.f32 %v654, %v659
        %v665 = vmul.f32 %v655, %v661
        %v666 = vpack.c.bf16 %v665, %v664
        %v667 = vld [vmem:[%s4] sm:$0xf]
        %v668 = vld [vmem:[%s4 + $0x4] sm:$0xf]
        %v669 = vld [vmem:[%s4 + $0x8] sm:$0xf]
        %v670 = vld [vmem:[%s4 + $0xc] sm:$0xf]
        %v675 = vunpack.c.l.b16 %v667
        %v676 = vunpack.c.l.b16 %v668
        %v677 = vunpack.c.l.b16 %v669
        %v678 = vunpack.c.l.b16 %v670
        %v679 = vpack.c.b16 %v676, %v675
        %v680 = vpack.c.b16 %v678, %v677
        %vm683 = vcmask 261120
        %v685 = vsel %vm683, %v666, 0
        %687 = vmatprep.subr.bf16.mxu0 0
        %688 = vmatpush1.bf16.msra.mxu0 %v679
        %689 = vmatprep.subr.bf16.mxu0 0
        %690 = vmatpush1.bf16.msra.mxu0 %v680
        %691 = vmatprep.subr.bf16.mxu0 0
        %692 = vmatpush1.bf16.msra.mxu0 0
        %693 = vmatprep.subr.bf16.mxu0 0
        %694 = vmatpush1.bf16.msra.mxu0 0
        %695 = vmatprep.subr.bf16.mxu0 0
        %696 = vmatpush1.bf16.msra.mxu0 0
        %697 = vmatprep.subr.bf16.mxu0 0
        %698 = vmatpush1.bf16.msra.mxu0 0
        %699 = vmatprep.subr.bf16.mxu0 0
        %700 = vmatpush1.bf16.msra.mxu0 0
        %701 = vmatprep.subr.bf16.mxu0 0
        %702 = vmatpush1.bf16.msra.mxu0 0
        %703 = vmatprep.subr.bf16.mxu0 0
        %704 = vmatpush1.bf16.msra.mxu0 0
        %705 = vmatprep.subr.bf16.mxu0 0
        %706 = vmatpush1.bf16.msra.mxu0 0
        %707 = vmatprep.subr.bf16.mxu0 0
        %708 = vmatpush1.bf16.msra.mxu0 0
        %709 = vmatprep.subr.bf16.mxu0 0
        %710 = vmatpush1.bf16.msra.mxu0 0
        %711 = vmatprep.subr.bf16.mxu0 0
        %712 = vmatpush1.bf16.msra.mxu0 0
        %713 = vmatprep.subr.bf16.mxu0 0
        %714 = vmatpush1.bf16.msra.mxu0 0
        %715 = vmatprep.subr.bf16.mxu0 0
        %716 = vmatpush1.bf16.msra.mxu0 0
        %717 = vmatprep.subr.bf16.mxu0 0
        %718 = vmatpush1.bf16.msra.mxu0 0
        %719 = vmatprep.mubr.bf16.mxu0 0
        %720 = vmatmul.mubr.bf16.gmra.mrb[0].mxu0 %v685
        %v721 = vpop.f32.mrb[0].mxu0
        %v722 = vadd.f32 0.0, %v721
        %v723 = vpop.f32.mrb[0].mxu0
        %v724 = vpop.f32.mrb[0].mxu0
        %v725 = vadd.f32 0.0, %v724
        %v726 = vpop.f32.mrb[0].mxu0
        %727 = vdwg.mxu0
        %v728 = vadd.f32 %v341, %v722
        %v729 = vadd.f32 %v342, %v725
        %730 = vst.msk [vmem:[#allocation4] sm:$0xff] %vm346, %v728
        %731 = vst.msk [vmem:[#allocation4 + $0x8] sm:$0xff] %vm346, %v729
      $region52: #{model_forward.12} parent=47 // pred_fallthru
        _
      %v732 = vld [vmem:[#allocation2] sm:$0xff]
      %v733 = vld [vmem:[%s322] sm:$0xf]
      %v734 = vld [vmem:[%s322 + $0x4] sm:$0xf]
      %v735 = vld [vmem:[%s322 + $0x8] sm:$0xf]
      %v736 = vld [vmem:[%s322 + $0xc] sm:$0xf]
      %v737 = vld [vmem:[%s322 + $0x10] sm:$0xf]
      %v738 = vld [vmem:[%s322 + $0x14] sm:$0xf]
      %v739 = vld [vmem:[%s322 + $0x18] sm:$0xf]
      %v740 = vld [vmem:[%s322 + $0x1c] sm:$0xf]
      %v749 = vunpack.c.l.b16 %v733
      %v750 = vunpack.c.l.b16 %v734
      %v751 = vunpack.c.l.b16 %v735
      %v752 = vunpack.c.l.b16 %v736
      %v753 = vunpack.c.l.b16 %v737
      %v754 = vunpack.c.l.b16 %v738
      %v755 = vunpack.c.l.b16 %v739
      %v756 = vunpack.c.l.b16 %v740
      %v757 = vpack.c.b16 %v750, %v749
      %v758 = vpack.c.b16 %v752, %v751
      %v759 = vpack.c.b16 %v754, %v753
      %v760 = vpack.c.b16 %v756, %v755
      %vm765 = vcmask 523264
      %v767 = vsel %vm765, %v732, 0
      %769 = vmatprep.subr.bf16.mxu0 0
      %770 = vmatpush1.bf16.msra.mxu0 %v757
      %771 = vmatprep.subr.bf16.mxu0 0
      %772 = vmatpush1.bf16.msra.mxu0 %v758
      %773 = vmatprep.subr.bf16.mxu0 0
      %774 = vmatpush1.bf16.msra.mxu0 %v759
      %775 = vmatprep.subr.bf16.mxu0 0
      %776 = vmatpush1.bf16.msra.mxu0 %v760
      %777 = vmatprep.subr.bf16.mxu0 0
      %778 = vmatpush1.bf16.msra.mxu0 0
      %779 = vmatprep.subr.bf16.mxu0 0
      %780 = vmatpush1.bf16.msra.mxu0 0
      %781 = vmatprep.subr.bf16.mxu0 0
      %782 = vmatpush1.bf16.msra.mxu0 0
      %783 = vmatprep.subr.bf16.mxu0 0
      %784 = vmatpush1.bf16.msra.mxu0 0
      %785 = vmatprep.subr.bf16.mxu0 0
      %786 = vmatpush1.bf16.msra.mxu0 0
      %787 = vmatprep.subr.bf16.mxu0 0
      %788 = vmatpush1.bf16.msra.mxu0 0
      %789 = vmatprep.subr.bf16.mxu0 0
      %790 = vmatpush1.bf16.msra.mxu0 0
      %791 = vmatprep.subr.bf16.mxu0 0
      %792 = vmatpush1.bf16.msra.mxu0 0
      %793 = vmatprep.subr.bf16.mxu0 0
      %794 = vmatpush1.bf16.msra.mxu0 0
      %795 = vmatprep.subr.bf16.mxu0 0
      %796 = vmatpush1.bf16.msra.mxu0 0
      %797 = vmatprep.subr.bf16.mxu0 0
      %798 = vmatpush1.bf16.msra.mxu0 0
      %799 = vmatprep.subr.bf16.mxu0 0
      %800 = vmatpush1.bf16.msra.mxu0 0
      %801 = vmatprep.mubr.bf16.mxu0 0
      %802 = vmatmul.mubr.bf16.gmra.mrb[0].mxu0 %v767
      %v803 = vpop.f32.mrb[0].mxu0
      %v804 = vadd.f32 0.0, %v803
      %v805 = vpop.f32.mrb[0].mxu0
      %v806 = vpop.f32.mrb[0].mxu0
      %v807 = vadd.f32 0.0, %v806
      %v808 = vpop.f32.mrb[0].mxu0
      %809 = vdwg.mxu0
      %v810 = vxor.u32 %v804, 2147483648
      %v811 = vxor.u32 %v807, 2147483648
      %v812 = vmul.f32 %v810, 1.442695
      %v813 = vpow.pop %v812
      %v814 = vmul.f32 %v811, 1.442695
      %v815 = vpow.pop %v814
      %v816 = vadd.f32 %v813, 1.0
      %v817 = vadd.f32 %v815, 1.0
      %v818 = vrcp.pop %v816
      %v819 = vmul.f32 1.0, %v818
      %v820 = vrcp.pop %v817
      %v821 = vmul.f32 1.0, %v820
      %v822 = vmul.f32 %v804, %v819
      %v823 = vmul.f32 %v807, %v821
      %826 = vrot.lane.b32.xlu0 %v804, 96
      %v827 = vpop.permute.xlu0 %826
      %828 = vrot.lane.b32.xlu0 %v807, 96
      %v829 = vpop.permute.xlu0 %828
      %v832 = vmul.f32 %v822, %v827
      %v833 = vmul.f32 %v823, %v829
      %v834 = vpack.c.bf16 %v833, %v832
      %v835 = vld [vmem:[%s327] sm:$0xf]
      %v836 = vld [vmem:[%s327 + $0x4] sm:$0xf]
      %v837 = vld [vmem:[%s327 + $0x8] sm:$0xf]
      %v838 = vld [vmem:[%s327 + $0xc] sm:$0xf]
      %v843 = vunpack.c.l.b16 %v835
      %v844 = vunpack.c.l.b16 %v836
      %v845 = vunpack.c.l.b16 %v837
      %v846 = vunpack.c.l.b16 %v838
      %v847 = vpack.c.b16 %v844, %v843
      %v848 = vpack.c.b16 %v846, %v845
      %vm851 = vcmask 261120
      %v853 = vsel %vm851, %v834, 0
      %855 = vmatprep.subr.bf16.mxu0 0
      %856 = vmatpush1.bf16.msra.mxu0 %v847
      %857 = vmatprep.subr.bf16.mxu0 0
      %858 = vmatpush1.bf16.msra.mxu0 %v848
      %859 = vmatprep.subr.bf16.mxu0 0
      %860 = vmatpush1.bf16.msra.mxu0 0
      %861 = vmatprep.subr.bf16.mxu0 0
      %862 = vmatpush1.bf16.msra.mxu0 0
      %863 = vmatprep.subr.bf16.mxu0 0
      %864 = vmatpush1.bf16.msra.mxu0 0
      %865 = vmatprep.subr.bf16.mxu0 0
      %866 = vmatpush1.bf16.msra.mxu0 0
      %867 = vmatprep.subr.bf16.mxu0 0
      %868 = vmatpush1.bf16.msra.mxu0 0
      %869 = vmatprep.subr.bf16.mxu0 0
      %870 = vmatpush1.bf16.msra.mxu0 0
      %871 = vmatprep.subr.bf16.mxu0 0
      %872 = vmatpush1.bf16.msra.mxu0 0
      %873 = vmatprep.subr.bf16.mxu0 0
      %874 = vmatpush1.bf16.msra.mxu0 0
      %875 = vmatprep.subr.bf16.mxu0 0
      %876 = vmatpush1.bf16.msra.mxu0 0
      %877 = vmatprep.subr.bf16.mxu0 0
      %878 = vmatpush1.bf16.msra.mxu0 0
      %879 = vmatprep.subr.bf16.mxu0 0
      %880 = vmatpush1.bf16.msra.mxu0 0
      %881 = vmatprep.subr.bf16.mxu0 0
      %882 = vmatpush1.bf16.msra.mxu0 0
      %883 = vmatprep.subr.bf16.mxu0 0
      %884 = vmatpush1.bf16.msra.mxu0 0
      %885 = vmatprep.subr.bf16.mxu0 0
      %886 = vmatpush1.bf16.msra.mxu0 0
      %887 = vmatprep.mubr.bf16.mxu0 0
      %888 = vmatmul.mubr.bf16.gmra.mrb[0].mxu0 %v853
      %v889 = vpop.f32.mrb[0].mxu0
      %v890 = vadd.f32 0.0, %v889
      %v891 = vpop.f32.mrb[0].mxu0
      %v892 = vpop.f32.mrb[0].mxu0
      %v893 = vadd.f32 0.0, %v892
      %v894 = vpop.f32.mrb[0].mxu0
      %895 = vdwg.mxu0
      %v896 = vlaneseq
      %v897 = vand.u32 %v896, 127
      %v898 = vstv %s23
      %vm899 = vcmp.eq.s32.totalorder %v897, %v898
      %v900 = vld [vmem:[#allocation3] sm:$0xff]
      %v901 = vld [vmem:[#allocation3 + $0x8] sm:$0xff]
      %v902 = vsel %vm899, %v900, 0.0
      %v903 = vsel %vm899, %v901, 0.0
      %vm904 = vcmask 31744
      %v905 = vsel %vm904, %v902, 0.0
      %906 = vadd.xlane.f32.xlu0 %v905
      %v907 = vpop.xlane.xlu0 %906
      %v908 = vsel %vm904, %v903, 0.0
      %909 = vadd.xlane.f32.xlu0 %v908
      %v910 = vpop.xlane.xlu0 %909
      %v911 = vld [vmem:[#allocation4] sm:$0xff]
      %v912 = vld [vmem:[#allocation4 + $0x8] sm:$0xff]
      %v913 = vmul.f32 %v907, %v890
      %v914 = vmul.f32 %v910, %v893
      %v915 = vadd.f32 %v911, %v913
      %v916 = vadd.f32 %v912, %v914
      %917 = vst.msk [vmem:[#allocation4] sm:$0xff] %vm765, %v915
      %918 = vst.msk [vmem:[#allocation4 + $0x8] sm:$0xff] %vm765, %v916
      %p919 = scmp.eq.s32.totalorder %s23, 3
      // Predicated region
      $region53: #{model_forward.12} parent=47 // pred_check
        %p920 = pneg %p919
      $region54: #{model_forward.12} parent=47 // pred_check_branch
        %922 = sbr.rel (%p920) target = $region56
      $region55: #{model_forward.12} parent=47 // pred_region
        %v923 = vld [vmem:[#allocation4] sm:$0xff]
        %v924 = vld [vmem:[#allocation4 + $0x8] sm:$0xff]
        %v925 = vpack.c.bf16 %v924, %v923
        %v927 = vunpack.c.l.b16 %v925
        %v928 = vunpack.c.h.b16 %v925
        %v929 = vpack.c.b16 %v927, %v927
        %v930 = vpack.c.b16 %v928, %v928
        %vm933 = vcmask 519168
        %934 = vst.msk [vmem:[%s332] sm:$0xf] %vm933, %v929
        %935 = vst.msk [vmem:[%s332 + $0x4] sm:$0xf] %vm933, %v930
      $region56: #{model_forward.12} parent=47 // pred_fallthru
        _
      %s936 = smul.u32 2, %s22
      %p937 = scmp.lt.s32.totalorder %s936, 1
      %s938 = scalar_select %p937, %s936, 1
      %s939 = smul.addr %s938, 4
      %s940 = scalar_lea.vmem %s7, %s939
      // Predicated region
      $region57: #{model_forward.12} parent=47 // pred_check
        %p941 = pneg %p210
      $region58: #{model_forward.12} parent=47 // pred_check_branch
        %943 = sbr.rel (%p941) target = $region60
      $region59: #{model_forward.12} parent=47 // pred_region
        %s944 = smul.u32 2, %s22
      $region60: #{model_forward.12} parent=47 // pred_fallthru
        _
      // Predicated region
      $region61: #{model_forward.12} parent=47 // pred_check
        %p945 = pneg %p210
      $region62: #{model_forward.12} parent=47 // pred_check_branch
        %947 = sbr.rel (%p945) target = $region64
      $region63: #{model_forward.12} parent=47 // pred_region
        %s948 = smul.u32 2, %s22
        %p949 = scmp.lt.s32.totalorder %s948, 1
        %s950 = scalar_select %p949, %s948, 1
        %s951 = smul.addr %s950, 4
        %s952 = scalar_lea.vmem %s7, %s951
      $region64: #{model_forward.12} parent=47 // pred_fallthru
        _
    $region48: #{model_forward.12} parent=5 // pred_fallthru
      _
    %p953 = scmp.le.s32.totalorder 2, %s13
    // Predicated region
    $region65: #{model_forward.12} parent=5 // pred_check
      %p954 = pneg %p953
    $region66: #{model_forward.12} parent=5 // pred_check_branch
      %956 = sbr.rel (%p954) target = $region68
    $region67: #{model_forward.12} parent=5 // pred_region
      %s957 = ssub.s32 %s13, 2
    $region68: #{model_forward.12} parent=5 // pred_fallthru
      _
  $region6: #{model_forward.12} parent=0 // loop_footer
    %s17 = sadd.s32 1, %s13
  $region7: #{model_forward.12} parent=0 // loop_footer_branch
    %12 = sbr.rel target = $region3
  $region8: #{model_forward.12} parent=0 // loop_exit
    _

// kernel: model_forward.8
$region0: #{model_forward.8}
  #allocation0 [shape = 'u32[]', space=smem, size = 0x4, offset = 0x4, fixed_abs, tag = 'smem constant byte address 0x4 - core index']
  #allocation1 [shape = 'u32[144,128]{1,0:T(1,128)}', space=vmem, size = 0x12000, scoped, tag = 'internal scratch']
  #allocation2 [shape = 'f32[4,8,1]{2,1,0:T(8,128)}', space=vmem, size = 0x4000, scoped, tag = 'scratch operand']
  #allocation3 [shape = 'f32[4,8,1]{2,1,0:T(8,128)}', space=vmem, size = 0x4000, scoped, tag = 'scratch operand']
  #allocation4 [shape = 'f32[4,8,16]{2,1,0:T(8,128)}', space=vmem, size = 0x4000, scoped, tag = 'scratch operand']
  %s0 = inlined_call_operand.vmem [shape: bf16[2,8,64], index: 0, kind: input, shape index: {}]
  %s1 = inlined_call_operand.vmem [shape: bf16[2,4,8,24], index: 1, kind: input, shape index: {}]
  %s2 = inlined_call_operand.vmem [shape: bf16[2,4,8,16], index: 2, kind: input, shape index: {}]
  %s3 = inlined_call_operand.vmem [shape: bf16[2,4,8,16], index: 3, kind: input, shape index: {}]
  %s4 = inlined_call_operand.vmem [shape: bf16[2,8,8], index: 4, kind: input, shape index: {}]
  %s5 = inlined_call_operand.vmem [shape: f32[2,8,8], index: 5, kind: input, shape index: {}, may-alias: {5,7}]
  %s6 = inlined_call_operand.vmem [shape: f32[2,8,8], index: 6, kind: input, shape index: {}, may-alias: {6,8}]
  %s7 = inlined_call_operand.vmem [shape: f32[2,8,8], index: 7, kind: input, shape index: {}, may-alias: {5,7}]
  %s8 = inlined_call_operand.vmem [shape: f32[2,8,8], index: 8, kind: input, shape index: {}, may-alias: {6,8}]
  %s9 = inlined_call_operand.vmem [shape: f32[2,1,8], index: 9, kind: input, shape index: {}]
  %s10 = inlined_call_operand.vmem [shape: bf16[4,16,64], index: 10, kind: input, shape index: {}]
  %s11 = inlined_call_operand.vmem [shape: bf16[2,8,64], index: 11, kind: output, shape index: {}]
  %s12 = sld [smem:[#allocation0]]
  $region85: #{model_forward.8} parent=0
    _
  %s14 = ssub.s32 1, %s12
  %s15 = scalar_select 0, %s14, %s12
  loop: start=0, step=1, limit=4
  $region2: #{model_forward.8} parent=0 // loop_pre_header
    _
  $region3: #{model_forward.8} parent=0 // loop_header
    %s17 = sphi 0, %s21
    %p18 = scmp.ge.s32.totalorder %s17, 4
    %s24 = sphi 0, %s43
    %s25 = sphi 0, %s39
    %s26 = sphi 0, %s35
    %s27 = sphi 0, %s24
    %s28 = sphi 0, %s25
    %s29 = sphi 0, %s26
    %s30 = sphi 0, %s27
    %s31 = sphi 0, %s28
    %s32 = sphi 0, %s29
    %s48 = sphi 0, %s50
    %s51 = sphi 0, %s48
    %s52 = sphi 0, %s51
    %s68 = sphi 0, %s52
    %s76 = sphi 0, %s78
    %s79 = sphi 0, %s76
    %s80 = sphi 0, %s79
    %s96 = sphi 0, %s80
    %s104 = sphi 0, %s106
    %s107 = sphi 0, %s104
    %s108 = sphi 0, %s107
    %s124 = sphi 0, %s108
    %s132 = sphi 0, %s134
    %s135 = sphi 0, %s132
    %s136 = sphi 0, %s135
    %s152 = sphi 0, %s136
    %s160 = sphi 0, %s162
    %s163 = sphi 0, %s160
    %s164 = sphi 0, %s163
    %s180 = sphi 0, %s164
    %s188 = sphi 0, %s190
    %s191 = sphi 0, %s188
    %s192 = sphi 0, %s191
    %s208 = sphi 0, %s192
    %s216 = sphi 0, %s218
    %s219 = sphi 0, %s216
    %s220 = sphi 0, %s219
    %s236 = sphi 0, %s220
    %s244 = sphi 0, %s246
    %s247 = sphi 0, %s244
    %s248 = sphi 0, %s247
    %s264 = sphi 0, %s248
    %s272 = sphi 0, %s274
    %s275 = sphi 0, %s272
    %s276 = sphi 0, %s275
    %s292 = sphi 0, %s276
    %s300 = sphi 0, %s302
    %s303 = sphi 0, %s300
    %s304 = sphi 0, %s303
    %s320 = sphi 0, %s304
    %s324 = sphi 0, %s324
    %s326 = sphi 0, %s324
    %s327 = sphi 0, %s326
    %s341 = sphi 0, %s327
    %s349 = sphi 0, %s351
    %s352 = sphi 0, %s349
    %s353 = sphi 0, %s352
    %s369 = sphi 0, %s353
  $region4: #{model_forward.8} parent=0 // loop_header_branch
    %20 = sbr.rel (%p18) target = $region8
  $region5: #{model_forward.8} parent=0 // loop_body
    %s22 = ssub.s32 %s17, 1
    %s23 = ssub.s32 %s17, 2
    %s33 = sadd.s32 1, %s26
    %p34 = scmp.ge.s32.totalorder %s33, 1
    %s35 = scalar_select %p34, 0, %s33
    %s36 = sadd.s32 1, %s25
    %s37 = scalar_select %p34, %s36, %s25
    %p38 = scmp.ge.s32.totalorder %s37, 1
    %s39 = scalar_select %p38, 0, %s37
    %s40 = sadd.s32 1, %s24
    %s41 = scalar_select %p38, %s40, %s24
    %p42 = scmp.ge.s32.totalorder %s41, 2
    %s43 = scalar_select %p42, 0, %s41
    %s44 = ssub.s32 %s24, %s43
    %s45 = ssub.s32 %s25, %s39
    %s46 = sor.u32 %s44, %s45
    %p47 = scmp.eq.s32.totalorder %s46, 0
    %s49 = sadd.s32 %s48, 1
    %s50 = scalar_select %p47, %s48, %s49
    %p53 = pneg %p47
    %p54 = scmp.eq.s32.totalorder %s17, 1
    %p55 = por %p53, %p54
    %p56 = scmp.ne.s32.totalorder %s48, %s51
    %p57 = scmp.eq.s32.totalorder %s17, 0
    %p58 = por %p56, %p57
    %p59 = scmp.ne.s32.totalorder %s48, %s51
    %p60 = scmp.eq.s32.totalorder %s22, 1
    %p61 = por %p59, %p60
    %p62 = scmp.ne.s32.totalorder %s51, %s52
    %p63 = scmp.eq.s32.totalorder %s22, 0
    %p64 = por %p62, %p63
    %p65 = scmp.ne.s32.totalorder %s51, %s52
    %p66 = scmp.eq.s32.totalorder %s23, 1
    %p67 = por %p65, %p66
    %p69 = scmp.ne.s32.totalorder %s52, %s68
    %p70 = scmp.eq.s32.totalorder %s23, 0
    %p71 = por %p69, %p70
    %s72 = ssub.s32 %s24, %s43
    %s73 = ssub.s32 %s25, %s39
    %s74 = sor.u32 %s72, %s73
    %p75 = scmp.eq.s32.totalorder %s74, 0
    %s77 = sadd.s32 %s76, 1
    %s78 = scalar_select %p75, %s76, %s77
    %p81 = pneg %p75
    %p82 = scmp.eq.s32.totalorder %s17, 1
    %p83 = por %p81, %p82
    %p84 = scmp.ne.s32.totalorder %s76, %s79
    %p85 = scmp.eq.s32.totalorder %s17, 0
    %p86 = por %p84, %p85
    %p87 = scmp.ne.s32.totalorder %s76, %s79
    %p88 = scmp.eq.s32.totalorder %s22, 1
    %p89 = por %p87, %p88
    %p90 = scmp.ne.s32.totalorder %s79, %s80
    %p91 = scmp.eq.s32.totalorder %s22, 0
    %p92 = por %p90, %p91
    %p93 = scmp.ne.s32.totalorder %s79, %s80
    %p94 = scmp.eq.s32.totalorder %s23, 1
    %p95 = por %p93, %p94
    %p97 = scmp.ne.s32.totalorder %s80, %s96
    %p98 = scmp.eq.s32.totalorder %s23, 0
    %p99 = por %p97, %p98
    %s100 = ssub.s32 %s24, %s43
    %s101 = ssub.s32 %s26, %s35
    %s102 = sor.u32 %s100, %s101
    %p103 = scmp.eq.s32.totalorder %s102, 0
    %s105 = sadd.s32 %s104, 1
    %s106 = scalar_select %p103, %s104, %s105
    %p109 = pneg %p103
    %p110 = scmp.eq.s32.totalorder %s17, 1
    %p111 = por %p109, %p110
    %p112 = scmp.ne.s32.totalorder %s104, %s107
    %p113 = scmp.eq.s32.totalorder %s17, 0
    %p114 = por %p112, %p113
    %p115 = scmp.ne.s32.totalorder %s104, %s107
    %p116 = scmp.eq.s32.totalorder %s22, 1
    %p117 = por %p115, %p116
    %p118 = scmp.ne.s32.totalorder %s107, %s108
    %p119 = scmp.eq.s32.totalorder %s22, 0
    %p120 = por %p118, %p119
    %p121 = scmp.ne.s32.totalorder %s107, %s108
    %p122 = scmp.eq.s32.totalorder %s23, 1
    %p123 = por %p121, %p122
    %p125 = scmp.ne.s32.totalorder %s108, %s124
    %p126 = scmp.eq.s32.totalorder %s23, 0
    %p127 = por %p125, %p126
    %s128 = ssub.s32 %s24, %s43
    %s129 = ssub.s32 %s26, %s35
    %s130 = sor.u32 %s128, %s129
    %p131 = scmp.eq.s32.totalorder %s130, 0
    %s133 = sadd.s32 %s132, 1
    %s134 = scalar_select %p131, %s132, %s133
    %p137 = pneg %p131
    %p138 = scmp.eq.s32.totalorder %s17, 1
    %p139 = por %p137, %p138
    %p140 = scmp.ne.s32.totalorder %s132, %s135
    %p141 = scmp.eq.s32.totalorder %s17, 0
    %p142 = por %p140, %p141
    %p143 = scmp.ne.s32.totalorder %s132, %s135
    %p144 = scmp.eq.s32.totalorder %s22, 1
    %p145 = por %p143, %p144
    %p146 = scmp.ne.s32.totalorder %s135, %s136
    %p147 = scmp.eq.s32.totalorder %s22, 0
    %p148 = por %p146, %p147
    %p149 = scmp.ne.s32.totalorder %s135, %s136
    %p150 = scmp.eq.s32.totalorder %s23, 1
    %p151 = por %p149, %p150
    %p153 = scmp.ne.s32.totalorder %s136, %s152
    %p154 = scmp.eq.s32.totalorder %s23, 0
    %p155 = por %p153, %p154
    %s156 = ssub.s32 %s24, %s43
    %s157 = ssub.s32 %s26, %s35
    %s158 = sor.u32 %s156, %s157
    %p159 = scmp.eq.s32.totalorder %s158, 0
    %s161 = sadd.s32 %s160, 1
    %s162 = scalar_select %p159, %s160, %s161
    %p165 = pneg %p159
    %p166 = scmp.eq.s32.totalorder %s17, 1
    %p167 = por %p165, %p166
    %p168 = scmp.ne.s32.totalorder %s160, %s163
    %p169 = scmp.eq.s32.totalorder %s17, 0
    %p170 = por %p168, %p169
    %p171 = scmp.ne.s32.totalorder %s160, %s163
    %p172 = scmp.eq.s32.totalorder %s22, 1
    %p173 = por %p171, %p172
    %p174 = scmp.ne.s32.totalorder %s163, %s164
    %p175 = scmp.eq.s32.totalorder %s22, 0
    %p176 = por %p174, %p175
    %p177 = scmp.ne.s32.totalorder %s163, %s164
    %p178 = scmp.eq.s32.totalorder %s23, 1
    %p179 = por %p177, %p178
    %p181 = scmp.ne.s32.totalorder %s164, %s180
    %p182 = scmp.eq.s32.totalorder %s23, 0
    %p183 = por %p181, %p182
    %s184 = ssub.s32 %s24, %s43
    %s185 = ssub.s32 %s25, %s39
    %s186 = sor.u32 %s184, %s185
    %p187 = scmp.eq.s32.totalorder %s186, 0
    %s189 = sadd.s32 %s188, 1
    %s190 = scalar_select %p187, %s188, %s189
    %p193 = pneg %p187
    %p194 = scmp.eq.s32.totalorder %s17, 1
    %p195 = por %p193, %p194
    %p196 = scmp.ne.s32.totalorder %s188, %s191
    %p197 = scmp.eq.s32.totalorder %s17, 0
    %p198 = por %p196, %p197
    %p199 = scmp.ne.s32.totalorder %s188, %s191
    %p200 = scmp.eq.s32.totalorder %s22, 1
    %p201 = por %p199, %p200
    %p202 = scmp.ne.s32.totalorder %s191, %s192
    %p203 = scmp.eq.s32.totalorder %s22, 0
    %p204 = por %p202, %p203
    %p205 = scmp.ne.s32.totalorder %s191, %s192
    %p206 = scmp.eq.s32.totalorder %s23, 1
    %p207 = por %p205, %p206
    %p209 = scmp.ne.s32.totalorder %s192, %s208
    %p210 = scmp.eq.s32.totalorder %s23, 0
    %p211 = por %p209, %p210
    %s212 = ssub.s32 %s24, %s43
    %s213 = ssub.s32 %s25, %s39
    %s214 = sor.u32 %s212, %s213
    %p215 = scmp.eq.s32.totalorder %s214, 0
    %s217 = sadd.s32 %s216, 1
    %s218 = scalar_select %p215, %s216, %s217
    %p221 = pneg %p215
    %p222 = scmp.eq.s32.totalorder %s17, 1
    %p223 = por %p221, %p222
    %p224 = scmp.ne.s32.totalorder %s216, %s219
    %p225 = scmp.eq.s32.totalorder %s17, 0
    %p226 = por %p224, %p225
    %p227 = scmp.ne.s32.totalorder %s216, %s219
    %p228 = scmp.eq.s32.totalorder %s22, 1
    %p229 = por %p227, %p228
    %p230 = scmp.ne.s32.totalorder %s219, %s220
    %p231 = scmp.eq.s32.totalorder %s22, 0
    %p232 = por %p230, %p231
    %p233 = scmp.ne.s32.totalorder %s219, %s220
    %p234 = scmp.eq.s32.totalorder %s23, 1
    %p235 = por %p233, %p234
    %p237 = scmp.ne.s32.totalorder %s220, %s236
    %p238 = scmp.eq.s32.totalorder %s23, 0
    %p239 = por %p237, %p238
    %s240 = ssub.s32 %s24, %s43
    %s241 = ssub.s32 %s26, %s35
    %s242 = sor.u32 %s240, %s241
    %p243 = scmp.eq.s32.totalorder %s242, 0
    %s245 = sadd.s32 %s244, 1
    %s246 = scalar_select %p243, %s244, %s245
    %p249 = pneg %p243
    %p250 = scmp.eq.s32.totalorder %s17, 1
    %p251 = por %p249, %p250
    %p252 = scmp.ne.s32.totalorder %s244, %s247
    %p253 = scmp.eq.s32.totalorder %s17, 0
    %p254 = por %p252, %p253
    %p255 = scmp.ne.s32.totalorder %s244, %s247
    %p256 = scmp.eq.s32.totalorder %s22, 1
    %p257 = por %p255, %p256
    %p258 = scmp.ne.s32.totalorder %s247, %s248
    %p259 = scmp.eq.s32.totalorder %s22, 0
    %p260 = por %p258, %p259
    %p261 = scmp.ne.s32.totalorder %s247, %s248
    %p262 = scmp.eq.s32.totalorder %s23, 1
    %p263 = por %p261, %p262
    %p265 = scmp.ne.s32.totalorder %s248, %s264
    %p266 = scmp.eq.s32.totalorder %s23, 0
    %p267 = por %p265, %p266
    %s268 = ssub.s32 %s24, %s43
    %s269 = ssub.s32 %s26, %s35
    %s270 = sor.u32 %s268, %s269
    %p271 = scmp.eq.s32.totalorder %s270, 0
    %s273 = sadd.s32 %s272, 1
    %s274 = scalar_select %p271, %s272, %s273
    %p277 = pneg %p271
    %p278 = scmp.eq.s32.totalorder %s17, 1
    %p279 = por %p277, %p278
    %p280 = scmp.ne.s32.totalorder %s272, %s275
    %p281 = scmp.eq.s32.totalorder %s17, 0
    %p282 = por %p280, %p281
    %p283 = scmp.ne.s32.totalorder %s272, %s275
    %p284 = scmp.eq.s32.totalorder %s22, 1
    %p285 = por %p283, %p284
    %p286 = scmp.ne.s32.totalorder %s275, %s276
    %p287 = scmp.eq.s32.totalorder %s22, 0
    %p288 = por %p286, %p287
    %p289 = scmp.ne.s32.totalorder %s275, %s276
    %p290 = scmp.eq.s32.totalorder %s23, 1
    %p291 = por %p289, %p290
    %p293 = scmp.ne.s32.totalorder %s276, %s292
    %p294 = scmp.eq.s32.totalorder %s23, 0
    %p295 = por %p293, %p294
    %s296 = ssub.s32 %s24, %s43
    %s297 = ssub.s32 %s26, %s35
    %s298 = sor.u32 %s296, %s297
    %p299 = scmp.eq.s32.totalorder %s298, 0
    %s301 = sadd.s32 %s300, 1
    %s302 = scalar_select %p299, %s300, %s301
    %p305 = pneg %p299
    %p306 = scmp.eq.s32.totalorder %s17, 1
    %p307 = por %p305, %p306
    %p308 = scmp.ne.s32.totalorder %s300, %s303
    %p309 = scmp.eq.s32.totalorder %s17, 0
    %p310 = por %p308, %p309
    %p311 = scmp.ne.s32.totalorder %s300, %s303
    %p312 = scmp.eq.s32.totalorder %s22, 1
    %p313 = por %p311, %p312
    %p314 = scmp.ne.s32.totalorder %s303, %s304
    %p315 = scmp.eq.s32.totalorder %s22, 0
    %p316 = por %p314, %p315
    %p317 = scmp.ne.s32.totalorder %s303, %s304
    %p318 = scmp.eq.s32.totalorder %s23, 1
    %p319 = por %p317, %p318
    %p321 = scmp.ne.s32.totalorder %s304, %s320
    %p322 = scmp.eq.s32.totalorder %s23, 0
    %p323 = por %p321, %p322
    %s325 = sadd.s32 %s324, 1
    %p328 = scmp.eq.s32.totalorder %s17, 1
    %p329 = scmp.ne.s32.totalorder %s324, %s326
    %p330 = scmp.eq.s32.totalorder %s17, 0
    %p331 = por %p329, %p330
    %p332 = scmp.ne.s32.totalorder %s324, %s326
    %p333 = scmp.eq.s32.totalorder %s22, 1
    %p334 = por %p332, %p333
    %p335 = scmp.ne.s32.totalorder %s326, %s327
    %p336 = scmp.eq.s32.totalorder %s22, 0
    %p337 = por %p335, %p336
    %p338 = scmp.ne.s32.totalorder %s326, %s327
    %p339 = scmp.eq.s32.totalorder %s23, 1
    %p340 = por %p338, %p339
    %p342 = scmp.ne.s32.totalorder %s327, %s341
    %p343 = scmp.eq.s32.totalorder %s23, 0
    %p344 = por %p342, %p343
    %s345 = ssub.s32 %s24, %s43
    %s346 = ssub.s32 %s25, %s39
    %s347 = sor.u32 %s345, %s346
    %p348 = scmp.eq.s32.totalorder %s347, 0
    %s350 = sadd.s32 %s349, 1
    %s351 = scalar_select %p348, %s349, %s350
    %p354 = pneg %p348
    %p355 = scmp.eq.s32.totalorder %s17, 1
    %p356 = por %p354, %p355
    %p357 = scmp.ne.s32.totalorder %s349, %s352
    %p358 = scmp.eq.s32.totalorder %s17, 0
    %p359 = por %p357, %p358
    %p360 = scmp.ne.s32.totalorder %s349, %s352
    %p361 = scmp.eq.s32.totalorder %s22, 1
    %p362 = por %p360, %p361
    %p363 = scmp.ne.s32.totalorder %s352, %s353
    %p364 = scmp.eq.s32.totalorder %s22, 0
    %p365 = por %p363, %p364
    %p366 = scmp.ne.s32.totalorder %s352, %s353
    %p367 = scmp.eq.s32.totalorder %s23, 1
    %p368 = por %p366, %p367
    %p370 = scmp.ne.s32.totalorder %s353, %s369
    %p371 = scmp.eq.s32.totalorder %s23, 0
    %p372 = por %p370, %p371
    %p373 = scmp.le.s32.totalorder 1, %s17
    %p374 = scmp.lt.s32.totalorder %s17, 3
    %p375 = pnand %p373, %p374
    %p376 = pneg %p375
    // Predicated region
    $region9: #{model_forward.8} parent=5 // pred_check
      _
    $region10: #{model_forward.8} parent=5 // pred_check_branch
      %378 = sbr.rel (%p375) target = $region12
    $region11: #{model_forward.8} parent=5 // pred_region
      %s379 = ssub.s32 %s17, 1
      // Predicated region
      $region13: #{model_forward.8} parent=11 // pred_check
        %p380 = pneg %p337
      $region14: #{model_forward.8} parent=11 // pred_check_branch
        %382 = sbr.rel (%p380) target = $region16
      $region15: #{model_forward.8} parent=11 // pred_region
        _
      $region16: #{model_forward.8} parent=11 // pred_fallthru
        _
    $region12: #{model_forward.8} parent=5 // pred_fallthru
      _
    %p383 = scmp.lt.s32.totalorder %s17, 2
    // Predicated region
    $region17: #{model_forward.8} parent=5 // pred_check
      %p384 = pneg %p383
    $region18: #{model_forward.8} parent=5 // pred_check_branch
      %386 = sbr.rel (%p384) target = $region20
    $region19: #{model_forward.8} parent=5 // pred_region
      // Predicated region
      $region21: #{model_forward.8} parent=19 // pred_check
        %p387 = pneg %p58
      $region22: #{model_forward.8} parent=19 // pred_check_branch
        %389 = sbr.rel (%p387) target = $region24
      $region23: #{model_forward.8} parent=19 // pred_region
        %p390 = scmp.lt.s32.totalorder %s24, 1
        %s391 = scalar_select %p390, %s24, 1
        %p392 = scmp.lt.s32.totalorder %s25, 0
        %s393 = scalar_select %p392, %s25, 0
        %s394 = sadd.s32 %s393, %s391
        %s395 = smul.addr %s394, 4
        %s396 = scalar_lea.vmem %s0, %s395
      $region24: #{model_forward.8} parent=19 // pred_fallthru
        _
      // Predicated region
      $region25: #{model_forward.8} parent=19 // pred_check
        %p397 = pneg %p86
      $region26: #{model_forward.8} parent=19 // pred_check_branch
        %399 = sbr.rel (%p397) target = $region28
      $region27: #{model_forward.8} parent=19 // pred_region
        %p400 = scmp.lt.s32.totalorder %s24, 1
        %s401 = scalar_select %p400, %s24, 1
        %p402 = scmp.lt.s32.totalorder %s25, 0
        %s403 = scalar_select %p402, %s25, 0
        %s404 = smul.addr %s401, 4
        %s405 = sadd.s32 %s403, %s404
        %s406 = smul.addr %s405, 4
        %s407 = scalar_lea.vmem %s1, %s406
      $region28: #{model_forward.8} parent=19 // pred_fallthru
        _
      // Predicated region
      $region29: #{model_forward.8} parent=19 // pred_check
        %p408 = pneg %p114
      $region30: #{model_forward.8} parent=19 // pred_check_branch
        %410 = sbr.rel (%p408) target = $region32
      $region31: #{model_forward.8} parent=19 // pred_region
        %p411 = scmp.lt.s32.totalorder %s24, 1
        %s412 = scalar_select %p411, %s24, 1
        %p413 = scmp.lt.s32.totalorder %s26, 0
        %s414 = scalar_select %p413, %s26, 0
        %s415 = smul.addr %s412, 4
        %s416 = sadd.s32 %s414, %s415
        %s417 = smul.addr %s416, 4
        %s418 = scalar_lea.vmem %s2, %s417
      $region32: #{model_forward.8} parent=19 // pred_fallthru
        _
      // Predicated region
      $region33: #{model_forward.8} parent=19 // pred_check
        %p419 = pneg %p142
      $region34: #{model_forward.8} parent=19 // pred_check_branch
        %421 = sbr.rel (%p419) target = $region36
      $region35: #{model_forward.8} parent=19 // pred_region
        %p422 = scmp.lt.s32.totalorder %s24, 1
        %s423 = scalar_select %p422, %s24, 1
        %p424 = scmp.lt.s32.totalorder %s26, 0
        %s425 = scalar_select %p424, %s26, 0
        %s426 = smul.addr %s423, 4
        %s427 = sadd.s32 %s425, %s426
        %s428 = smul.addr %s427, 4
        %s429 = scalar_lea.vmem %s3, %s428
      $region36: #{model_forward.8} parent=19 // pred_fallthru
        _
      // Predicated region
      $region37: #{model_forward.8} parent=19 // pred_check
        %p430 = pneg %p170
      $region38: #{model_forward.8} parent=19 // pred_check_branch
        %432 = sbr.rel (%p430) target = $region40
      $region39: #{model_forward.8} parent=19 // pred_region
        %p433 = scmp.lt.s32.totalorder %s24, 1
        %s434 = scalar_select %p433, %s24, 1
        %p435 = scmp.lt.s32.totalorder %s26, 0
        %s436 = scalar_select %p435, %s26, 0
        %s437 = sadd.s32 %s436, %s434
        %s438 = smul.addr %s437, 4
        %s439 = scalar_lea.vmem %s4, %s438
      $region40: #{model_forward.8} parent=19 // pred_fallthru
        _
      // Predicated region
      $region41: #{model_forward.8} parent=19 // pred_check
        %p440 = pneg %p198
      $region42: #{model_forward.8} parent=19 // pred_check_branch
        %442 = sbr.rel (%p440) target = $region44
      $region43: #{model_forward.8} parent=19 // pred_region
        %p443 = scmp.lt.s32.totalorder %s24, 1
        %s444 = scalar_select %p443, %s24, 1
        %p445 = scmp.lt.s32.totalorder %s25, 0
        %s446 = scalar_select %p445, %s25, 0
        %s447 = sadd.s32 %s446, %s444
        %s448 = smul.addr %s447, 8
        %s449 = scalar_lea.vmem %s5, %s448
      $region44: #{model_forward.8} parent=19 // pred_fallthru
        _
      // Predicated region
      $region45: #{model_forward.8} parent=19 // pred_check
        %p450 = pneg %p226
      $region46: #{model_forward.8} parent=19 // pred_check_branch
        %452 = sbr.rel (%p450) target = $region48
      $region47: #{model_forward.8} parent=19 // pred_region
        %p453 = scmp.lt.s32.totalorder %s24, 1
        %s454 = scalar_select %p453, %s24, 1
        %p455 = scmp.lt.s32.totalorder %s25, 0
        %s456 = scalar_select %p455, %s25, 0
        %s457 = sadd.s32 %s456, %s454
        %s458 = smul.addr %s457, 8
        %s459 = scalar_lea.vmem %s6, %s458
      $region48: #{model_forward.8} parent=19 // pred_fallthru
        _
      // Predicated region
      $region49: #{model_forward.8} parent=19 // pred_check
        %p460 = pneg %p254
      $region50: #{model_forward.8} parent=19 // pred_check_branch
        %462 = sbr.rel (%p460) target = $region52
      $region51: #{model_forward.8} parent=19 // pred_region
        %p463 = scmp.lt.s32.totalorder %s24, 1
        %s464 = scalar_select %p463, %s24, 1
        %p465 = scmp.lt.s32.totalorder %s26, 0
        %s466 = scalar_select %p465, %s26, 0
        %s467 = sadd.s32 %s466, %s464
        %s468 = smul.addr %s467, 8
        %s469 = scalar_lea.vmem %s7, %s468
      $region52: #{model_forward.8} parent=19 // pred_fallthru
        _
      // Predicated region
      $region53: #{model_forward.8} parent=19 // pred_check
        %p470 = pneg %p282
      $region54: #{model_forward.8} parent=19 // pred_check_branch
        %472 = sbr.rel (%p470) target = $region56
      $region55: #{model_forward.8} parent=19 // pred_region
        %p473 = scmp.lt.s32.totalorder %s24, 1
        %s474 = scalar_select %p473, %s24, 1
        %p475 = scmp.lt.s32.totalorder %s26, 0
        %s476 = scalar_select %p475, %s26, 0
        %s477 = sadd.s32 %s476, %s474
        %s478 = smul.addr %s477, 8
        %s479 = scalar_lea.vmem %s8, %s478
      $region56: #{model_forward.8} parent=19 // pred_fallthru
        _
      // Predicated region
      $region57: #{model_forward.8} parent=19 // pred_check
        %p480 = pneg %p310
      $region58: #{model_forward.8} parent=19 // pred_check_branch
        %482 = sbr.rel (%p480) target = $region60
      $region59: #{model_forward.8} parent=19 // pred_region
        %p483 = scmp.lt.s32.totalorder %s24, 1
        %s484 = scalar_select %p483, %s24, 1
        %p485 = scmp.lt.s32.totalorder %s26, 0
        %s486 = scalar_select %p485, %s26, 0
        %s487 = sadd.s32 %s486, %s484
        %s488 = scalar_lea.vmem %s9, %s487
      $region60: #{model_forward.8} parent=19 // pred_fallthru
        _
    $region20: #{model_forward.8} parent=5 // pred_fallthru
      _
    %p489 = scmp.le.s32.totalorder 1, %s17
    %p490 = scmp.lt.s32.totalorder %s17, 3
    %p491 = pnand %p489, %p490
    %p492 = pneg %p491
    // Predicated region
    $region61: #{model_forward.8} parent=5 // pred_check
      _
    $region62: #{model_forward.8} parent=5 // pred_check_branch
      %494 = sbr.rel (%p491) target = $region64
    $region63: #{model_forward.8} parent=5 // pred_region
      %s495 = ssub.s32 %s17, 1
      %p496 = scmp.lt.s32.totalorder %s27, 1
      %s497 = scalar_select %p496, %s27, 1
      %p498 = scmp.lt.s32.totalorder %s28, 0
      %s499 = scalar_select %p498, %s28, 0
      %s500 = sadd.s32 %s499, %s497
      %s501 = smul.addr %s500, 4
      %s502 = scalar_lea.vmem %s0, %s501
      %p503 = pneg %p64
      %p504 = pneg %p61
      %p505 = scmp.lt.s32.totalorder %s27, 1
      %s506 = scalar_select %p505, %s27, 1
      %p507 = scmp.lt.s32.totalorder %s28, 0
      %s508 = scalar_select %p507, %s28, 0
      %s509 = smul.addr %s506, 4
      %s510 = sadd.s32 %s508, %s509
      %s511 = smul.addr %s510, 4
      %s512 = scalar_lea.vmem %s1, %s511
      %p513 = pneg %p92
      %p514 = pneg %p89
      %p515 = scmp.lt.s32.totalorder %s27, 1
      %s516 = scalar_select %p515, %s27, 1
      %p517 = scmp.lt.s32.totalorder %s29, 0
      %s518 = scalar_select %p517, %s29, 0
      %s519 = smul.addr %s516, 4
      %s520 = sadd.s32 %s518, %s519
      %s521 = smul.addr %s520, 4
      %s522 = scalar_lea.vmem %s2, %s521
      %p523 = pneg %p120
      %p524 = pneg %p117
      %p525 = scmp.lt.s32.totalorder %s27, 1
      %s526 = scalar_select %p525, %s27, 1
      %p527 = scmp.lt.s32.totalorder %s29, 0
      %s528 = scalar_select %p527, %s29, 0
      %s529 = smul.addr %s526, 4
      %s530 = sadd.s32 %s528, %s529
      %s531 = smul.addr %s530, 4
      %s532 = scalar_lea.vmem %s3, %s531
      %p533 = pneg %p148
      %p534 = pneg %p145
      %p535 = scmp.lt.s32.totalorder %s27, 1
      %s536 = scalar_select %p535, %s27, 1
      %p537 = scmp.lt.s32.totalorder %s29, 0
      %s538 = scalar_select %p537, %s29, 0
      %s539 = sadd.s32 %s538, %s536
      %s540 = smul.addr %s539, 4
      %s541 = scalar_lea.vmem %s4, %s540
      %p542 = pneg %p176
      %p543 = pneg %p173
      %p544 = scmp.lt.s32.totalorder %s27, 1
      %s545 = scalar_select %p544, %s27, 1
      %p546 = scmp.lt.s32.totalorder %s28, 0
      %s547 = scalar_select %p546, %s28, 0
      %s548 = sadd.s32 %s547, %s545
      %s549 = smul.addr %s548, 8
      %s550 = scalar_lea.vmem %s5, %s549
      %p551 = pneg %p204
      %p552 = pneg %p201
      %p553 = scmp.lt.s32.totalorder %s27, 1
      %s554 = scalar_select %p553, %s27, 1
      %p555 = scmp.lt.s32.totalorder %s28, 0
      %s556 = scalar_select %p555, %s28, 0
      %s557 = sadd.s32 %s556, %s554
      %s558 = smul.addr %s557, 8
      %s559 = scalar_lea.vmem %s6, %s558
      %p560 = pneg %p232
      %p561 = pneg %p229
      %p562 = scmp.lt.s32.totalorder %s27, 1
      %s563 = scalar_select %p562, %s27, 1
      %p564 = scmp.lt.s32.totalorder %s29, 0
      %s565 = scalar_select %p564, %s29, 0
      %s566 = sadd.s32 %s565, %s563
      %s567 = smul.addr %s566, 8
      %s568 = scalar_lea.vmem %s7, %s567
      %p569 = pneg %p260
      %p570 = pneg %p257
      %p571 = scmp.lt.s32.totalorder %s27, 1
      %s572 = scalar_select %p571, %s27, 1
      %p573 = scmp.lt.s32.totalorder %s29, 0
      %s574 = scalar_select %p573, %s29, 0
      %s575 = sadd.s32 %s574, %s572
      %s576 = smul.addr %s575, 8
      %s577 = scalar_lea.vmem %s8, %s576
      %p578 = pneg %p288
      %p579 = pneg %p285
      %p580 = scmp.lt.s32.totalorder %s27, 1
      %s581 = scalar_select %p580, %s27, 1
      %p582 = scmp.lt.s32.totalorder %s29, 0
      %s583 = scalar_select %p582, %s29, 0
      %s584 = sadd.s32 %s583, %s581
      %s585 = scalar_lea.vmem %s9, %s584
      %p586 = pneg %p316
      %p587 = pneg %p313
      %p588 = pneg %p337
      %p589 = pneg %p334
      %p590 = pneg %p365
      %p591 = pneg %p362
      %p592 = scmp.lt.s32.totalorder %s27, 1
      %s593 = scalar_select %p592, %s27, 1
      %p594 = scmp.lt.s32.totalorder %s28, 0
      %s595 = scalar_select %p594, %s28, 0
      %s596 = sadd.s32 %s595, %s593
      %s597 = smul.addr %s596, 4
      %s598 = scalar_lea.vmem %s11, %s597
      %p599 = scmp.lt.s32.totalorder %s27, 1
      %s600 = scalar_select %p599, %s27, 1
      %p601 = scmp.lt.s32.totalorder %s28, 0
      %s602 = scalar_select %p601, %s28, 0
      %s603 = sadd.s32 %s602, %s600
      %s604 = smul.addr %s603, 4
      %s605 = scalar_lea.vmem %s0, %s604
      %p606 = scmp.lt.s32.totalorder %s27, 1
      %s607 = scalar_select %p606, %s27, 1
      %p608 = scmp.lt.s32.totalorder %s28, 0
      %s609 = scalar_select %p608, %s28, 0
      %s610 = smul.addr %s607, 4
      %s611 = sadd.s32 %s609, %s610
      %s612 = smul.addr %s611, 4
      %s613 = scalar_lea.vmem %s1, %s612
      %p614 = scmp.lt.s32.totalorder %s27, 1
      %s615 = scalar_select %p614, %s27, 1
      %p616 = scmp.lt.s32.totalorder %s29, 0
      %s617 = scalar_select %p616, %s29, 0
      %s618 = smul.addr %s615, 4
      %s619 = sadd.s32 %s617, %s618
      %s620 = smul.addr %s619, 4
      %s621 = scalar_lea.vmem %s2, %s620
      %p622 = scmp.lt.s32.totalorder %s27, 1
      %s623 = scalar_select %p622, %s27, 1
      %p624 = scmp.lt.s32.totalorder %s29, 0
      %s625 = scalar_select %p624, %s29, 0
      %s626 = smul.addr %s623, 4
      %s627 = sadd.s32 %s625, %s626
      %s628 = smul.addr %s627, 4
      %s629 = scalar_lea.vmem %s3, %s628
      %p630 = scmp.lt.s32.totalorder %s27, 1
      %s631 = scalar_select %p630, %s27, 1
      %p632 = scmp.lt.s32.totalorder %s29, 0
      %s633 = scalar_select %p632, %s29, 0
      %s634 = sadd.s32 %s633, %s631
      %s635 = smul.addr %s634, 4
      %s636 = scalar_lea.vmem %s4, %s635
      %p637 = scmp.lt.s32.totalorder %s27, 1
      %s638 = scalar_select %p637, %s27, 1
      %p639 = scmp.lt.s32.totalorder %s28, 0
      %s640 = scalar_select %p639, %s28, 0
      %s641 = sadd.s32 %s640, %s638
      %s642 = smul.addr %s641, 8
      %s643 = scalar_lea.vmem %s5, %s642
      %p644 = scmp.lt.s32.totalorder %s27, 1
      %s645 = scalar_select %p644, %s27, 1
      %p646 = scmp.lt.s32.totalorder %s28, 0
      %s647 = scalar_select %p646, %s28, 0
      %s648 = sadd.s32 %s647, %s645
      %s649 = smul.addr %s648, 8
      %s650 = scalar_lea.vmem %s6, %s649
      %p651 = scmp.lt.s32.totalorder %s27, 1
      %s652 = scalar_select %p651, %s27, 1
      %p653 = scmp.lt.s32.totalorder %s29, 0
      %s654 = scalar_select %p653, %s29, 0
      %s655 = sadd.s32 %s654, %s652
      %s656 = smul.addr %s655, 8
      %s657 = scalar_lea.vmem %s7, %s656
      %p658 = scmp.lt.s32.totalorder %s27, 1
      %s659 = scalar_select %p658, %s27, 1
      %p660 = scmp.lt.s32.totalorder %s29, 0
      %s661 = scalar_select %p660, %s29, 0
      %s662 = sadd.s32 %s661, %s659
      %s663 = smul.addr %s662, 8
      %s664 = scalar_lea.vmem %s8, %s663
      %p665 = scmp.lt.s32.totalorder %s27, 1
      %s666 = scalar_select %p665, %s27, 1
      %p667 = scmp.lt.s32.totalorder %s29, 0
      %s668 = scalar_select %p667, %s29, 0
      %s669 = sadd.s32 %s668, %s666
      %s670 = scalar_lea.vmem %s9, %s669
      %p671 = scmp.lt.s32.totalorder %s27, 1
      %s672 = scalar_select %p671, %s27, 1
      %p673 = scmp.lt.s32.totalorder %s28, 0
      %s674 = scalar_select %p673, %s28, 0
      %s675 = sadd.s32 %s674, %s672
      %s676 = smul.addr %s675, 4
      %s677 = scalar_lea.vmem %s11, %s676
      %p679 = scmp.eq.s32.totalorder %s29, 0
      // Predicated region
      $region65: #{model_forward.8} parent=63 // pred_check
        %p680 = pneg %p679
      $region66: #{model_forward.8} parent=63 // pred_check_branch
        %682 = sbr.rel (%p680) target = $region68
      $region67: #{model_forward.8} parent=63 // pred_region
        %vm683 = vcmask 7168
        %684 = vst.msk [vmem:[#allocation2] sm:$0xff] %vm683, -inf
        %685 = vst.msk [vmem:[#allocation2 + $0x8] sm:$0xff] %vm683, -inf
        %686 = vst.msk [vmem:[#allocation2 + $0x10] sm:$0xff] %vm683, -inf
        %687 = vst.msk [vmem:[#allocation2 + $0x18] sm:$0xff] %vm683, -inf
        %688 = vst.msk [vmem:[#allocation3] sm:$0xff] %vm683, 0.0
        %689 = vst.msk [vmem:[#allocation3 + $0x8] sm:$0xff] %vm683, 0.0
        %690 = vst.msk [vmem:[#allocation3 + $0x10] sm:$0xff] %vm683, 0.0
        %691 = vst.msk [vmem:[#allocation3 + $0x18] sm:$0xff] %vm683, 0.0
        %vm692 = vcmask 130048
        %693 = vst.msk [vmem:[#allocation4] sm:$0xff] %vm692, 0.0
        %694 = vst.msk [vmem:[#allocation4 + $0x8] sm:$0xff] %vm692, 0.0
        %695 = vst.msk [vmem:[#allocation4 + $0x10] sm:$0xff] %vm692, 0.0
        %696 = vst.msk [vmem:[#allocation4 + $0x18] sm:$0xff] %vm692, 0.0
      $region68: #{model_forward.8} parent=63 // pred_fallthru
        _
      %v697 = vld [vmem:[%s643] sm:$0xff]
      %v698 = vld [vmem:[%s650] sm:$0xff]
      %v699 = vld [vmem:[%s657] sm:$0xff]
      %v700 = vld [vmem:[%s664] sm:$0xff]
      %v701 = vld [vmem:[%s613] sm:$0xf]
      %v702 = vld [vmem:[%s613 + $0x4] sm:$0xf]
      %v703 = vld [vmem:[%s613 + $0x8] sm:$0xf]
      %v704 = vld [vmem:[%s613 + $0xc] sm:$0xf]
      %v705 = vunpack.c.l.bf16 %v701
      %v706 = vunpack.c.l.bf16 %v702
      %v707 = vunpack.c.l.bf16 %v703
      %v708 = vunpack.c.l.bf16 %v704
      %710 = vrot.lane.b32.xlu0 %v697, 16
      %v711 = vpop.permute.xlu0 %710
      %v713 = vmul.f32 %v705, %v711
      %v714 = vmul.f32 %v706, %v711
      %v715 = vmul.f32 %v707, %v711
      %v716 = vmul.f32 %v708, %v711
      %v717 = vsub.f32 0.0, %v705
      %v718 = vsub.f32 0.0, %v706
      %v719 = vsub.f32 0.0, %v707
      %v720 = vsub.f32 0.0, %v708
      %725 = vrot.lane.b32.xlu0 %v717, 108
      %v726 = vpop.permute.xlu0 %725
      %727 = vrot.lane.b32.xlu0 %v718, 108
      %v728 = vpop.permute.xlu0 %727
      %729 = vrot.lane.b32.xlu0 %v719, 108
      %v730 = vpop.permute.xlu0 %729
      %731 = vrot.lane.b32.xlu0 %v720, 108
      %v732 = vpop.permute.xlu0 %731
      %741 = vrot.lane.b32.xlu0 %v705, 116
      %v742 = vpop.permute.xlu0 %741
      %743 = vrot.lane.b32.xlu0 %v706, 116
      %v744 = vpop.permute.xlu0 %743
      %745 = vrot.lane.b32.xlu0 %v707, 116
      %v746 = vpop.permute.xlu0 %745
      %747 = vrot.lane.b32.xlu0 %v708, 116
      %v748 = vpop.permute.xlu0 %747
      %vm753 = vcmask 31744
      %v754 = vsel %vm753, %v726, %v742
      %v755 = vsel %vm753, %v728, %v744
      %v756 = vsel %vm753, %v730, %v746
      %v757 = vsel %vm753, %v732, %v748
      %v758 = vmul.f32 %v754, %v698
      %v759 = vmul.f32 %v755, %v698
      %v760 = vmul.f32 %v756, %v698
      %v761 = vmul.f32 %v757, %v698
      %766 = vrot.lane.b32.xlu0 %v758, 16
      %v767 = vpop.permute.xlu0 %766
      %768 = vrot.lane.b32.xlu0 %v759, 16
      %v769 = vpop.permute.xlu0 %768
      %770 = vrot.lane.b32.xlu0 %v760, 16
      %v771 = vpop.permute.xlu0 %770
      %772 = vrot.lane.b32.xlu0 %v761, 16
      %v773 = vpop.permute.xlu0 %772
      %v778 = vadd.f32 %v713, %v767
      %v779 = vadd.f32 %v714, %v769
      %v780 = vadd.f32 %v715, %v771
      %v781 = vadd.f32 %v716, %v773
      %vm782 = vcmask 130048
      %v783 = vsel %vm782, %v705, %v778
      %v784 = vsel %vm782, %v706, %v779
      %v785 = vsel %vm782, %v707, %v780
      %v786 = vsel %vm782, %v708, %v781
      %v787 = vpack.c.bf16 %v783, %v783
      %v788 = vpack.c.bf16 %v784, %v784
      %v789 = vpack.c.bf16 %v785, %v785
      %v790 = vpack.c.bf16 %v786, %v786
      %v791 = vld [vmem:[%s636] sm:$0xf]
      %v792 = vunpack.c.l.bf16 %v791
      %v793 = vmul.f32 %v792, %v699
      %v794 = vsub.f32 0.0, %v792
      %796 = vrot.lane.b32.xlu0 %v794, 124
      %v797 = vpop.permute.xlu0 %796
      %800 = vrot.lane.b32.xlu0 %v792, 4
      %v801 = vpop.permute.xlu0 %800
      %v803 = vsel %vm753, %v797, %v801
      %v804 = vmul.f32 %v803, %v700
      %v805 = vadd.f32 %v793, %v804
      %v806 = vld [vmem:[%s621] sm:$0xf]
      %v807 = vld [vmem:[%s621 + $0x4] sm:$0xf]
      %v808 = vld [vmem:[%s621 + $0x8] sm:$0xf]
      %v809 = vld [vmem:[%s621 + $0xc] sm:$0xf]
      %v810 = vunpack.c.l.bf16 %v806
      %v811 = vunpack.c.l.bf16 %v807
      %v812 = vunpack.c.l.bf16 %v808
      %v813 = vunpack.c.l.bf16 %v809
      %815 = vrot.lane.b32.xlu0 %v805, 16
      %v816 = vpop.permute.xlu0 %815
      %v818 = vsel %vm782, %v810, %v816
      %v819 = vsel %vm782, %v811, %v816
      %v820 = vsel %vm782, %v812, %v816
      %v821 = vsel %vm782, %v813, %v816
      %v822 = vpack.c.bf16 %v818, %v818
      %v823 = vpack.c.bf16 %v819, %v819
      %v824 = vpack.c.bf16 %v820, %v820
      %v825 = vpack.c.bf16 %v821, %v821
      %vm826 = vcmask 195584
      %v828 = vsel %vm826, %v787, 0
      %v831 = vsel %vm826, %v822, 0
      %833 = vmatprep.subr.bf16.mxu0 0
      %834 = vmatpush1.bf16.xpose.msra.mxu0 %v831
      %835 = vmatprep.subr.bf16.mxu0 0
      %836 = vmatpush1.bf16.xpose.msra.mxu0 0
      %837 = vmatprep.subr.bf16.mxu0 0
      %838 = vmatpush1.bf16.xpose.msra.mxu0 0
      %839 = vmatprep.subr.bf16.mxu0 0
      %840 = vmatpush1.bf16.xpose.msra.mxu0 0
      %841 = vmatprep.subr.bf16.mxu0 0
      %842 = vmatpush1.bf16.xpose.msra.mxu0 0
      %843 = vmatprep.subr.bf16.mxu0 0
      %844 = vmatpush1.bf16.xpose.msra.mxu0 0
      %845 = vmatprep.subr.bf16.mxu0 0
      %846 = vmatpush1.bf16.xpose.msra.mxu0 0
      %847 = vmatprep.subr.bf16.mxu0 0
      %848 = vmatpush1.bf16.xpose.msra.mxu0 0
      %849 = vmatprep.subr.bf16.mxu0 0
      %850 = vmatpush1.bf16.xpose.msra.mxu0 0
      %851 = vmatprep.subr.bf16.mxu0 0
      %852 = vmatpush1.bf16.xpose.msra.mxu0 0
      %853 = vmatprep.subr.bf16.mxu0 0
      %854 = vmatpush1.bf16.xpose.msra.mxu0 0
      %855 = vmatprep.subr.bf16.mxu0 0
      %856 = vmatpush1.bf16.xpose.msra.mxu0 0
      %857 = vmatprep.subr.bf16.mxu0 0
      %858 = vmatpush1.bf16.xpose.msra.mxu0 0
      %859 = vmatprep.subr.bf16.mxu0 0
      %860 = vmatpush1.bf16.xpose.msra.mxu0 0
      %861 = vmatprep.subr.bf16.mxu0 0
      %862 = vmatpush1.bf16.xpose.msra.mxu0 0
      %863 = vmatprep.subr.bf16.mxu0 0
      %864 = vmatpush1.bf16.xpose.msra.mxu0 0
      %865 = vmatprep.mubr.bf16.mxu0 0
      %866 = vmatmul.mubr.bf16.gmra.mrb[0].mxu0 %v828
      %v867 = vpop.f32.mrb[0].mxu0
      %v868 = vadd.f32 0.0, %v867
      %v869 = vpop.f32.mrb[0].mxu0
      %v870 = vpop.f32.mrb[0].mxu0
      %v871 = vpop.f32.mrb[0].mxu0
      %872 = vdwg.mxu0
      %v874 = vsel %vm826, %v788, 0
      %v877 = vsel %vm826, %v823, 0
      %879 = vmatprep.subr.bf16.mxu0 0
      %880 = vmatpush1.bf16.xpose.msra.mxu0 %v877
      %881 = vmatprep.subr.bf16.mxu0 0
      %882 = vmatpush1.bf16.xpose.msra.mxu0 0
      %883 = vmatprep.subr.bf16.mxu0 0
      %884 = vmatpush1.bf16.xpose.msra.mxu0 0
      %885 = vmatprep.subr.bf16.mxu0 0
      %886 = vmatpush1.bf16.xpose.msra.mxu0 0
      %887 = vmatprep.subr.bf16.mxu0 0
      %888 = vmatpush1.bf16.xpose.msra.mxu0 0
      %889 = vmatprep.subr.bf16.mxu0 0
      %890 = vmatpush1.bf16.xpose.msra.mxu0 0
      %891 = vmatprep.subr.bf16.mxu0 0
      %892 = vmatpush1.bf16.xpose.msra.mxu0 0
      %893 = vmatprep.subr.bf16.mxu0 0
      %894 = vmatpush1.bf16.xpose.msra.mxu0 0
      %895 = vmatprep.subr.bf16.mxu0 0
      %896 = vmatpush1.bf16.xpose.msra.mxu0 0
      %897 = vmatprep.subr.bf16.mxu0 0
      %898 = vmatpush1.bf16.xpose.msra.mxu0 0
      %899 = vmatprep.subr.bf16.mxu0 0
      %900 = vmatpush1.bf16.xpose.msra.mxu0 0
      %901 = vmatprep.subr.bf16.mxu0 0
      %902 = vmatpush1.bf16.xpose.msra.mxu0 0
      %903 = vmatprep.subr.bf16.mxu0 0
      %904 = vmatpush1.bf16.xpose.msra.mxu0 0
      %905 = vmatprep.subr.bf16.mxu0 0
      %906 = vmatpush1.bf16.xpose.msra.mxu0 0
      %907 = vmatprep.subr.bf16.mxu0 0
      %908 = vmatpush1.bf16.xpose.msra.mxu0 0
      %909 = vmatprep.subr.bf16.mxu0 0
      %910 = vmatpush1.bf16.xpose.msra.mxu0 0
      %911 = vmatprep.mubr.bf16.mxu0 0
      %912 = vmatmul.mubr.bf16.gmra.mrb[0].mxu0 %v874
      %v913 = vpop.f32.mrb[0].mxu0
      %v914 = vadd.f32 0.0, %v913
      %v915 = vpop.f32.mrb[0].mxu0
      %v916 = vpop.f32.mrb[0].mxu0
      %v917 = vpop.f32.mrb[0].mxu0
      %918 = vdwg.mxu0
      %v920 = vsel %vm826, %v789, 0
      %v923 = vsel %vm826, %v824, 0
      %925 = vmatprep.subr.bf16.mxu0 0
      %926 = vmatpush1.bf16.xpose.msra.mxu0 %v923
      %927 = vmatprep.subr.bf16.mxu0 0
      %928 = vmatpush1.bf16.xpose.msra.mxu0 0
      %929 = vmatprep.subr.bf16.mxu0 0
      %930 = vmatpush1.bf16.xpose.msra.mxu0 0
      %931 = vmatprep.subr.bf16.mxu0 0
      %932 = vmatpush1.bf16.xpose.msra.mxu0 0
      %933 = vmatprep.subr.bf16.mxu0 0
      %934 = vmatpush1.bf16.xpose.msra.mxu0 0
      %935 = vmatprep.subr.bf16.mxu0 0
      %936 = vmatpush1.bf16.xpose.msra.mxu0 0
      %937 = vmatprep.subr.bf16.mxu0 0
      %938 = vmatpush1.bf16.xpose.msra.mxu0 0
      %939 = vmatprep.subr.bf16.mxu0 0
      %940 = vmatpush1.bf16.xpose.msra.mxu0 0
      %941 = vmatprep.subr.bf16.mxu0 0
      %942 = vmatpush1.bf16.xpose.msra.mxu0 0
      %943 = vmatprep.subr.bf16.mxu0 0
      %944 = vmatpush1.bf16.xpose.msra.mxu0 0
      %945 = vmatprep.subr.bf16.mxu0 0
      %946 = vmatpush1.bf16.xpose.msra.mxu0 0
      %947 = vmatprep.subr.bf16.mxu0 0
      %948 = vmatpush1.bf16.xpose.msra.mxu0 0
      %949 = vmatprep.subr.bf16.mxu0 0
      %950 = vmatpush1.bf16.xpose.msra.mxu0 0
      %951 = vmatprep.subr.bf16.mxu0 0
      %952 = vmatpush1.bf16.xpose.msra.mxu0 0
      %953 = vmatprep.subr.bf16.mxu0 0
      %954 = vmatpush1.bf16.xpose.msra.mxu0 0
      %955 = vmatprep.subr.bf16.mxu0 0
      %956 = vmatpush1.bf16.xpose.msra.mxu0 0
      %957 = vmatprep.mubr.bf16.mxu0 0
      %958 = vmatmul.mubr.bf16.gmra.mrb[0].mxu0 %v920
      %v959 = vpop.f32.mrb[0].mxu0
      %v960 = vadd.f32 0.0, %v959
      %v961 = vpop.f32.mrb[0].mxu0
      %v962 = vpop.f32.mrb[0].mxu0
      %v963 = vpop.f32.mrb[0].mxu0
      %964 = vdwg.mxu0
      %v966 = vsel %vm826, %v790, 0
      %v969 = vsel %vm826, %v825, 0
      %971 = vmatprep.subr.bf16.mxu0 0
      %972 = vmatpush1.bf16.xpose.msra.mxu0 %v969
      %973 = vmatprep.subr.bf16.mxu0 0
      %974 = vmatpush1.bf16.xpose.msra.mxu0 0
      %975 = vmatprep.subr.bf16.mxu0 0
      %976 = vmatpush1.bf16.xpose.msra.mxu0 0
      %977 = vmatprep.subr.bf16.mxu0 0
      %978 = vmatpush1.bf16.xpose.msra.mxu0 0
      %979 = vmatprep.subr.bf16.mxu0 0
      %980 = vmatpush1.bf16.xpose.msra.mxu0 0
      %981 = vmatprep.subr.bf16.mxu0 0
      %982 = vmatpush1.bf16.xpose.msra.mxu0 0
      %983 = vmatprep.subr.bf16.mxu0 0
      %984 = vmatpush1.bf16.xpose.msra.mxu0 0
      %985 = vmatprep.subr.bf16.mxu0 0
      %986 = vmatpush1.bf16.xpose.msra.mxu0 0
      %987 = vmatprep.subr.bf16.mxu0 0
      %988 = vmatpush1.bf16.xpose.msra.mxu0 0
      %989 = vmatprep.subr.bf16.mxu0 0
      %990 = vmatpush1.bf16.xpose.msra.mxu0 0
      %991 = vmatprep.subr.bf16.mxu0 0
      %992 = vmatpush1.bf16.xpose.msra.mxu0 0
      %993 = vmatprep.subr.bf16.mxu0 0
      %994 = vmatpush1.bf16.xpose.msra.mxu0 0
      %995 = vmatprep.subr.bf16.mxu0 0
      %996 = vmatpush1.bf16.xpose.msra.mxu0 0
      %997 = vmatprep.subr.bf16.mxu0 0
      %998 = vmatpush1.bf16.xpose.msra.mxu0 0
      %999 = vmatprep.subr.bf16.mxu0 0
      %1000 = vmatpush1.bf16.xpose.msra.mxu0 0
      %1001 = vmatprep.subr.bf16.mxu0 0
      %1002 = vmatpush1.bf16.xpose.msra.mxu0 0
      %1003 = vmatprep.mubr.bf16.mxu0 0
      %1004 = vmatmul.mubr.bf16.gmra.mrb[0].mxu0 %v966
      %v1005 = vpop.f32.mrb[0].mxu0
      %v1006 = vadd.f32 0.0, %v1005
      %v1007 = vpop.f32.mrb[0].mxu0
      %v1008 = vpop.f32.mrb[0].mxu0
      %v1009 = vpop.f32.mrb[0].mxu0
      %1010 = vdwg.mxu0
      %v1011 = vmul.f32 %v868, 0.20412415
      %v1012 = vmul.f32 %v914, 0.20412415
      %v1013 = vmul.f32 %v960, 0.20412415
      %v1014 = vmul.f32 %v1006, 0.20412415
      %s1015 = smul.u32 %s28, 8
      %v1016 = vlaneseq
      %v1017 = vshrl.u32 %v1016, 7
      %v1018 = vstv %s1015
      %v1019 = vadd.s32 %v1018, %v1017
      %s1020 = smul.u32 %s29, 8
      %v1021 = vlaneseq
      %v1022 = vand.u32 %v1021, 127
      %v1023 = vstv %s1020
      %v1024 = vadd.s32 %v1023, %v1022
      %v1025 = vld [vmem:[%s670] sm:$0x1]
      %v1026 = vsub.f32 1.0, %v1025
      %v1027 = vmul.f32 %v1026, -1e+09
      %vm1028 = vcmp.le.s32.totalorder %v1024, %v1019
      %v1029 = vsel %vm1028, 0.0, -1e+09
      %v1031 = vlaneseq
      %v1032 = vshrl.u32 %v1031, 7
      %v1033 = vsub.s32 0, %v1032
      %v1034 = vrot.slane %v1027, %v1033
      %v1036 = vadd.f32 %v1029, %v1034
      %v1037 = vadd.f32 %v1011, %v1036
      %v1038 = vadd.f32 %v1012, %v1036
      %v1039 = vadd.f32 %v1013, %v1036
      %v1040 = vadd.f32 %v1014, %v1036
      %v1041 = vld [vmem:[#allocation2] sm:$0xff]
      %v1042 = vld [vmem:[#allocation2 + $0x8] sm:$0xff]
      %v1043 = vld [vmem:[#allocation2 + $0x10] sm:$0xff]
      %v1044 = vld [vmem:[#allocation2 + $0x18] sm:$0xff]
      %vm1045 = vcmask 64512
      %v1046 = vsel %vm1045, %v1037, -inf
      %1047 = vmax.xlane.f32.xlu0 %v1046
      %v1048 = vpop.xlane.xlu0 %1047
      %v1049 = vsel %vm1045, %v1038, -inf
      %1050 = vmax.xlane.f32.xlu0 %v1049
      %v1051 = vpop.xlane.xlu0 %1050
      %v1052 = vsel %vm1045, %v1039, -inf
      %1053 = vmax.xlane.f32.xlu0 %v1052
      %v1054 = vpop.xlane.xlu0 %1053
      %v1055 = vsel %vm1045, %v1040, -inf
      %1056 = vmax.xlane.f32.xlu0 %v1055
      %v1057 = vpop.xlane.xlu0 %1056
      %v1058 = vmax.f32 %v1041, %v1048
      %v1059 = vmax.f32 %v1042, %v1051
      %v1060 = vmax.f32 %v1043, %v1054
      %v1061 = vmax.f32 %v1044, %v1057
      %v1062 = vsub.f32 %v1041, %v1058
      %v1063 = vsub.f32 %v1042, %v1059
      %v1064 = vsub.f32 %v1043, %v1060
      %v1065 = vsub.f32 %v1044, %v1061
      %v1066 = vmul.f32 %v1062, 1.442695
      %v1067 = vpow.pop %v1066
      %v1068 = vmul.f32 %v1063, 1.442695
      %v1069 = vpow.pop %v1068
      %v1070 = vmul.f32 %v1064, 1.442695
      %v1071 = vpow.pop %v1070
      %v1072 = vmul.f32 %v1065, 1.442695
      %v1073 = vpow.pop %v1072
      %1075 = vset.pattern.permute.xlu0 0
      %1076 = vperm.xlu0 %1075, %v1058
      %v1077 = vpop.permute.xlu0 %1076
      %1080 = vset.pattern.permute.xlu0 0
      %1081 = vperm.xlu0 %1080, %v1059
      %v1082 = vpop.permute.xlu0 %1081
      %1085 = vset.pattern.permute.xlu0 0
      %1086 = vperm.xlu0 %1085, %v1060
      %v1087 = vpop.permute.xlu0 %1086
      %1090 = vset.pattern.permute.xlu0 0
      %1091 = vperm.xlu0 %1090, %v1061
      %v1092 = vpop.permute.xlu0 %1091
      %v1094 = vsub.f32 %v1037, %v1077
      %v1095 = vsub.f32 %v1038, %v1082
      %v1096 = vsub.f32 %v1039, %v1087
      %v1097 = vsub.f32 %v1040, %v1092
      %v1098 = vmul.f32 %v1094, 1.442695
      %v1099 = vpow.pop %v1098
      %v1100 = vmul.f32 %v1095, 1.442695
      %v1101 = vpow.pop %v1100
      %v1102 = vmul.f32 %v1096, 1.442695
      %v1103 = vpow.pop %v1102
      %v1104 = vmul.f32 %v1097, 1.442695
      %v1105 = vpow.pop %v1104
      %v1106 = vld [vmem:[#allocation3] sm:$0xff]
      %v1107 = vld [vmem:[#allocation3 + $0x8] sm:$0xff]
      %v1108 = vld [vmem:[#allocation3 + $0x10] sm:$0xff]
      %v1109 = vld [vmem:[#allocation3 + $0x18] sm:$0xff]
      %v1110 = vmul.f32 %v1067, %v1106
      %v1111 = vmul.f32 %v1069, %v1107
      %v1112 = vmul.f32 %v1071, %v1108
      %v1113 = vmul.f32 %v1073, %v1109
      %v1114 = vsel %vm1045, %v1099, 0.0
      %1115 = vadd.xlane.f32.xlu0 %v1114
      %v1116 = vpop.xlane.xlu0 %1115
      %v1117 = vsel %vm1045, %v1101, 0.0
      %1118 = vadd.xlane.f32.xlu0 %v1117
      %v1119 = vpop.xlane.xlu0 %1118
      %v1120 = vsel %vm1045, %v1103, 0.0
      %1121 = vadd.xlane.f32.xlu0 %v1120
      %v1122 = vpop.xlane.xlu0 %1121
      %v1123 = vsel %vm1045, %v1105, 0.0
      %1124 = vadd.xlane.f32.xlu0 %v1123
      %v1125 = vpop.xlane.xlu0 %1124
      %v1126 = vadd.f32 %v1110, %v1116
      %v1127 = vadd.f32 %v1111, %v1119
      %v1128 = vadd.f32 %v1112, %v1122
      %v1129 = vadd.f32 %v1113, %v1125
      %vm1130 = vcmask 7168
      %1131 = vst.msk [vmem:[#allocation3] sm:$0xff] %vm1130, %v1126
      %1132 = vst.msk [vmem:[#allocation3 + $0x8] sm:$0xff] %vm1130, %v1127
      %1133 = vst.msk [vmem:[#allocation3 + $0x10] sm:$0xff] %vm1130, %v1128
      %1134 = vst.msk [vmem:[#allocation3 + $0x18] sm:$0xff] %vm1130, %v1129
      %v1135 = vld [vmem:[#allocation4] sm:$0xff]
      %v1136 = vld [vmem:[#allocation4 + $0x8] sm:$0xff]
      %v1137 = vld [vmem:[#allocation4 + $0x10] sm:$0xff]
      %v1138 = vld [vmem:[#allocation4 + $0x18] sm:$0xff]
      %1140 = vset.pattern.permute.xlu0 0
      %1141 = vperm.xlu0 %1140, %v1067
      %v1142 = vpop.permute.xlu0 %1141
      %1145 = vset.pattern.permute.xlu0 0
      %1146 = vperm.xlu0 %1145, %v1069
      %v1147 = vpop.permute.xlu0 %1146
      %1150 = vset.pattern.permute.xlu0 0
      %1151 = vperm.xlu0 %1150, %v1071
      %v1152 = vpop.permute.xlu0 %1151
      %1155 = vset.pattern.permute.xlu0 0
      %1156 = vperm.xlu0 %1155, %v1073
      %v1157 = vpop.permute.xlu0 %1156
      %v1159 = vmul.f32 %v1142, %v1135
      %v1160 = vmul.f32 %v1147, %v1136
      %v1161 = vmul.f32 %v1152, %v1137
      %v1162 = vmul.f32 %v1157, %v1138
      %v1163 = vpack.c.bf16 %v1099, %v1099
      %v1164 = vpack.c.bf16 %v1101, %v1101
      %v1165 = vpack.c.bf16 %v1103, %v1103
      %v1166 = vpack.c.bf16 %v1105, %v1105
      %v1167 = vld [vmem:[%s629] sm:$0xf]
      %v1168 = vld [vmem:[%s629 + $0x4] sm:$0xf]
      %v1169 = vld [vmem:[%s629 + $0x8] sm:$0xf]
      %v1170 = vld [vmem:[%s629 + $0xc] sm:$0xf]
      %v1172 = vsel %vm1045, %v1163, 0
      %vm1174 = vcmask 1043456
      %v1176 = vsel %vm1174, %v1167, 0
      %1178 = vmatprep.subr.bf16.mxu0 0
      %1179 = vmatpush1.bf16.msra.mxu0 %v1176
      %1180 = vmatprep.subr.bf16.mxu0 0
      %1181 = vmatpush1.bf16.msra.mxu0 0
      %1182 = vmatprep.subr.bf16.mxu0 0
      %1183 = vmatpush1.bf16.msra.mxu0 0
      %1184 = vmatprep.subr.bf16.mxu0 0
      %1185 = vmatpush1.bf16.msra.mxu0 0
      %1186 = vmatprep.subr.bf16.mxu0 0
      %1187 = vmatpush1.bf16.msra.mxu0 0
      %1188 = vmatprep.subr.bf16.mxu0 0
      %1189 = vmatpush1.bf16.msra.mxu0 0
      %1190 = vmatprep.subr.bf16.mxu0 0
      %1191 = vmatpush1.bf16.msra.mxu0 0
      %1192 = vmatprep.subr.bf16.mxu0 0
      %1193 = vmatpush1.bf16.msra.mxu0 0
      %1194 = vmatprep.subr.bf16.mxu0 0
      %1195 = vmatpush1.bf16.msra.mxu0 0
      %1196 = vmatprep.subr.bf16.mxu0 0
      %1197 = vmatpush1.bf16.msra.mxu0 0
      %1198 = vmatprep.subr.bf16.mxu0 0
      %1199 = vmatpush1.bf16.msra.mxu0 0
      %1200 = vmatprep.subr.bf16.mxu0 0
      %1201 = vmatpush1.bf16.msra.mxu0 0
      %1202 = vmatprep.subr.bf16.mxu0 0
      %1203 = vmatpush1.bf16.msra.mxu0 0
      %1204 = vmatprep.subr.bf16.mxu0 0
      %1205 = vmatpush1.bf16.msra.mxu0 0
      %1206 = vmatprep.subr.bf16.mxu0 0
      %1207 = vmatpush1.bf16.msra.mxu0 0
      %1208 = vmatprep.subr.bf16.mxu0 0
      %1209 = vmatpush1.bf16.msra.mxu0 0
      %1210 = vmatprep.mubr.bf16.mxu0 0
      %1211 = vmatmul.mubr.bf16.gmra.mrb[0].mxu0 %v1172
      %v1212 = vpop.f32.mrb[0].mxu0
      %v1213 = vadd.f32 0.0, %v1212
      %v1214 = vpop.f32.mrb[0].mxu0
      %v1215 = vpop.f32.mrb[0].mxu0
      %v1216 = vpop.f32.mrb[0].mxu0
      %1217 = vdwg.mxu0
      %v1219 = vsel %vm1045, %v1164, 0
      %v1222 = vsel %vm1174, %v1168, 0
      %1224 = vmatprep.subr.bf16.mxu0 0
      %1225 = vmatpush1.bf16.msra.mxu0 %v1222
      %1226 = vmatprep.subr.bf16.mxu0 0
      %1227 = vmatpush1.bf16.msra.mxu0 0
      %1228 = vmatprep.subr.bf16.mxu0 0
      %1229 = vmatpush1.bf16.msra.mxu0 0
      %1230 = vmatprep.subr.bf16.mxu0 0
      %1231 = vmatpush1.bf16.msra.mxu0 0
      %1232 = vmatprep.subr.bf16.mxu0 0
      %1233 = vmatpush1.bf16.msra.mxu0 0
      %1234 = vmatprep.subr.bf16.mxu0 0
      %1235 = vmatpush1.bf16.msra.mxu0 0
      %1236 = vmatprep.subr.bf16.mxu0 0
      %1237 = vmatpush1.bf16.msra.mxu0 0
      %1238 = vmatprep.subr.bf16.mxu0 0
      %1239 = vmatpush1.bf16.msra.mxu0 0
      %1240 = vmatprep.subr.bf16.mxu0 0
      %1241 = vmatpush1.bf16.msra.mxu0 0
      %1242 = vmatprep.subr.bf16.mxu0 0
      %1243 = vmatpush1.bf16.msra.mxu0 0
      %1244 = vmatprep.subr.bf16.mxu0 0
      %1245 = vmatpush1.bf16.msra.mxu0 0
      %1246 = vmatprep.subr.bf16.mxu0 0
      %1247 = vmatpush1.bf16.msra.mxu0 0
      %1248 = vmatprep.subr.bf16.mxu0 0
      %1249 = vmatpush1.bf16.msra.mxu0 0
      %1250 = vmatprep.subr.bf16.mxu0 0
      %1251 = vmatpush1.bf16.msra.mxu0 0
      %1252 = vmatprep.subr.bf16.mxu0 0
      %1253 = vmatpush1.bf16.msra.mxu0 0
      %1254 = vmatprep.subr.bf16.mxu0 0
      %1255 = vmatpush1.bf16.msra.mxu0 0
      %1256 = vmatprep.mubr.bf16.mxu0 0
      %1257 = vmatmul.mubr.bf16.gmra.mrb[0].mxu0 %v1219
      %v1258 = vpop.f32.mrb[0].mxu0
      %v1259 = vadd.f32 0.0, %v1258
      %v1260 = vpop.f32.mrb[0].mxu0
      %v1261 = vpop.f32.mrb[0].mxu0
      %v1262 = vpop.f32.mrb[0].mxu0
      %1263 = vdwg.mxu0
      %v1265 = vsel %vm1045, %v1165, 0
      %v1268 = vsel %vm1174, %v1169, 0
      %1270 = vmatprep.subr.bf16.mxu0 0
      %1271 = vmatpush1.bf16.msra.mxu0 %v1268
      %1272 = vmatprep.subr.bf16.mxu0 0
      %1273 = vmatpush1.bf16.msra.mxu0 0
      %1274 = vmatprep.subr.bf16.mxu0 0
      %1275 = vmatpush1.bf16.msra.mxu0 0
      %1276 = vmatprep.subr.bf16.mxu0 0
      %1277 = vmatpush1.bf16.msra.mxu0 0
      %1278 = vmatprep.subr.bf16.mxu0 0
      %1279 = vmatpush1.bf16.msra.mxu0 0
      %1280 = vmatprep.subr.bf16.mxu0 0
      %1281 = vmatpush1.bf16.msra.mxu0 0
      %1282 = vmatprep.subr.bf16.mxu0 0
      %1283 = vmatpush1.bf16.msra.mxu0 0
      %1284 = vmatprep.subr.bf16.mxu0 0
      %1285 = vmatpush1.bf16.msra.mxu0 0
      %1286 = vmatprep.subr.bf16.mxu0 0
      %1287 = vmatpush1.bf16.msra.mxu0 0
      %1288 = vmatprep.subr.bf16.mxu0 0
      %1289 = vmatpush1.bf16.msra.mxu0 0
      %1290 = vmatprep.subr.bf16.mxu0 0
      %1291 = vmatpush1.bf16.msra.mxu0 0
      %1292 = vmatprep.subr.bf16.mxu0 0
      %1293 = vmatpush1.bf16.msra.mxu0 0
      %1294 = vmatprep.subr.bf16.mxu0 0
      %1295 = vmatpush1.bf16.msra.mxu0 0
      %1296 = vmatprep.subr.bf16.mxu0 0
      %1297 = vmatpush1.bf16.msra.mxu0 0
      %1298 = vmatprep.subr.bf16.mxu0 0
      %1299 = vmatpush1.bf16.msra.mxu0 0
      %1300 = vmatprep.subr.bf16.mxu0 0
      %1301 = vmatpush1.bf16.msra.mxu0 0
      %1302 = vmatprep.mubr.bf16.mxu0 0
      %1303 = vmatmul.mubr.bf16.gmra.mrb[0].mxu0 %v1265
      %v1304 = vpop.f32.mrb[0].mxu0
      %v1305 = vadd.f32 0.0, %v1304
      %v1306 = vpop.f32.mrb[0].mxu0
      %v1307 = vpop.f32.mrb[0].mxu0
      %v1308 = vpop.f32.mrb[0].mxu0
      %1309 = vdwg.mxu0
      %v1311 = vsel %vm1045, %v1166, 0
      %v1314 = vsel %vm1174, %v1170, 0
      %1316 = vmatprep.subr.bf16.mxu0 0
      %1317 = vmatpush1.bf16.msra.mxu0 %v1314
      %1318 = vmatprep.subr.bf16.mxu0 0
      %1319 = vmatpush1.bf16.msra.mxu0 0
      %1320 = vmatprep.subr.bf16.mxu0 0
      %1321 = vmatpush1.bf16.msra.mxu0 0
      %1322 = vmatprep.subr.bf16.mxu0 0
      %1323 = vmatpush1.bf16.msra.mxu0 0
      %1324 = vmatprep.subr.bf16.mxu0 0
      %1325 = vmatpush1.bf16.msra.mxu0 0
      %1326 = vmatprep.subr.bf16.mxu0 0
      %1327 = vmatpush1.bf16.msra.mxu0 0
      %1328 = vmatprep.subr.bf16.mxu0 0
      %1329 = vmatpush1.bf16.msra.mxu0 0
      %1330 = vmatprep.subr.bf16.mxu0 0
      %1331 = vmatpush1.bf16.msra.mxu0 0
      %1332 = vmatprep.subr.bf16.mxu0 0
      %1333 = vmatpush1.bf16.msra.mxu0 0
      %1334 = vmatprep.subr.bf16.mxu0 0
      %1335 = vmatpush1.bf16.msra.mxu0 0
      %1336 = vmatprep.subr.bf16.mxu0 0
      %1337 = vmatpush1.bf16.msra.mxu0 0
      %1338 = vmatprep.subr.bf16.mxu0 0
      %1339 = vmatpush1.bf16.msra.mxu0 0
      %1340 = vmatprep.subr.bf16.mxu0 0
      %1341 = vmatpush1.bf16.msra.mxu0 0
      %1342 = vmatprep.subr.bf16.mxu0 0
      %1343 = vmatpush1.bf16.msra.mxu0 0
      %1344 = vmatprep.subr.bf16.mxu0 0
      %1345 = vmatpush1.bf16.msra.mxu0 0
      %1346 = vmatprep.subr.bf16.mxu0 0
      %1347 = vmatpush1.bf16.msra.mxu0 0
      %1348 = vmatprep.mubr.bf16.mxu0 0
      %1349 = vmatmul.mubr.bf16.gmra.mrb[0].mxu0 %v1311
      %v1350 = vpop.f32.mrb[0].mxu0
      %v1351 = vadd.f32 0.0, %v1350
      %v1352 = vpop.f32.mrb[0].mxu0
      %v1353 = vpop.f32.mrb[0].mxu0
      %v1354 = vpop.f32.mrb[0].mxu0
      %1355 = vdwg.mxu0
      %v1356 = vadd.f32 %v1159, %v1213
      %v1357 = vadd.f32 %v1160, %v1259
      %v1358 = vadd.f32 %v1161, %v1305
      %v1359 = vadd.f32 %v1162, %v1351
      %1360 = vst.msk [vmem:[#allocation4] sm:$0xff] %vm782, %v1356
      %1361 = vst.msk [vmem:[#allocation4 + $0x8] sm:$0xff] %vm782, %v1357
      %1362 = vst.msk [vmem:[#allocation4 + $0x10] sm:$0xff] %vm782, %v1358
      %1363 = vst.msk [vmem:[#allocation4 + $0x18] sm:$0xff] %vm782, %v1359
      %1364 = vst.msk [vmem:[#allocation2] sm:$0xff] %vm1130, %v1058
      %1365 = vst.msk [vmem:[#allocation2 + $0x8] sm:$0xff] %vm1130, %v1059
      %1366 = vst.msk [vmem:[#allocation2 + $0x10] sm:$0xff] %vm1130, %v1060
      %1367 = vst.msk [vmem:[#allocation2 + $0x18] sm:$0xff] %vm1130, %v1061
      // Predicated region
      $region69: #{model_forward.8} parent=63 // pred_check
        %p1368 = pneg %p679
      $region70: #{model_forward.8} parent=63 // pred_check_branch
        %1370 = sbr.rel (%p1368) target = $region72
      $region71: #{model_forward.8} parent=63 // pred_region
        %v1371 = vld [vmem:[#allocation4] sm:$0xff]
        %v1372 = vld [vmem:[#allocation4 + $0x8] sm:$0xff]
        %v1373 = vld [vmem:[#allocation4 + $0x10] sm:$0xff]
        %v1374 = vld [vmem:[#allocation4 + $0x18] sm:$0xff]
        %v1375 = vld [vmem:[#allocation3] sm:$0xff]
        %v1376 = vld [vmem:[#allocation3 + $0x8] sm:$0xff]
        %v1377 = vld [vmem:[#allocation3 + $0x10] sm:$0xff]
        %v1378 = vld [vmem:[#allocation3 + $0x18] sm:$0xff]
        %v1379 = vrcp.pop %v1375
        %v1380 = vrcp.pop %v1376
        %v1381 = vrcp.pop %v1377
        %v1382 = vrcp.pop %v1378
        %1384 = vset.pattern.permute.xlu0 0
        %1385 = vperm.xlu0 %1384, %v1379
        %v1386 = vpop.permute.xlu0 %1385
        %1389 = vset.pattern.permute.xlu0 0
        %1390 = vperm.xlu0 %1389, %v1380
        %v1391 = vpop.permute.xlu0 %1390
        %1394 = vset.pattern.permute.xlu0 0
        %1395 = vperm.xlu0 %1394, %v1381
        %v1396 = vpop.permute.xlu0 %1395
        %1399 = vset.pattern.permute.xlu0 0
        %1400 = vperm.xlu0 %1399, %v1382
        %v1401 = vpop.permute.xlu0 %1400
        %v1403 = vmul.f32 %v1371, %v1386
        %v1404 = vmul.f32 %v1372, %v1391
        %v1405 = vmul.f32 %v1373, %v1396
        %v1406 = vmul.f32 %v1374, %v1401
        %v1407 = vpack.c.bf16 %v1403, %v1403
        %v1408 = vpack.c.bf16 %v1404, %v1404
        %v1409 = vpack.c.bf16 %v1405, %v1405
        %v1410 = vpack.c.bf16 %v1406, %v1406
        %v1411 = vld [vmem:[%s10] sm:$0xf]
        %v1412 = vld [vmem:[%s10 + $0x4] sm:$0xf]
        %v1413 = vld [vmem:[%s10 + $0x8] sm:$0xf]
        %v1414 = vld [vmem:[%s10 + $0xc] sm:$0xf]
        %v1415 = vld [vmem:[%s10 + $0x10] sm:$0xf]
        %v1416 = vld [vmem:[%s10 + $0x14] sm:$0xf]
        %v1417 = vld [vmem:[%s10 + $0x18] sm:$0xf]
        %v1418 = vld [vmem:[%s10 + $0x1c] sm:$0xf]
        %v1421 = vunpack.c.l.b16 %v1411
        %v1422 = vunpack.c.l.b16 %v1412
        %v1423 = vpack.c.b16 %v1422, %v1421
        %v1426 = vsel %vm782, %v1407, 0
        %1428 = vmatprep.subr.bf16.mxu0 0
        %1429 = vmatpush1.bf16.msra.mxu0 %v1423
        %1430 = vmatprep.subr.bf16.mxu0 0
        %1431 = vmatpush1.bf16.msra.mxu0 0
        %1432 = vmatprep.subr.bf16.mxu0 0
        %1433 = vmatpush1.bf16.msra.mxu0 0
        %1434 = vmatprep.subr.bf16.mxu0 0
        %1435 = vmatpush1.bf16.msra.mxu0 0
        %1436 = vmatprep.subr.bf16.mxu0 0
        %1437 = vmatpush1.bf16.msra.mxu0 0
        %1438 = vmatprep.subr.bf16.mxu0 0
        %1439 = vmatpush1.bf16.msra.mxu0 0
        %1440 = vmatprep.subr.bf16.mxu0 0
        %1441 = vmatpush1.bf16.msra.mxu0 0
        %1442 = vmatprep.subr.bf16.mxu0 0
        %1443 = vmatpush1.bf16.msra.mxu0 0
        %1444 = vmatprep.subr.bf16.mxu0 0
        %1445 = vmatpush1.bf16.msra.mxu0 0
        %1446 = vmatprep.subr.bf16.mxu0 0
        %1447 = vmatpush1.bf16.msra.mxu0 0
        %1448 = vmatprep.subr.bf16.mxu0 0
        %1449 = vmatpush1.bf16.msra.mxu0 0
        %1450 = vmatprep.subr.bf16.mxu0 0
        %1451 = vmatpush1.bf16.msra.mxu0 0
        %1452 = vmatprep.subr.bf16.mxu0 0
        %1453 = vmatpush1.bf16.msra.mxu0 0
        %1454 = vmatprep.subr.bf16.mxu0 0
        %1455 = vmatpush1.bf16.msra.mxu0 0
        %1456 = vmatprep.subr.bf16.mxu0 0
        %1457 = vmatpush1.bf16.msra.mxu0 0
        %1458 = vmatprep.subr.bf16.mxu0 0
        %1459 = vmatpush1.bf16.msra.mxu0 0
        %1460 = vmatprep.mubr.bf16.mxu0 0
        %1461 = vmatmul.mubr.bf16.gmra.mrb[0].mxu0 %v1426
        %v1462 = vpop.f32.mrb[0].mxu0
        %v1463 = vadd.f32 0.0, %v1462
        %v1464 = vpop.f32.mrb[0].mxu0
        %v1465 = vpop.f32.mrb[0].mxu0
        %v1466 = vpop.f32.mrb[0].mxu0
        %1467 = vdwg.mxu0
        %v1470 = vunpack.c.l.b16 %v1413
        %v1471 = vunpack.c.l.b16 %v1414
        %v1472 = vpack.c.b16 %v1471, %v1470
        %v1475 = vsel %vm782, %v1408, 0
        %1477 = vmatprep.subr.bf16.mxu0 0
        %1478 = vmatpush1.bf16.msra.mxu0 %v1472
        %1479 = vmatprep.subr.bf16.mxu0 0
        %1480 = vmatpush1.bf16.msra.mxu0 0
        %1481 = vmatprep.subr.bf16.mxu0 0
        %1482 = vmatpush1.bf16.msra.mxu0 0
        %1483 = vmatprep.subr.bf16.mxu0 0
        %1484 = vmatpush1.bf16.msra.mxu0 0
        %1485 = vmatprep.subr.bf16.mxu0 0
        %1486 = vmatpush1.bf16.msra.mxu0 0
        %1487 = vmatprep.subr.bf16.mxu0 0
        %1488 = vmatpush1.bf16.msra.mxu0 0
        %1489 = vmatprep.subr.bf16.mxu0 0
        %1490 = vmatpush1.bf16.msra.mxu0 0
        %1491 = vmatprep.subr.bf16.mxu0 0
        %1492 = vmatpush1.bf16.msra.mxu0 0
        %1493 = vmatprep.subr.bf16.mxu0 0
        %1494 = vmatpush1.bf16.msra.mxu0 0
        %1495 = vmatprep.subr.bf16.mxu0 0
        %1496 = vmatpush1.bf16.msra.mxu0 0
        %1497 = vmatprep.subr.bf16.mxu0 0
        %1498 = vmatpush1.bf16.msra.mxu0 0
        %1499 = vmatprep.subr.bf16.mxu0 0
        %1500 = vmatpush1.bf16.msra.mxu0 0
        %1501 = vmatprep.subr.bf16.mxu0 0
        %1502 = vmatpush1.bf16.msra.mxu0 0
        %1503 = vmatprep.subr.bf16.mxu0 0
        %1504 = vmatpush1.bf16.msra.mxu0 0
        %1505 = vmatprep.subr.bf16.mxu0 0
        %1506 = vmatpush1.bf16.msra.mxu0 0
        %1507 = vmatprep.subr.bf16.mxu0 0
        %1508 = vmatpush1.bf16.msra.mxu0 0
        %1509 = vmatprep.mubr.bf16.mxu0 0
        %1510 = vmatmul.mubr.bf16.gmra.mrb[0].mxu0 %v1475
        %v1511 = vpop.f32.mrb[0].mxu0
        %v1512 = vadd.f32 0.0, %v1511
        %v1513 = vpop.f32.mrb[0].mxu0
        %v1514 = vpop.f32.mrb[0].mxu0
        %v1515 = vpop.f32.mrb[0].mxu0
        %1516 = vdwg.mxu0
        %v1519 = vunpack.c.l.b16 %v1415
        %v1520 = vunpack.c.l.b16 %v1416
        %v1521 = vpack.c.b16 %v1520, %v1519
        %v1524 = vsel %vm782, %v1409, 0
        %1526 = vmatprep.subr.bf16.mxu0 0
        %1527 = vmatpush1.bf16.msra.mxu0 %v1521
        %1528 = vmatprep.subr.bf16.mxu0 0
        %1529 = vmatpush1.bf16.msra.mxu0 0
        %1530 = vmatprep.subr.bf16.mxu0 0
        %1531 = vmatpush1.bf16.msra.mxu0 0
        %1532 = vmatprep.subr.bf16.mxu0 0
        %1533 = vmatpush1.bf16.msra.mxu0 0
        %1534 = vmatprep.subr.bf16.mxu0 0
        %1535 = vmatpush1.bf16.msra.mxu0 0
        %1536 = vmatprep.subr.bf16.mxu0 0
        %1537 = vmatpush1.bf16.msra.mxu0 0
        %1538 = vmatprep.subr.bf16.mxu0 0
        %1539 = vmatpush1.bf16.msra.mxu0 0
        %1540 = vmatprep.subr.bf16.mxu0 0
        %1541 = vmatpush1.bf16.msra.mxu0 0
        %1542 = vmatprep.subr.bf16.mxu0 0
        %1543 = vmatpush1.bf16.msra.mxu0 0
        %1544 = vmatprep.subr.bf16.mxu0 0
        %1545 = vmatpush1.bf16.msra.mxu0 0
        %1546 = vmatprep.subr.bf16.mxu0 0
        %1547 = vmatpush1.bf16.msra.mxu0 0
        %1548 = vmatprep.subr.bf16.mxu0 0
        %1549 = vmatpush1.bf16.msra.mxu0 0
        %1550 = vmatprep.subr.bf16.mxu0 0
        %1551 = vmatpush1.bf16.msra.mxu0 0
        %1552 = vmatprep.subr.bf16.mxu0 0
        %1553 = vmatpush1.bf16.msra.mxu0 0
        %1554 = vmatprep.subr.bf16.mxu0 0
        %1555 = vmatpush1.bf16.msra.mxu0 0
        %1556 = vmatprep.subr.bf16.mxu0 0
        %1557 = vmatpush1.bf16.msra.mxu0 0
        %1558 = vmatprep.mubr.bf16.mxu0 0
        %1559 = vmatmul.mubr.bf16.gmra.mrb[0].mxu0 %v1524
        %v1560 = vpop.f32.mrb[0].mxu0
        %v1561 = vadd.f32 0.0, %v1560
        %v1562 = vpop.f32.mrb[0].mxu0
        %v1563 = vpop.f32.mrb[0].mxu0
        %v1564 = vpop.f32.mrb[0].mxu0
        %1565 = vdwg.mxu0
        %v1568 = vunpack.c.l.b16 %v1417
        %v1569 = vunpack.c.l.b16 %v1418
        %v1570 = vpack.c.b16 %v1569, %v1568
        %v1573 = vsel %vm782, %v1410, 0
        %1575 = vmatprep.subr.bf16.mxu0 0
        %1576 = vmatpush1.bf16.msra.mxu0 %v1570
        %1577 = vmatprep.subr.bf16.mxu0 0
        %1578 = vmatpush1.bf16.msra.mxu0 0
        %1579 = vmatprep.subr.bf16.mxu0 0
        %1580 = vmatpush1.bf16.msra.mxu0 0
        %1581 = vmatprep.subr.bf16.mxu0 0
        %1582 = vmatpush1.bf16.msra.mxu0 0
        %1583 = vmatprep.subr.bf16.mxu0 0
        %1584 = vmatpush1.bf16.msra.mxu0 0
        %1585 = vmatprep.subr.bf16.mxu0 0
        %1586 = vmatpush1.bf16.msra.mxu0 0
        %1587 = vmatprep.subr.bf16.mxu0 0
        %1588 = vmatpush1.bf16.msra.mxu0 0
        %1589 = vmatprep.subr.bf16.mxu0 0
        %1590 = vmatpush1.bf16.msra.mxu0 0
        %1591 = vmatprep.subr.bf16.mxu0 0
        %1592 = vmatpush1.bf16.msra.mxu0 0
        %1593 = vmatprep.subr.bf16.mxu0 0
        %1594 = vmatpush1.bf16.msra.mxu0 0
        %1595 = vmatprep.subr.bf16.mxu0 0
        %1596 = vmatpush1.bf16.msra.mxu0 0
        %1597 = vmatprep.subr.bf16.mxu0 0
        %1598 = vmatpush1.bf16.msra.mxu0 0
        %1599 = vmatprep.subr.bf16.mxu0 0
        %1600 = vmatpush1.bf16.msra.mxu0 0
        %1601 = vmatprep.subr.bf16.mxu0 0
        %1602 = vmatpush1.bf16.msra.mxu0 0
        %1603 = vmatprep.subr.bf16.mxu0 0
        %1604 = vmatpush1.bf16.msra.mxu0 0
        %1605 = vmatprep.subr.bf16.mxu0 0
        %1606 = vmatpush1.bf16.msra.mxu0 0
        %1607 = vmatprep.mubr.bf16.mxu0 0
        %1608 = vmatmul.mubr.bf16.gmra.mrb[0].mxu0 %v1573
        %v1609 = vpop.f32.mrb[0].mxu0
        %v1610 = vadd.f32 0.0, %v1609
        %v1611 = vpop.f32.mrb[0].mxu0
        %v1612 = vpop.f32.mrb[0].mxu0
        %v1613 = vpop.f32.mrb[0].mxu0
        %1614 = vdwg.mxu0
        %vm1615 = vcmask 523264
        %v1616 = vsel %vm1615, %v1463, 0.0
        %v1617 = vsel %vm1615, %v1512, 0.0
        %v1618 = vadd.f32 %v1616, %v1617
        %v1619 = vsel %vm1615, %v1561, 0.0
        %v1620 = vadd.f32 %v1618, %v1619
        %v1621 = vsel %vm1615, %v1610, 0.0
        %v1622 = vadd.f32 %v1620, %v1621
        %v1623 = vld [vmem:[%s605] sm:$0xf]
        %v1624 = vunpack.c.l.bf16 %v1623
        %v1625 = vadd.f32 %v1624, %v1622
        %v1626 = vpack.c.bf16 %v1625, %v1625
        %vm1627 = vcmask 519168
        %1628 = vst.msk [vmem:[%s677] sm:$0xf] %vm1627, %v1626
      $region72: #{model_forward.8} parent=63 // pred_fallthru
        _
      %p1629 = scmp.lt.s32.totalorder %s27, 1
      %s1630 = scalar_select %p1629, %s27, 1
      %p1631 = scmp.lt.s32.totalorder %s28, 0
      %s1632 = scalar_select %p1631, %s28, 0
      %s1633 = sadd.s32 %s1632, %s1630
      %s1634 = smul.addr %s1633, 4
      %s1635 = scalar_lea.vmem %s11, %s1634
      // Predicated region
      $region73: #{model_forward.8} parent=63 // pred_check
        %p1636 = pneg %p362
      $region74: #{model_forward.8} parent=63 // pred_check_branch
        %1638 = sbr.rel (%p1636) target = $region76
      $region75: #{model_forward.8} parent=63 // pred_region
        _
      $region76: #{model_forward.8} parent=63 // pred_fallthru
        _
    $region64: #{model_forward.8} parent=5 // pred_fallthru
      _
    %p1639 = scmp.le.s32.totalorder 2, %s17
    // Predicated region
    $region77: #{model_forward.8} parent=5 // pred_check
      %p1640 = pneg %p1639
    $region78: #{model_forward.8} parent=5 // pred_check_branch
      %1642 = sbr.rel (%p1640) target = $region80
    $region79: #{model_forward.8} parent=5 // pred_region
      %s1643 = ssub.s32 %s17, 2
      // Predicated region
      $region81: #{model_forward.8} parent=79 // pred_check
        %p1644 = pneg %p368
      $region82: #{model_forward.8} parent=79 // pred_check_branch
        %1646 = sbr.rel (%p1644) target = $region84
      $region83: #{model_forward.8} parent=79 // pred_region
        %p1647 = scmp.lt.s32.totalorder %s30, 1
        %s1648 = scalar_select %p1647, %s30, 1
        %p1649 = scmp.lt.s32.totalorder %s31, 0
        %s1650 = scalar_select %p1649, %s31, 0
        %s1651 = sadd.s32 %s1650, %s1648
        %s1652 = smul.addr %s1651, 4
        %s1653 = scalar_lea.vmem %s11, %s1652
      $region84: #{model_forward.8} parent=79 // pred_fallthru
        _
    $region80: #{model_forward.8} parent=5 // pred_fallthru
      _
  $region6: #{model_forward.8} parent=0 // loop_footer
    %s21 = sadd.s32 1, %s17
  $region7: #{model_forward.8} parent=0 // loop_footer_branch
    %16 = sbr.rel target = $region3
  $region8: #{model_forward.8} parent=0 // loop_exit
    _

// kernel: model_forward.13
$region0: #{model_forward.13}
  #allocation0 [shape = 'u32[]', space=smem, size = 0x4, offset = 0x4, fixed_abs, tag = 'smem constant byte address 0x4 - core index']
  #allocation1 [shape = 'u32[144,128]{1,0:T(1,128)}', space=vmem, size = 0x12000, scoped, tag = 'internal scratch']
  %s0 = inlined_call_operand.vmem [shape: bf16[16,64], index: 0, kind: input, shape index: {}]
  %s1 = inlined_call_operand.vmem [shape: f32[1,64], index: 1, kind: input, shape index: {}]
  %s2 = inlined_call_operand.vmem [shape: bf16[64,128], index: 2, kind: input, shape index: {}]
  %s3 = inlined_call_operand.hbm [shape: f32[16,128], index: 3, kind: output, shape index: {}]
  %s4 = sld [smem:[#allocation0]]
  $region22: #{model_forward.13} parent=0
    _
  %s6 = ssub.s32 1, %s4
  %s7 = scalar_select 0, %s6, %s4
  $region1: #{model_forward.13} parent=0
    #allocation2 [shape = 'u8[8192]{0}', space=vmem, size = 0x2000, scoped, tag = 'output window, operand 0, single buffered']
    #allocation3 [shape = 's32[1]{0}', space=sflag, size = 0x4, scoped, tag = 'scoped memory for model_forward.13']
    %8 = vsyncpa [#allocation3], 0
    // Predicated region
    $region2: #{model_forward.13} parent=1 // pred_check
      _
    $region3: #{model_forward.13} parent=1 // pred_check_branch
      %10 = sbr.rel (0) target = $region5
    $region4: #{model_forward.13} parent=1 // pred_region
      _
    $region5: #{model_forward.13} parent=1 // pred_fallthru
      _
    // Predicated region
    $region6: #{model_forward.13} parent=1 // pred_check
      _
    $region7: #{model_forward.13} parent=1 // pred_check_branch
      %12 = sbr.rel (0) target = $region9
    $region8: #{model_forward.13} parent=1 // pred_region
      _
    $region9: #{model_forward.13} parent=1 // pred_fallthru
      _
    // Predicated region
    $region10: #{model_forward.13} parent=1 // pred_check
      _
    $region11: #{model_forward.13} parent=1 // pred_check_branch
      %14 = sbr.rel (0) target = $region13
    $region12: #{model_forward.13} parent=1 // pred_region
      _
    $region13: #{model_forward.13} parent=1 // pred_fallthru
      _
    %v16 = vld [vmem:[%s0] sm:$0xf]
    %v17 = vld [vmem:[%s0 + $0x4] sm:$0xf]
    %v18 = vunpack.c.l.bf16 %v16
    %v19 = vunpack.c.l.bf16 %v17
    %v20 = vld [vmem:[%s1] sm:$0x1]
    %v21 = vmul.f32 %v18, %v18
    %v22 = vmul.f32 %v19, %v19
    %vm23 = vcmask 523264
    %v24 = vsel %vm23, %v21, 0.0
    %25 = vadd.xlane.f32.xlu0 %v24
    %v26 = vpop.xlane.xlu0 %25
    %v27 = vsel %vm23, %v22, 0.0
    %28 = vadd.xlane.f32.xlu0 %v27
    %v29 = vpop.xlane.xlu0 %28
    %v30 = vrcp.pop 64.0
    %v31 = vmul.f32 %v26, %v30
    %v32 = vmul.f32 %v29, %v30
    %v33 = vadd.f32 %v31, 1e-06
    %v34 = vadd.f32 %v32, 1e-06
    %v35 = vrsqrt.pop %v33
    %v36 = vrsqrt.pop %v34
    %v37 = vmul.f32 %v18, %v35
    %v38 = vmul.f32 %v19, %v36
    %v40 = vlaneseq
    %v41 = vshrl.u32 %v40, 7
    %v42 = vsub.s32 0, %v41
    %v43 = vrot.slane %v20, %v42
    %v45 = vmul.f32 %v37, %v43
    %v46 = vmul.f32 %v38, %v43
    %v47 = vpack.c.bf16 %v46, %v45
    %v48 = vld [vmem:[%s2] sm:$0xf]
    %v49 = vld [vmem:[%s2 + $0x4] sm:$0xf]
    %v50 = vld [vmem:[%s2 + $0x8] sm:$0xf]
    %v51 = vld [vmem:[%s2 + $0xc] sm:$0xf]
    %v52 = vld [vmem:[%s2 + $0x10] sm:$0xf]
    %v53 = vld [vmem:[%s2 + $0x14] sm:$0xf]
    %v54 = vld [vmem:[%s2 + $0x18] sm:$0xf]
    %v55 = vld [vmem:[%s2 + $0x1c] sm:$0xf]
    %v64 = vunpack.c.l.b16 %v48
    %v65 = vunpack.c.l.b16 %v49
    %v66 = vunpack.c.l.b16 %v50
    %v67 = vunpack.c.l.b16 %v51
    %v68 = vunpack.c.l.b16 %v52
    %v69 = vunpack.c.l.b16 %v53
    %v70 = vunpack.c.l.b16 %v54
    %v71 = vunpack.c.l.b16 %v55
    %v72 = vpack.c.b16 %v65, %v64
    %v73 = vpack.c.b16 %v67, %v66
    %v74 = vpack.c.b16 %v69, %v68
    %v75 = vpack.c.b16 %v71, %v70
    %v81 = vsel %vm23, %v47, 0
    %83 = vmatprep.subr.bf16.mxu0 0
    %84 = vmatpush1.bf16.msra.mxu0 %v72
    %85 = vmatprep.subr.bf16.mxu0 0
    %86 = vmatpush1.bf16.msra.mxu0 %v73
    %87 = vmatprep.subr.bf16.mxu0 0
    %88 = vmatpush1.bf16.msra.mxu0 %v74
    %89 = vmatprep.subr.bf16.mxu0 0
    %90 = vmatpush1.bf16.msra.mxu0 %v75
    %91 = vmatprep.subr.bf16.mxu0 0
    %92 = vmatpush1.bf16.msra.mxu0 0
    %93 = vmatprep.subr.bf16.mxu0 0
    %94 = vmatpush1.bf16.msra.mxu0 0
    %95 = vmatprep.subr.bf16.mxu0 0
    %96 = vmatpush1.bf16.msra.mxu0 0
    %97 = vmatprep.subr.bf16.mxu0 0
    %98 = vmatpush1.bf16.msra.mxu0 0
    %99 = vmatprep.subr.bf16.mxu0 0
    %100 = vmatpush1.bf16.msra.mxu0 0
    %101 = vmatprep.subr.bf16.mxu0 0
    %102 = vmatpush1.bf16.msra.mxu0 0
    %103 = vmatprep.subr.bf16.mxu0 0
    %104 = vmatpush1.bf16.msra.mxu0 0
    %105 = vmatprep.subr.bf16.mxu0 0
    %106 = vmatpush1.bf16.msra.mxu0 0
    %107 = vmatprep.subr.bf16.mxu0 0
    %108 = vmatpush1.bf16.msra.mxu0 0
    %109 = vmatprep.subr.bf16.mxu0 0
    %110 = vmatpush1.bf16.msra.mxu0 0
    %111 = vmatprep.subr.bf16.mxu0 0
    %112 = vmatpush1.bf16.msra.mxu0 0
    %113 = vmatprep.subr.bf16.mxu0 0
    %114 = vmatpush1.bf16.msra.mxu0 0
    %115 = vmatprep.mubr.bf16.mxu0 0
    %116 = vmatmul.mubr.bf16.gmra.mrb[0].mxu0 %v81
    %v117 = vpop.f32.mrb[0].mxu0
    %v118 = vadd.f32 0.0, %v117
    %v119 = vpop.f32.mrb[0].mxu0
    %v120 = vpop.f32.mrb[0].mxu0
    %v121 = vadd.f32 0.0, %v120
    %v122 = vpop.f32.mrb[0].mxu0
    %123 = vdwg.mxu0
    %124 = vst [vmem:[#allocation2] sm:$0xff] %v118
    %125 = vst [vmem:[#allocation2 + $0x8] sm:$0xff] %v121
    // Predicated region
    $region14: #{model_forward.13} parent=1 // pred_check
      _
    $region15: #{model_forward.13} parent=1 // pred_check_branch
      %127 = sbr.rel (0) target = $region17
    $region16: #{model_forward.13} parent=1 // pred_region
      %s129 = ssub.s32 256, 256
      %130 = vsyncadd [#allocation3], %s129
      %s131 = sshll.u32 [#allocation2], 4
      %s132 = int_to_ptr.vmem [resolvable:$true] %s131
      %137 = dma.vmem_to_hbm [thread:$0]  %s132, 256, %s3, [#allocation3], 128, 128, 8
    $region17: #{model_forward.13} parent=1 // pred_fallthru
      _
    // Predicated region
    $region18: #{model_forward.13} parent=1 // pred_check
      _
    $region19: #{model_forward.13} parent=1 // pred_check_branch
      %139 = sbr.rel (0) target = $region21
    $region20: #{model_forward.13} parent=1 // pred_region
      %140 = dma.done [#allocation3], 256
    $region21: #{model_forward.13} parent=1 // pred_fallthru
      _
    %141 = vsyncpa [#allocation3], 1

</llo_original>
